<compile_context>
chip_gen: v6e
topology: v6e:2x2x1
jax: 0.10.0
libtpu: 0.0.40
codegen_flags: <defaults>
</compile_context>

<pallas_src>
import jax
import jax.numpy as jnp
from jax.experimental import pallas as pl
from jax.experimental.pallas import tpu as pltpu


# ----------------------------- Pallas kernel ------------------------------ #
def decoder_kernel(
    # inputs
    enc_ref,          # (B, HW, E)     bf16
    emb_ref,          # (1, B, emb)    bf16 -- caption embedding for this time step
    w_encattn_ref,    # (E, A)         bf16
    b_encattn_ref,    # (1, A)         f32
    w_dec_gate_ref,   # (H, A+E)       bf16  [dec_attn | gate]
    b_dec_gate_ref,   # (1, A+E)       f32
    v_w_ref,          # (1, A)         f32
    v_b_ref,          # (1, 1)         f32
    w_init_ref,       # (E, 2H)        bf16  [fc_h | fc_c]
    b_init_ref,       # (1, 2H)        f32
    w_lstm_ref,       # (emb+E+H, 4H)  bf16  [W_ih_emb ; W_ih_ctx ; W_hh]
    b_lstm_ref,       # (1, 4H)        f32   (b_ih + b_hh)
    w_fc_ref,         # (H, V)         bf16
    b_fc_ref,         # (1, V)         f32
    # outputs (constant index maps => VMEM-resident across the whole time grid)
    out_ref,          # (B, T, V)      f32
    h_ref,            # (B, H)         f32  -- doubles as the recurrent hidden state
    c_ref,            # (B, H)         f32  -- doubles as the recurrent cell state
    # scratch
    attn1_scr,        # VMEM (B, HW, A) f32 -- hoisted encoder attention projection
):
    t = pl.program_id(0)
    B, HW, E = enc_ref.shape
    A = w_encattn_ref.shape[1]
    H = h_ref.shape[1]

    enc = enc_ref[...]                                            # bf16 (B, HW, E)

    # --- one-time work (t == 0): init h/c and hoist the encoder attention projection ---
    @pl.when(t == 0)
    def _():
        enc_mean = jnp.mean(enc.astype(jnp.float32), axis=1)      # (B, E) f32
        hc = jnp.dot(enc_mean.astype(jnp.bfloat16), w_init_ref[...],
                     preferred_element_type=jnp.float32) + b_init_ref[...]
        h_ref[...] = hc[:, :H]
        c_ref[...] = hc[:, H:]
        attn1 = jnp.dot(enc.reshape(B * HW, E), w_encattn_ref[...],
                        preferred_element_type=jnp.float32) + b_encattn_ref[...]
        attn1_scr[...] = attn1.reshape(B, HW, A)

    h = h_ref[...]                                                # f32 (B, H)
    c = c_ref[...]                                                # f32 (B, H)
    h_bf = h.astype(jnp.bfloat16)

    # ---------------- attention (attn2) + gate: one fused matmul on h ----------------- #
    dg = jnp.dot(h_bf, w_dec_gate_ref[...],
                 preferred_element_type=jnp.float32) + b_dec_gate_ref[...]
    attn2 = dg[:, :A]                                             # (B, A)
    gate = jax.nn.sigmoid(dg[:, A:])                              # (B, E)

    score = jnp.maximum(attn1_scr[...] + attn2[:, None, :], 0.0)  # relu, (B, HW, A)
    logits = jnp.sum(score * v_w_ref[...], axis=-1) + v_b_ref[...]  # (B, HW)
    m = jnp.max(logits, axis=1, keepdims=True)
    e = jnp.exp(logits - m)
    alpha = e * pl.reciprocal(jnp.sum(e, axis=1, keepdims=True), approx=True)

    # context = sum_hw alpha * enc  -> batched contraction on the MXU
    context = jnp.einsum('bqk,bke->bqe',
                         alpha[:, None, :].astype(jnp.bfloat16), enc,
                         preferred_element_type=jnp.float32)[:, 0, :]   # (B, E) f32
    context = context * gate

    # --------------------- LSTM cell: single fused input matmul ----------------------- #
    x = jnp.concatenate([emb_ref[0], context.astype(jnp.bfloat16), h_bf], axis=-1)
    gates = jnp.dot(x, w_lstm_ref[...],
                    preferred_element_type=jnp.float32) + b_lstm_ref[...]   # (B, 4H)
    i_g = jax.nn.sigmoid(gates[:, 0 * H:1 * H])
    f_g = jax.nn.sigmoid(gates[:, 1 * H:2 * H])
    g_g = jnp.tanh(gates[:, 2 * H:3 * H])
    o_g = jax.nn.sigmoid(gates[:, 3 * H:4 * H])
    c_new = f_g * c + i_g * g_g
    h_new = o_g * jnp.tanh(c_new)

    h_ref[...] = h_new
    c_ref[...] = c_new

    # ------------- vocab projection, written into row t of resident (B,T,V) ------------ #
    step_out = jnp.dot(h_new.astype(jnp.bfloat16), w_fc_ref[...],
                       preferred_element_type=jnp.float32) + b_fc_ref[...]  # (B, V)
    out_ref[:, pl.ds(t, 1), :] = step_out[:, None, :]


# ------------------------------ JAX wrapper -------------------------------- #
def init_params(key, enc_size, emb_size, vocab_size, attn_size):
    H = enc_size
    ks = jax.random.split(key, 16)
    u = lambda k, shape, s=0.1: jax.random.uniform(k, shape, jnp.float32, -s, s)
    return dict(
        embed=u(ks[0], (vocab_size, emb_size)),                 # embed.weight ~ U(-0.1, 0.1)
        w_encattn=u(ks[1], (enc_size, attn_size)),
        b_encattn=u(ks[2], (1, attn_size)),
        w_decattn=u(ks[3], (H, attn_size)),
        b_decattn=u(ks[4], (1, attn_size)),
        v_w=u(ks[5], (1, attn_size)),
        v_b=u(ks[6], (1, 1)),
        w_fch=u(ks[7], (enc_size, H)),
        b_fch=jnp.zeros((1, H), jnp.float32),
        w_fcc=u(ks[8], (enc_size, H)),
        b_fcc=jnp.zeros((1, H), jnp.float32),
        w_gate=u(ks[9], (H, enc_size)),
        b_gate=jnp.zeros((1, enc_size), jnp.float32),
        w_ih_emb=u(ks[10], (emb_size, 4 * H)),
        w_ih_ctx=u(ks[11], (enc_size, 4 * H)),
        w_hh=u(ks[12], (H, 4 * H)),
        b_lstm=u(ks[13], (1, 4 * H)),
        w_fc=u(ks[14], (H, vocab_size)),                        # fc.weight ~ U(-0.1, 0.1)
        b_fc=jnp.zeros((1, vocab_size), jnp.float32),           # fc.bias = 0
    )


@jax.jit
def decoder_forward(params, enc_out, captions, caplens=None):
    # caplens accepted for API parity but (like the PyTorch forward) unused.
    del caplens
    B, HW, E = enc_out.shape
    T = captions.shape[1]
    H = E
    V, emb_size = params['embed'].shape
    A = params['w_encattn'].shape[1]

    bf = lambda x: x.astype(jnp.bfloat16)

    cap_emb = params['embed'][captions]                     # (B, T, emb) embedding gather (glue)
    cap_emb_t = bf(jnp.transpose(cap_emb, (1, 0, 2)))       # (T, B, emb)

    # Pack weights for the fused matmuls (bf16 weights, f32 biases).
    w_encattn = bf(params['w_encattn'])
    b_encattn = params['b_encattn']
    w_dec_gate = bf(jnp.concatenate([params['w_decattn'], params['w_gate']], axis=1))
    b_dec_gate = jnp.concatenate([params['b_decattn'], params['b_gate']], axis=1)
    v_w, v_b = params['v_w'], params['v_b']
    w_init = bf(jnp.concatenate([params['w_fch'], params['w_fcc']], axis=1))
    b_init = jnp.concatenate([params['b_fch'], params['b_fcc']], axis=1)
    w_lstm = bf(jnp.concatenate([params['w_ih_emb'], params['w_ih_ctx'], params['w_hh']],
                                axis=0))
    b_lstm = params['b_lstm']
    w_fc = bf(params['w_fc'])
    b_fc = params['b_fc']

    weights = [w_encattn, b_encattn, w_dec_gate, b_dec_gate, v_w, v_b,
               w_init, b_init, w_lstm, b_lstm, w_fc, b_fc]

    in_specs = [
        pl.BlockSpec((B, HW, E), lambda t: (0, 0, 0)),           # enc_out, resident
        pl.BlockSpec((1, B, emb_size), lambda t: (t, 0, 0)),     # per-step caption embedding
    ] + [pl.BlockSpec(w.shape, lambda t, n=w.ndim: (0,) * n) for w in weights]

    out_shapes = (
        jax.ShapeDtypeStruct((B, T, V), jnp.float32),
        jax.ShapeDtypeStruct((B, H), jnp.float32),
        jax.ShapeDtypeStruct((B, H), jnp.float32),
    )
    out_specs = (
        pl.BlockSpec((B, T, V), lambda t: (0, 0, 0)),            # resident; row t written/step
        pl.BlockSpec((B, H), lambda t: (0, 0)),                  # resident recurrent h
        pl.BlockSpec((B, H), lambda t: (0, 0)),                  # resident recurrent c
    )

    outputs, h, c = pl.pallas_call(
        decoder_kernel,
        out_shape=out_shapes,
        grid=(T,),
        in_specs=in_specs,
        out_specs=out_specs,
        scratch_shapes=[pltpu.VMEM((B, HW, A), jnp.float32)],
        compiler_params=pltpu.CompilerParams(
            dimension_semantics=("arbitrary",),          # recurrence + resident outputs
            vmem_limit_bytes=64 * 1024 * 1024),
    )(bf(enc_out), cap_emb_t, *weights)

    return outputs, (h, c)


# --------------------------- pure-JAX reference ----------------------------- #
def decoder_ref(params, enc_out, captions):
    emb = params['embed'][captions]
    B, T, _ = emb.shape
    H = enc_out.shape[-1]
    enc_mean = enc_out.mean(axis=1)
    h = enc_mean @ params['w_fch'] + params['b_fch'][0]
    c = enc_mean @ params['w_fcc'] + params['b_fcc'][0]
    outs = []
    for t in range(T):
        attn1 = enc_out @ params['w_encattn'] + params['b_encattn'][0]
        attn2 = h @ params['w_decattn'] + params['b_decattn'][0]
        score = jax.nn.relu(attn1 + attn2[:, None, :])
        logits = (score * params['v_w']).sum(-1) + params['v_b'][0, 0]
        alpha = jax.nn.softmax(logits, axis=1)
        ctx = (alpha[:, :, None] * enc_out).sum(axis=1)
        gate = jax.nn.sigmoid(h @ params['w_gate'] + params['b_gate'][0])
        ctx = ctx * gate
        gates = (emb[:, t] @ params['w_ih_emb'] + ctx @ params['w_ih_ctx']
                 + h @ params['w_hh'] + params['b_lstm'][0])
        i = jax.nn.sigmoid(gates[:, :H]); f = jax.nn.sigmoid(gates[:, H:2 * H])
        g = jnp.tanh(gates[:, 2 * H:3 * H]); o = jax.nn.sigmoid(gates[:, 3 * H:])
        c = f * c + i * g
        h = o * jnp.tanh(c)
        outs.append(h @ params['w_fc'] + params['b_fc'][0])
    return jnp.stack(outs, axis=1), (h, c)


if __name__ == "__main__":
    ENC, EMB, VOCAB, ATTN = 128, 64, 256, 64
    B, HW, T = 8, 16, 6

    key = jax.random.PRNGKey(0)
    k_params, k_enc, k_cap = jax.random.split(key, 3)
    params = init_params(k_params, ENC, EMB, VOCAB, ATTN)

    enc_out = jax.random.normal(k_enc, (B, HW, ENC), jnp.float32)
    captions = jax.random.randint(k_cap, (B, T), 0, VOCAB, jnp.int32)
    caplens = jnp.full((B,), T, jnp.int32)   # unused by forward (matches PyTorch)

    (outputs, (h, c)) = decoder_forward(params, enc_out, captions, caplens)
    jax.block_until_ready((outputs, h, c))

    out_ref, (h_ref, c_ref) = decoder_ref(params, enc_out, captions)
    assert outputs.shape == (B, T, VOCAB)
    # Kernel runs its matmuls in bf16 (f32 accumulation); compare against the f32 reference
    # with a tolerance appropriate for bf16 drift through the 6-step recurrence.
    assert bool(jnp.allclose(outputs, out_ref, atol=5e-2, rtol=5e-2))
    assert bool(jnp.allclose(h, h_ref, atol=5e-2, rtol=5e-2))
    assert bool(jnp.allclose(c, c_ref, atol=5e-2, rtol=5e-2))

    print("KERNEL_OK")
</pallas_src>

<mosaic_0001>
module attributes {stable_mosaic.version = 11 : i64} {
  func.func @decoder_kernel(%arg0: i32, %arg1: memref<8x16x128xbf16, #tpu.memory_space<vmem>>, %arg2: memref<1x8x64xbf16, #tpu.memory_space<vmem>>, %arg3: memref<128x64xbf16, #tpu.memory_space<vmem>>, %arg4: memref<1x64xf32, #tpu.memory_space<vmem>>, %arg5: memref<128x192xbf16, #tpu.memory_space<vmem>>, %arg6: memref<1x192xf32, #tpu.memory_space<vmem>>, %arg7: memref<1x64xf32, #tpu.memory_space<vmem>>, %arg8: memref<1x1xf32, #tpu.memory_space<vmem>>, %arg9: memref<128x256xbf16, #tpu.memory_space<vmem>>, %arg10: memref<1x256xf32, #tpu.memory_space<vmem>>, %arg11: memref<320x512xbf16, #tpu.memory_space<vmem>>, %arg12: memref<1x512xf32, #tpu.memory_space<vmem>>, %arg13: memref<128x256xbf16, #tpu.memory_space<vmem>>, %arg14: memref<1x256xf32, #tpu.memory_space<vmem>>, %arg15: memref<8x6x256xf32, #tpu.memory_space<vmem>>, %arg16: memref<8x128xf32, #tpu.memory_space<vmem>>, %arg17: memref<8x128xf32, #tpu.memory_space<vmem>>, %arg18: memref<8x16x64xf32, #tpu.memory_space<vmem>>) attributes {dimension_semantics = [#tpu.dimension_semantics<arbitrary>], iteration_bounds = array<i64: 6>, scalar_prefetch = 0 : i64, scratch_operands = 1 : i64, tpu.core_type = #tpu.core_type<tc>, window_params = [{pipeline_mode = #tpu.pipeline_mode<synchronous>, transform_indices = @transform_0, window_bounds = array<i64: 8, 16, 128>}, {transform_indices = @transform_1, window_bounds = array<i64: 1, 8, 64>}, {pipeline_mode = #tpu.pipeline_mode<synchronous>, transform_indices = @transform_2, window_bounds = array<i64: 128, 64>}, {pipeline_mode = #tpu.pipeline_mode<synchronous>, transform_indices = @transform_3, window_bounds = array<i64: 1, 64>}, {pipeline_mode = #tpu.pipeline_mode<synchronous>, transform_indices = @transform_4, window_bounds = array<i64: 128, 192>}, {pipeline_mode = #tpu.pipeline_mode<synchronous>, transform_indices = @transform_5, window_bounds = array<i64: 1, 192>}, {pipeline_mode = #tpu.pipeline_mode<synchronous>, transform_indices = @transform_6, window_bounds = array<i64: 1, 64>}, {pipeline_mode = #tpu.pipeline_mode<synchronous>, transform_indices = @transform_7, window_bounds = array<i64: 1, 1>}, {pipeline_mode = #tpu.pipeline_mode<synchronous>, transform_indices = @transform_8, window_bounds = array<i64: 128, 256>}, {pipeline_mode = #tpu.pipeline_mode<synchronous>, transform_indices = @transform_9, window_bounds = array<i64: 1, 256>}, {pipeline_mode = #tpu.pipeline_mode<synchronous>, transform_indices = @transform_10, window_bounds = array<i64: 320, 512>}, {pipeline_mode = #tpu.pipeline_mode<synchronous>, transform_indices = @transform_11, window_bounds = array<i64: 1, 512>}, {pipeline_mode = #tpu.pipeline_mode<synchronous>, transform_indices = @transform_12, window_bounds = array<i64: 128, 256>}, {pipeline_mode = #tpu.pipeline_mode<synchronous>, transform_indices = @transform_13, window_bounds = array<i64: 1, 256>}, {pipeline_mode = #tpu.pipeline_mode<synchronous>, transform_indices = @transform_14, window_bounds = array<i64: 8, 6, 256>}, {pipeline_mode = #tpu.pipeline_mode<synchronous>, transform_indices = @transform_15, window_bounds = array<i64: 8, 128>}, {pipeline_mode = #tpu.pipeline_mode<synchronous>, transform_indices = @transform_16, window_bounds = array<i64: 8, 128>}]} {
    %c0 = arith.constant 0 : index
    %c0_0 = arith.constant 0 : index
    %c0_1 = arith.constant 0 : index
    %0 = vector.load %arg1[%c0, %c0_0, %c0_1] : memref<8x16x128xbf16, #tpu.memory_space<vmem>>, vector<8x16x128xbf16>
    %c0_i32 = arith.constant 0 : i32
    %1 = arith.cmpi eq, %arg0, %c0_i32 : i32
    %2 = arith.extui %1 : i1 to i32
    %c0_i32_2 = arith.constant 0 : i32
    %3 = arith.cmpi ne, %2, %c0_i32_2 : i32
    scf.if %3 {
      %93 = arith.extf %0 : vector<8x16x128xbf16> to vector<8x16x128xf32>
      %cst_46 = arith.constant dense<0.000000e+00> : vector<8x128xf32>
      %94 = vector.multi_reduction <add>, %93, %cst_46 [1] : vector<8x16x128xf32> to vector<8x128xf32>
      %cst_47 = arith.constant 1.600000e+01 : f32
      %95 = vector.broadcast %cst_47 : f32 to vector<8x128xf32>
      %96 = arith.divf %94, %95 : vector<8x128xf32>
      %97 = arith.truncf %96 : vector<8x128xf32> to vector<8x128xbf16>
      %c0_48 = arith.constant 0 : index
      %c0_49 = arith.constant 0 : index
      %98 = vector.load %arg9[%c0_48, %c0_49] : memref<128x256xbf16, #tpu.memory_space<vmem>>, vector<128x256xbf16>
      %cst_50 = arith.constant dense<0.000000e+00> : vector<8x256xf32>
      %99 = tpu.matmul %97, %98, %cst_50 {dimension_numbers = #tpu.dot_dimension_numbers<[1], [0], [0], [1], [0, 0, 1, 1], [], []>} : vector<8x128xbf16>, vector<128x256xbf16>, vector<8x256xf32> -> vector<8x256xf32>
      %c0_51 = arith.constant 0 : index
      %c0_52 = arith.constant 0 : index
      %100 = vector.load %arg10[%c0_51, %c0_52] : memref<1x256xf32, #tpu.memory_space<vmem>>, vector<1x256xf32>
      %101 = vector.broadcast %100 : vector<1x256xf32> to vector<8x256xf32>
      %102 = arith.addf %99, %101 : vector<8x256xf32>
      %103 = vector.extract_strided_slice %102 {offsets = [0, 0], sizes = [8, 128], strides = [1, 1]} : vector<8x256xf32> to vector<8x128xf32>
      %c0_53 = arith.constant 0 : index
      %c0_54 = arith.constant 0 : index
      %104 = vector.load %arg16[%c0_53, %c0_54] : memref<8x128xf32, #tpu.memory_space<vmem>>, vector<8x128xf32>
      tpu.vector_store %arg16[%c0_53, %c0_54], %103 {strides = array<i32>} : memref<8x128xf32, #tpu.memory_space<vmem>>, vector<8x128xf32>,
      %105 = vector.extract_strided_slice %102 {offsets = [0, 128], sizes = [8, 128], strides = [1, 1]} : vector<8x256xf32> to vector<8x128xf32>
      %c0_55 = arith.constant 0 : index
      %c0_56 = arith.constant 0 : index
      %106 = vector.load %arg17[%c0_55, %c0_56] : memref<8x128xf32, #tpu.memory_space<vmem>>, vector<8x128xf32>
      tpu.vector_store %arg17[%c0_55, %c0_56], %105 {strides = array<i32>} : memref<8x128xf32, #tpu.memory_space<vmem>>, vector<8x128xf32>,
      %107 = vector.shape_cast %0 : vector<8x16x128xbf16> to vector<128x128xbf16>
      %c0_57 = arith.constant 0 : index
      %c0_58 = arith.constant 0 : index
      %108 = vector.load %arg3[%c0_57, %c0_58] : memref<128x64xbf16, #tpu.memory_space<vmem>>, vector<128x64xbf16>
      %cst_59 = arith.constant dense<0.000000e+00> : vector<128x64xf32>
      %109 = tpu.matmul %107, %108, %cst_59 {dimension_numbers = #tpu.dot_dimension_numbers<[1], [0], [0], [1], [0, 0, 1, 1], [], []>} : vector<128x128xbf16>, vector<128x64xbf16>, vector<128x64xf32> -> vector<128x64xf32>
      %c0_60 = arith.constant 0 : index
      %c0_61 = arith.constant 0 : index
      %110 = vector.load %arg4[%c0_60, %c0_61] : memref<1x64xf32, #tpu.memory_space<vmem>>, vector<1x64xf32>
      %111 = vector.broadcast %110 : vector<1x64xf32> to vector<128x64xf32>
      %112 = arith.addf %109, %111 : vector<128x64xf32>
      %113 = vector.shape_cast %112 : vector<128x64xf32> to vector<8x16x64xf32>
      %c0_62 = arith.constant 0 : index
      %c0_63 = arith.constant 0 : index
      %c0_64 = arith.constant 0 : index
      %114 = vector.load %arg18[%c0_62, %c0_63, %c0_64] : memref<8x16x64xf32, #tpu.memory_space<vmem>>, vector<8x16x64xf32>
      tpu.vector_store %arg18[%c0_62, %c0_63, %c0_64], %113 {strides = array<i32>} : memref<8x16x64xf32, #tpu.memory_space<vmem>>, vector<8x16x64xf32>,
    } else {
    }
    %c0_3 = arith.constant 0 : index
    %c0_4 = arith.constant 0 : index
    %4 = vector.load %arg16[%c0_3, %c0_4] : memref<8x128xf32, #tpu.memory_space<vmem>>, vector<8x128xf32>
    %c0_5 = arith.constant 0 : index
    %c0_6 = arith.constant 0 : index
    %5 = vector.load %arg17[%c0_5, %c0_6] : memref<8x128xf32, #tpu.memory_space<vmem>>, vector<8x128xf32>
    %6 = arith.truncf %4 : vector<8x128xf32> to vector<8x128xbf16>
    %c0_7 = arith.constant 0 : index
    %c0_8 = arith.constant 0 : index
    %7 = vector.load %arg5[%c0_7, %c0_8] : memref<128x192xbf16, #tpu.memory_space<vmem>>, vector<128x192xbf16>
    %cst = arith.constant dense<0.000000e+00> : vector<8x192xf32>
    %8 = tpu.matmul %6, %7, %cst {dimension_numbers = #tpu.dot_dimension_numbers<[1], [0], [0], [1], [0, 0, 1, 1], [], []>} : vector<8x128xbf16>, vector<128x192xbf16>, vector<8x192xf32> -> vector<8x192xf32>
    %c0_9 = arith.constant 0 : index
    %c0_10 = arith.constant 0 : index
    %9 = vector.load %arg6[%c0_9, %c0_10] : memref<1x192xf32, #tpu.memory_space<vmem>>, vector<1x192xf32>
    %10 = vector.broadcast %9 : vector<1x192xf32> to vector<8x192xf32>
    %11 = arith.addf %8, %10 : vector<8x192xf32>
    %12 = vector.extract_strided_slice %11 {offsets = [0, 0], sizes = [8, 64], strides = [1, 1]} : vector<8x192xf32> to vector<8x64xf32>
    %13 = vector.extract_strided_slice %11 {offsets = [0, 64], sizes = [8, 128], strides = [1, 1]} : vector<8x192xf32> to vector<8x128xf32>
    %14 = arith.negf %13 : vector<8x128xf32>
    %15 = math.exp %14 : vector<8x128xf32>
    %cst_11 = arith.constant 1.000000e+00 : f32
    %16 = vector.broadcast %cst_11 : f32 to vector<8x128xf32>
    %17 = arith.addf %16, %15 : vector<8x128xf32>
    %18 = arith.divf %16, %17 : vector<8x128xf32>
    %c0_12 = arith.constant 0 : index
    %c0_13 = arith.constant 0 : index
    %c0_14 = arith.constant 0 : index
    %19 = vector.load %arg18[%c0_12, %c0_13, %c0_14] : memref<8x16x64xf32, #tpu.memory_space<vmem>>, vector<8x16x64xf32>
    %20 = vector.shape_cast %12 : vector<8x64xf32> to vector<8x1x64xf32>
    %21 = vector.broadcast %20 : vector<8x1x64xf32> to vector<8x16x64xf32>
    %22 = arith.addf %19, %21 : vector<8x16x64xf32>
    %cst_15 = arith.constant 0.000000e+00 : f32
    %23 = vector.broadcast %cst_15 : f32 to vector<8x16x64xf32>
    %24 = arith.maximumf %22, %23 : vector<8x16x64xf32>
    %c0_16 = arith.constant 0 : index
    %c0_17 = arith.constant 0 : index
    %25 = vector.load %arg7[%c0_16, %c0_17] : memref<1x64xf32, #tpu.memory_space<vmem>>, vector<1x64xf32>
    %26 = vector.shape_cast %25 : vector<1x64xf32> to vector<1x1x64xf32>
    %27 = vector.broadcast %26 : vector<1x1x64xf32> to vector<8x16x64xf32>
    %28 = arith.mulf %24, %27 : vector<8x16x64xf32>
    %cst_18 = arith.constant dense<0.000000e+00> : vector<8x16xf32>
    %29 = vector.multi_reduction <add>, %28, %cst_18 [2] : vector<8x16x64xf32> to vector<8x16xf32>
    %c0_19 = arith.constant 0 : index
    %c0_20 = arith.constant 0 : index
    %30 = vector.load %arg8[%c0_19, %c0_20] : memref<1x1xf32, #tpu.memory_space<vmem>>, vector<1x1xf32>
    %31 = vector.broadcast %30 : vector<1x1xf32> to vector<8x16xf32>
    %32 = arith.addf %29, %31 : vector<8x16xf32>
    %cst_21 = arith.constant dense<0xFF800000> : vector<8xf32>
    %33 = vector.multi_reduction <maximumf>, %32, %cst_21 [1] : vector<8x16xf32> to vector<8xf32>
    %34 = vector.shape_cast %33 : vector<8xf32> to vector<8x1xf32>
    %35 = vector.broadcast %34 : vector<8x1xf32> to vector<8x16xf32>
    %36 = arith.subf %32, %35 : vector<8x16xf32>
    %37 = math.exp %36 : vector<8x16xf32>
    %cst_22 = arith.constant dense<0.000000e+00> : vector<8xf32>
    %38 = vector.multi_reduction <add>, %37, %cst_22 [1] : vector<8x16xf32> to vector<8xf32>
    %39 = vector.shape_cast %38 : vector<8xf32> to vector<8x1xf32>
    %40 = tpu.reciprocal %39 {approx = true} : vector<8x1xf32> -> vector<8x1xf32>
    %41 = vector.broadcast %40 : vector<8x1xf32> to vector<8x16xf32>
    %42 = arith.mulf %37, %41 : vector<8x16xf32>
    %43 = vector.shape_cast %42 : vector<8x16xf32> to vector<8x1x16xf32>
    %44 = arith.truncf %43 : vector<8x1x16xf32> to vector<8x1x16xbf16>
    "tpu.trace_start"() <{level = 10 : i32, message = "bqk,bke->bqe"}> : () -> ()
    %cst_23 = arith.constant dense<0.000000e+00> : vector<8x1x128xf32>
    %45 = tpu.matmul %44, %0, %cst_23 {dimension_numbers = #tpu.dot_dimension_numbers<[2], [1], [1], [2], [0, 0, 0, 1, 1, 2], [0], [0]>} : vector<8x1x16xbf16>, vector<8x16x128xbf16>, vector<8x1x128xf32> -> vector<8x1x128xf32>
    "tpu.trace_stop"() : () -> ()
    %46 = vector.shape_cast %45 : vector<8x1x128xf32> to vector<8x128xf32>
    %47 = arith.mulf %46, %18 : vector<8x128xf32>
    %c0_24 = arith.constant 0 : index
    %c0_25 = arith.constant 0 : index
    %c0_26 = arith.constant 0 : index
    %48 = vector.load %arg2[%c0_24, %c0_25, %c0_26] : memref<1x8x64xbf16, #tpu.memory_space<vmem>>, vector<1x8x64xbf16>
    %49 = vector.shape_cast %48 : vector<1x8x64xbf16> to vector<8x64xbf16>
    %50 = arith.truncf %47 : vector<8x128xf32> to vector<8x128xbf16>
    %51 = tpu.concatenate %49, %50, %6 in 1 : vector<8x64xbf16>, vector<8x128xbf16>, vector<8x128xbf16> -> vector<8x320xbf16>
    %c0_27 = arith.constant 0 : index
    %c0_28 = arith.constant 0 : index
    %52 = vector.load %arg11[%c0_27, %c0_28] : memref<320x512xbf16, #tpu.memory_space<vmem>>, vector<320x512xbf16>
    %cst_29 = arith.constant dense<0.000000e+00> : vector<8x512xf32>
    %53 = tpu.matmul %51, %52, %cst_29 {dimension_numbers = #tpu.dot_dimension_numbers<[1], [0], [0], [1], [0, 0, 1, 1], [], []>} : vector<8x320xbf16>, vector<320x512xbf16>, vector<8x512xf32> -> vector<8x512xf32>
    %c0_30 = arith.constant 0 : index
    %c0_31 = arith.constant 0 : index
    %54 = vector.load %arg12[%c0_30, %c0_31] : memref<1x512xf32, #tpu.memory_space<vmem>>, vector<1x512xf32>
    %55 = vector.broadcast %54 : vector<1x512xf32> to vector<8x512xf32>
    %56 = arith.addf %53, %55 : vector<8x512xf32>
    %57 = vector.extract_strided_slice %56 {offsets = [0, 0], sizes = [8, 128], strides = [1, 1]} : vector<8x512xf32> to vector<8x128xf32>
    %58 = arith.negf %57 : vector<8x128xf32>
    %59 = math.exp %58 : vector<8x128xf32>
    %cst_32 = arith.constant 1.000000e+00 : f32
    %60 = vector.broadcast %cst_32 : f32 to vector<8x128xf32>
    %61 = arith.addf %60, %59 : vector<8x128xf32>
    %62 = arith.divf %60, %61 : vector<8x128xf32>
    %63 = vector.extract_strided_slice %56 {offsets = [0, 128], sizes = [8, 128], strides = [1, 1]} : vector<8x512xf32> to vector<8x128xf32>
    %64 = arith.negf %63 : vector<8x128xf32>
    %65 = math.exp %64 : vector<8x128xf32>
    %cst_33 = arith.constant 1.000000e+00 : f32
    %66 = vector.broadcast %cst_33 : f32 to vector<8x128xf32>
    %67 = arith.addf %66, %65 : vector<8x128xf32>
    %68 = arith.divf %66, %67 : vector<8x128xf32>
    %69 = vector.extract_strided_slice %56 {offsets = [0, 256], sizes = [8, 128], strides = [1, 1]} : vector<8x512xf32> to vector<8x128xf32>
    %70 = math.tanh %69 : vector<8x128xf32>
    %71 = vector.extract_strided_slice %56 {offsets = [0, 384], sizes = [8, 128], strides = [1, 1]} : vector<8x512xf32> to vector<8x128xf32>
    %72 = arith.negf %71 : vector<8x128xf32>
    %73 = math.exp %72 : vector<8x128xf32>
    %cst_34 = arith.constant 1.000000e+00 : f32
    %74 = vector.broadcast %cst_34 : f32 to vector<8x128xf32>
    %75 = arith.addf %74, %73 : vector<8x128xf32>
    %76 = arith.divf %74, %75 : vector<8x128xf32>
    %77 = arith.mulf %68, %5 : vector<8x128xf32>
    %78 = arith.mulf %62, %70 : vector<8x128xf32>
    %79 = arith.addf %77, %78 : vector<8x128xf32>
    %80 = math.tanh %79 : vector<8x128xf32>
    %81 = arith.mulf %76, %80 : vector<8x128xf32>
    %c0_35 = arith.constant 0 : index
    %c0_36 = arith.constant 0 : index
    %82 = vector.load %arg16[%c0_35, %c0_36] : memref<8x128xf32, #tpu.memory_space<vmem>>, vector<8x128xf32>
    tpu.vector_store %arg16[%c0_35, %c0_36], %81 {strides = array<i32>} : memref<8x128xf32, #tpu.memory_space<vmem>>, vector<8x128xf32>,
    %c0_37 = arith.constant 0 : index
    %c0_38 = arith.constant 0 : index
    %83 = vector.load %arg17[%c0_37, %c0_38] : memref<8x128xf32, #tpu.memory_space<vmem>>, vector<8x128xf32>
    tpu.vector_store %arg17[%c0_37, %c0_38], %79 {strides = array<i32>} : memref<8x128xf32, #tpu.memory_space<vmem>>, vector<8x128xf32>,
    %84 = arith.truncf %81 : vector<8x128xf32> to vector<8x128xbf16>
    %c0_39 = arith.constant 0 : index
    %c0_40 = arith.constant 0 : index
    %85 = vector.load %arg13[%c0_39, %c0_40] : memref<128x256xbf16, #tpu.memory_space<vmem>>, vector<128x256xbf16>
    %cst_41 = arith.constant dense<0.000000e+00> : vector<8x256xf32>
    %86 = tpu.matmul %84, %85, %cst_41 {dimension_numbers = #tpu.dot_dimension_numbers<[1], [0], [0], [1], [0, 0, 1, 1], [], []>} : vector<8x128xbf16>, vector<128x256xbf16>, vector<8x256xf32> -> vector<8x256xf32>
    %c0_42 = arith.constant 0 : index
    %c0_43 = arith.constant 0 : index
    %87 = vector.load %arg14[%c0_42, %c0_43] : memref<1x256xf32, #tpu.memory_space<vmem>>, vector<1x256xf32>
    %88 = vector.broadcast %87 : vector<1x256xf32> to vector<8x256xf32>
    %89 = arith.addf %86, %88 : vector<8x256xf32>
    %90 = vector.shape_cast %89 : vector<8x256xf32> to vector<8x1x256xf32>
    %c0_44 = arith.constant 0 : index
    %91 = arith.index_cast %arg0 : i32 to index
    %c0_45 = arith.constant 0 : index
    %92 = vector.load %arg15[%c0_44, %91, %c0_45] : memref<8x6x256xf32, #tpu.memory_space<vmem>>, vector<8x1x256xf32>
    tpu.vector_store %arg15[%c0_44, %91, %c0_45], %90 {strides = array<i32>} : memref<8x6x256xf32, #tpu.memory_space<vmem>>, vector<8x1x256xf32>,
    return
  }
  func.func @transform_0(%arg0: i32) -> (i32, i32, i32) {
    %c0_i32 = arith.constant 0 : i32
    %c0_i32_0 = arith.constant 0 : i32
    %c0_i32_1 = arith.constant 0 : i32
    %c0_i32_2 = arith.constant 0 : i32
    return %c0_i32, %c0_i32_0, %c0_i32_1 : i32, i32, i32
  }
  func.func @transform_1(%arg0: i32) -> (i32, i32, i32) {
    %c0_i32 = arith.constant 0 : i32
    %c0_i32_0 = arith.constant 0 : i32
    %c0_i32_1 = arith.constant 0 : i32
    return %arg0, %c0_i32, %c0_i32_0 : i32, i32, i32
  }
  func.func @transform_2(%arg0: i32) -> (i32, i32) {
    %c0_i32 = arith.constant 0 : i32
    %c0_i32_0 = arith.constant 0 : i32
    %c0_i32_1 = arith.constant 0 : i32
    return %c0_i32, %c0_i32_0 : i32, i32
  }
  func.func @transform_3(%arg0: i32) -> (i32, i32) {
    %c0_i32 = arith.constant 0 : i32
    %c0_i32_0 = arith.constant 0 : i32
    %c0_i32_1 = arith.constant 0 : i32
    return %c0_i32, %c0_i32_0 : i32, i32
  }
  func.func @transform_4(%arg0: i32) -> (i32, i32) {
    %c0_i32 = arith.constant 0 : i32
    %c0_i32_0 = arith.constant 0 : i32
    %c0_i32_1 = arith.constant 0 : i32
    return %c0_i32, %c0_i32_0 : i32, i32
  }
  func.func @transform_5(%arg0: i32) -> (i32, i32) {
    %c0_i32 = arith.constant 0 : i32
    %c0_i32_0 = arith.constant 0 : i32
    %c0_i32_1 = arith.constant 0 : i32
    return %c0_i32, %c0_i32_0 : i32, i32
  }
  func.func @transform_6(%arg0: i32) -> (i32, i32) {
    %c0_i32 = arith.constant 0 : i32
    %c0_i32_0 = arith.constant 0 : i32
    %c0_i32_1 = arith.constant 0 : i32
    return %c0_i32, %c0_i32_0 : i32, i32
  }
  func.func @transform_7(%arg0: i32) -> (i32, i32) {
    %c0_i32 = arith.constant 0 : i32
    %c0_i32_0 = arith.constant 0 : i32
    %c0_i32_1 = arith.constant 0 : i32
    return %c0_i32, %c0_i32_0 : i32, i32
  }
  func.func @transform_8(%arg0: i32) -> (i32, i32) {
    %c0_i32 = arith.constant 0 : i32
    %c0_i32_0 = arith.constant 0 : i32
    %c0_i32_1 = arith.constant 0 : i32
    return %c0_i32, %c0_i32_0 : i32, i32
  }
  func.func @transform_9(%arg0: i32) -> (i32, i32) {
    %c0_i32 = arith.constant 0 : i32
    %c0_i32_0 = arith.constant 0 : i32
    %c0_i32_1 = arith.constant 0 : i32
    return %c0_i32, %c0_i32_0 : i32, i32
  }
  func.func @transform_10(%arg0: i32) -> (i32, i32) {
    %c0_i32 = arith.constant 0 : i32
    %c0_i32_0 = arith.constant 0 : i32
    %c0_i32_1 = arith.constant 0 : i32
    return %c0_i32, %c0_i32_0 : i32, i32
  }
  func.func @transform_11(%arg0: i32) -> (i32, i32) {
    %c0_i32 = arith.constant 0 : i32
    %c0_i32_0 = arith.constant 0 : i32
    %c0_i32_1 = arith.constant 0 : i32
    return %c0_i32, %c0_i32_0 : i32, i32
  }
  func.func @transform_12(%arg0: i32) -> (i32, i32) {
    %c0_i32 = arith.constant 0 : i32
    %c0_i32_0 = arith.constant 0 : i32
    %c0_i32_1 = arith.constant 0 : i32
    return %c0_i32, %c0_i32_0 : i32, i32
  }
  func.func @transform_13(%arg0: i32) -> (i32, i32) {
    %c0_i32 = arith.constant 0 : i32
    %c0_i32_0 = arith.constant 0 : i32
    %c0_i32_1 = arith.constant 0 : i32
    return %c0_i32, %c0_i32_0 : i32, i32
  }
  func.func @transform_14(%arg0: i32) -> (i32, i32, i32) {
    %c0_i32 = arith.constant 0 : i32
    %c0_i32_0 = arith.constant 0 : i32
    %c0_i32_1 = arith.constant 0 : i32
    %c0_i32_2 = arith.constant 0 : i32
    return %c0_i32, %c0_i32_0, %c0_i32_1 : i32, i32, i32
  }
  func.func @transform_15(%arg0: i32) -> (i32, i32) {
    %c0_i32 = arith.constant 0 : i32
    %c0_i32_0 = arith.constant 0 : i32
    %c0_i32_1 = arith.constant 0 : i32
    return %c0_i32, %c0_i32_0 : i32, i32
  }
  func.func @transform_16(%arg0: i32) -> (i32, i32) {
    %c0_i32 = arith.constant 0 : i32
    %c0_i32_0 = arith.constant 0 : i32
    %c0_i32_1 = arith.constant 0 : i32
    return %c0_i32, %c0_i32_0 : i32, i32
  }
}

</mosaic_0001>

<llo_original>
// kernel: decoder_forward.1
$region0: #{decoder_forward.1}
  #allocation0 [shape = 'u32[]', space=smem, size = 0x4, offset = 0x4, fixed_abs, tag = 'smem constant byte address 0x4 - core index']
  #allocation1 [shape = 'u32[144,128]{1,0:T(1,128)}', space=vmem, size = 0x12000, scoped, tag = 'internal scratch']
  #allocation2 [shape = 'f32[8,16,64]{2,1,0:T(8,128)}', space=vmem, size = 0x10000, scoped, tag = 'scratch operand']
  #allocation3 [shape = 'f32[1,1]{1,0:T(1,128)S(1)}', space=vmem, size = 0x200, scoped, tag = 'scoped memory for decoder_forward.1']
  %s0 = inlined_call_operand.vmem [shape: bf16[8,16,128], index: 0, kind: input, shape index: {}]
  %s1 = inlined_call_operand.vmem [shape: bf16[6,8,64], index: 1, kind: input, shape index: {}]
  %s2 = inlined_call_operand.vmem [shape: bf16[128,64], index: 2, kind: input, shape index: {}]
  %s3 = inlined_call_operand.vmem [shape: f32[1,64], index: 3, kind: input, shape index: {}]
  %s4 = inlined_call_operand.vmem [shape: bf16[128,192], index: 4, kind: input, shape index: {}]
  %s5 = inlined_call_operand.vmem [shape: f32[1,192], index: 5, kind: input, shape index: {}]
  %s6 = inlined_call_operand.vmem [shape: f32[1,64], index: 6, kind: input, shape index: {}]
  %s7 = inlined_call_operand.<no memory space> [shape: f32[1,1], index: 7, kind: input, shape index: {}]
  %s8 = inlined_call_operand.vmem [shape: bf16[128,256], index: 8, kind: input, shape index: {}]
  %s9 = inlined_call_operand.vmem [shape: f32[1,256], index: 9, kind: input, shape index: {}]
  %s10 = inlined_call_operand.vmem [shape: bf16[320,512], index: 10, kind: input, shape index: {}]
  %s11 = inlined_call_operand.vmem [shape: f32[1,512], index: 11, kind: input, shape index: {}]
  %s12 = inlined_call_operand.vmem [shape: bf16[128,256], index: 12, kind: input, shape index: {}]
  %s13 = inlined_call_operand.vmem [shape: f32[1,256], index: 13, kind: input, shape index: {}]
  %s14 = inlined_call_operand.vmem [shape: f32[8,6,256], index: 14, kind: output, shape index: {0}]
  %s15 = inlined_call_operand.hbm [shape: f32[8,128], index: 15, kind: output, shape index: {1}]
  %s16 = inlined_call_operand.hbm [shape: f32[8,128], index: 16, kind: output, shape index: {2}]
  %17 = xla_tuple %s14, %s15, %s16
  %s18 = sld [smem:[#allocation0]]
  $region109: #{decoder_forward.1} parent=0
    _
  %s20 = ssub.s32 1, %s18
  %s21 = scalar_select 0, %s20, %s18
  %v22 = vstv %s7
  %23 = vst [vmem:[#allocation3] sm:$0x1] %v22
  $region1: #{decoder_forward.1} parent=0
    #allocation4 [shape = 'u8[4096]{0}', space=vmem, size = 0x1000, scoped, tag = 'output window, operand 1, single buffered']
    #allocation5 [shape = 's32[2]{0}', space=sflag, size = 0x8, scoped, tag = 'scoped memory for decoder_forward.1']
    #allocation6 [shape = 'u8[4096]{0}', space=vmem, size = 0x1000, scoped, tag = 'output window, operand 2, single buffered']
    #allocation7 [shape = 's32[1]{0}', space=sflag, size = 0x4, scoped, tag = 'scoped memory for decoder_forward.1']
    %24 = vsyncpa [#allocation5], 0
    %25 = vsyncpa [#allocation7], 0
    loop: start=0, step=1, limit=8
    $region2: #{decoder_forward.1} parent=1 // loop_pre_header
      _
    $region3: #{decoder_forward.1} parent=1 // loop_header
      %s27 = sphi 0, %s31
      %p28 = scmp.ge.s32.totalorder %s27, 8
      %s35 = sphi 0, %s35
      %s37 = sphi 0, %s35
      %s38 = sphi 0, %s37
      %s52 = sphi 0, %s38
      %s58 = sphi 0, %s60
      %s61 = sphi 0, %s58
      %s62 = sphi 0, %s61
      %s78 = sphi 0, %s62
      %s82 = sphi 0, %s82
      %s84 = sphi 0, %s82
      %s85 = sphi 0, %s84
      %s99 = sphi 0, %s85
      %s103 = sphi 0, %s103
      %s105 = sphi 0, %s103
      %s106 = sphi 0, %s105
      %s120 = sphi 0, %s106
      %s124 = sphi 0, %s124
      %s126 = sphi 0, %s124
      %s127 = sphi 0, %s126
      %s141 = sphi 0, %s127
      %s145 = sphi 0, %s145
      %s147 = sphi 0, %s145
      %s148 = sphi 0, %s147
      %s162 = sphi 0, %s148
      %s166 = sphi 0, %s166
      %s168 = sphi 0, %s166
      %s169 = sphi 0, %s168
      %s183 = sphi 0, %s169
      %s187 = sphi 0, %s187
      %s189 = sphi 0, %s187
      %s190 = sphi 0, %s189
      %s204 = sphi 0, %s190
      %s208 = sphi 0, %s208
      %s210 = sphi 0, %s208
      %s211 = sphi 0, %s210
      %s225 = sphi 0, %s211
      %s229 = sphi 0, %s229
      %s231 = sphi 0, %s229
      %s232 = sphi 0, %s231
      %s246 = sphi 0, %s232
      %s250 = sphi 0, %s250
      %s252 = sphi 0, %s250
      %s253 = sphi 0, %s252
      %s267 = sphi 0, %s253
      %s271 = sphi 0, %s271
      %s273 = sphi 0, %s271
      %s274 = sphi 0, %s273
      %s288 = sphi 0, %s274
      %s292 = sphi 0, %s292
      %s294 = sphi 0, %s292
      %s295 = sphi 0, %s294
      %s309 = sphi 0, %s295
      %s313 = sphi 0, %s313
      %s315 = sphi 0, %s313
      %s316 = sphi 0, %s315
      %s330 = sphi 0, %s316
      %s334 = sphi 0, %s334
      %s336 = sphi 0, %s334
      %s337 = sphi 0, %s336
      %s351 = sphi 0, %s337
      %s355 = sphi 0, %s355
      %s357 = sphi 0, %s355
      %s358 = sphi 0, %s357
      %s372 = sphi 0, %s358
      %s376 = sphi 0, %s376
      %s378 = sphi 0, %s376
      %s379 = sphi 0, %s378
      %s393 = sphi 0, %s379
    $region4: #{decoder_forward.1} parent=1 // loop_header_branch
      %30 = sbr.rel (%p28) target = $region8
    $region5: #{decoder_forward.1} parent=1 // loop_body
      %s32 = ssub.s32 %s27, 1
      %s33 = ssub.s32 %s27, 2
      %s34 = sadd.s32 %s27, 1
      %s36 = sadd.s32 %s35, 1
      %p39 = scmp.eq.s32.totalorder %s27, 5
      %p40 = scmp.ne.s32.totalorder %s35, %s37
      %p41 = scmp.eq.s32.totalorder %s27, 0
      %p42 = por %p40, %p41
      %p43 = scmp.ne.s32.totalorder %s35, %s37
      %p44 = scmp.eq.s32.totalorder %s32, 5
      %p45 = por %p43, %p44
      %p46 = scmp.ne.s32.totalorder %s37, %s38
      %p47 = scmp.eq.s32.totalorder %s32, 0
      %p48 = por %p46, %p47
      %p49 = scmp.ne.s32.totalorder %s37, %s38
      %p50 = scmp.eq.s32.totalorder %s33, 5
      %p51 = por %p49, %p50
      %p53 = scmp.ne.s32.totalorder %s38, %s52
      %p54 = scmp.eq.s32.totalorder %s33, 0
      %p55 = por %p53, %p54
      %s56 = ssub.s32 %s27, %s34
      %p57 = scmp.eq.s32.totalorder %s56, 0
      %s59 = sadd.s32 %s58, 1
      %s60 = scalar_select %p57, %s58, %s59
      %p63 = pneg %p57
      %p64 = scmp.eq.s32.totalorder %s27, 5
      %p65 = por %p63, %p64
      %p66 = scmp.ne.s32.totalorder %s58, %s61
      %p67 = scmp.eq.s32.totalorder %s27, 0
      %p68 = por %p66, %p67
      %p69 = scmp.ne.s32.totalorder %s58, %s61
      %p70 = scmp.eq.s32.totalorder %s32, 5
      %p71 = por %p69, %p70
      %p72 = scmp.ne.s32.totalorder %s61, %s62
      %p73 = scmp.eq.s32.totalorder %s32, 0
      %p74 = por %p72, %p73
      %p75 = scmp.ne.s32.totalorder %s61, %s62
      %p76 = scmp.eq.s32.totalorder %s33, 5
      %p77 = por %p75, %p76
      %p79 = scmp.ne.s32.totalorder %s62, %s78
      %p80 = scmp.eq.s32.totalorder %s33, 0
      %p81 = por %p79, %p80
      %s83 = sadd.s32 %s82, 1
      %p86 = scmp.eq.s32.totalorder %s27, 5
      %p87 = scmp.ne.s32.totalorder %s82, %s84
      %p88 = scmp.eq.s32.totalorder %s27, 0
      %p89 = por %p87, %p88
      %p90 = scmp.ne.s32.totalorder %s82, %s84
      %p91 = scmp.eq.s32.totalorder %s32, 5
      %p92 = por %p90, %p91
      %p93 = scmp.ne.s32.totalorder %s84, %s85
      %p94 = scmp.eq.s32.totalorder %s32, 0
      %p95 = por %p93, %p94
      %p96 = scmp.ne.s32.totalorder %s84, %s85
      %p97 = scmp.eq.s32.totalorder %s33, 5
      %p98 = por %p96, %p97
      %p100 = scmp.ne.s32.totalorder %s85, %s99
      %p101 = scmp.eq.s32.totalorder %s33, 0
      %p102 = por %p100, %p101
      %s104 = sadd.s32 %s103, 1
      %p107 = scmp.eq.s32.totalorder %s27, 5
      %p108 = scmp.ne.s32.totalorder %s103, %s105
      %p109 = scmp.eq.s32.totalorder %s27, 0
      %p110 = por %p108, %p109
      %p111 = scmp.ne.s32.totalorder %s103, %s105
      %p112 = scmp.eq.s32.totalorder %s32, 5
      %p113 = por %p111, %p112
      %p114 = scmp.ne.s32.totalorder %s105, %s106
      %p115 = scmp.eq.s32.totalorder %s32, 0
      %p116 = por %p114, %p115
      %p117 = scmp.ne.s32.totalorder %s105, %s106
      %p118 = scmp.eq.s32.totalorder %s33, 5
      %p119 = por %p117, %p118
      %p121 = scmp.ne.s32.totalorder %s106, %s120
      %p122 = scmp.eq.s32.totalorder %s33, 0
      %p123 = por %p121, %p122
      %s125 = sadd.s32 %s124, 1
      %p128 = scmp.eq.s32.totalorder %s27, 5
      %p129 = scmp.ne.s32.totalorder %s124, %s126
      %p130 = scmp.eq.s32.totalorder %s27, 0
      %p131 = por %p129, %p130
      %p132 = scmp.ne.s32.totalorder %s124, %s126
      %p133 = scmp.eq.s32.totalorder %s32, 5
      %p134 = por %p132, %p133
      %p135 = scmp.ne.s32.totalorder %s126, %s127
      %p136 = scmp.eq.s32.totalorder %s32, 0
      %p137 = por %p135, %p136
      %p138 = scmp.ne.s32.totalorder %s126, %s127
      %p139 = scmp.eq.s32.totalorder %s33, 5
      %p140 = por %p138, %p139
      %p142 = scmp.ne.s32.totalorder %s127, %s141
      %p143 = scmp.eq.s32.totalorder %s33, 0
      %p144 = por %p142, %p143
      %s146 = sadd.s32 %s145, 1
      %p149 = scmp.eq.s32.totalorder %s27, 5
      %p150 = scmp.ne.s32.totalorder %s145, %s147
      %p151 = scmp.eq.s32.totalorder %s27, 0
      %p152 = por %p150, %p151
      %p153 = scmp.ne.s32.totalorder %s145, %s147
      %p154 = scmp.eq.s32.totalorder %s32, 5
      %p155 = por %p153, %p154
      %p156 = scmp.ne.s32.totalorder %s147, %s148
      %p157 = scmp.eq.s32.totalorder %s32, 0
      %p158 = por %p156, %p157
      %p159 = scmp.ne.s32.totalorder %s147, %s148
      %p160 = scmp.eq.s32.totalorder %s33, 5
      %p161 = por %p159, %p160
      %p163 = scmp.ne.s32.totalorder %s148, %s162
      %p164 = scmp.eq.s32.totalorder %s33, 0
      %p165 = por %p163, %p164
      %s167 = sadd.s32 %s166, 1
      %p170 = scmp.eq.s32.totalorder %s27, 5
      %p171 = scmp.ne.s32.totalorder %s166, %s168
      %p172 = scmp.eq.s32.totalorder %s27, 0
      %p173 = por %p171, %p172
      %p174 = scmp.ne.s32.totalorder %s166, %s168
      %p175 = scmp.eq.s32.totalorder %s32, 5
      %p176 = por %p174, %p175
      %p177 = scmp.ne.s32.totalorder %s168, %s169
      %p178 = scmp.eq.s32.totalorder %s32, 0
      %p179 = por %p177, %p178
      %p180 = scmp.ne.s32.totalorder %s168, %s169
      %p181 = scmp.eq.s32.totalorder %s33, 5
      %p182 = por %p180, %p181
      %p184 = scmp.ne.s32.totalorder %s169, %s183
      %p185 = scmp.eq.s32.totalorder %s33, 0
      %p186 = por %p184, %p185
      %s188 = sadd.s32 %s187, 1
      %p191 = scmp.eq.s32.totalorder %s27, 5
      %p192 = scmp.ne.s32.totalorder %s187, %s189
      %p193 = scmp.eq.s32.totalorder %s27, 0
      %p194 = por %p192, %p193
      %p195 = scmp.ne.s32.totalorder %s187, %s189
      %p196 = scmp.eq.s32.totalorder %s32, 5
      %p197 = por %p195, %p196
      %p198 = scmp.ne.s32.totalorder %s189, %s190
      %p199 = scmp.eq.s32.totalorder %s32, 0
      %p200 = por %p198, %p199
      %p201 = scmp.ne.s32.totalorder %s189, %s190
      %p202 = scmp.eq.s32.totalorder %s33, 5
      %p203 = por %p201, %p202
      %p205 = scmp.ne.s32.totalorder %s190, %s204
      %p206 = scmp.eq.s32.totalorder %s33, 0
      %p207 = por %p205, %p206
      %s209 = sadd.s32 %s208, 1
      %p212 = scmp.eq.s32.totalorder %s27, 5
      %p213 = scmp.ne.s32.totalorder %s208, %s210
      %p214 = scmp.eq.s32.totalorder %s27, 0
      %p215 = por %p213, %p214
      %p216 = scmp.ne.s32.totalorder %s208, %s210
      %p217 = scmp.eq.s32.totalorder %s32, 5
      %p218 = por %p216, %p217
      %p219 = scmp.ne.s32.totalorder %s210, %s211
      %p220 = scmp.eq.s32.totalorder %s32, 0
      %p221 = por %p219, %p220
      %p222 = scmp.ne.s32.totalorder %s210, %s211
      %p223 = scmp.eq.s32.totalorder %s33, 5
      %p224 = por %p222, %p223
      %p226 = scmp.ne.s32.totalorder %s211, %s225
      %p227 = scmp.eq.s32.totalorder %s33, 0
      %p228 = por %p226, %p227
      %s230 = sadd.s32 %s229, 1
      %p233 = scmp.eq.s32.totalorder %s27, 5
      %p234 = scmp.ne.s32.totalorder %s229, %s231
      %p235 = scmp.eq.s32.totalorder %s27, 0
      %p236 = por %p234, %p235
      %p237 = scmp.ne.s32.totalorder %s229, %s231
      %p238 = scmp.eq.s32.totalorder %s32, 5
      %p239 = por %p237, %p238
      %p240 = scmp.ne.s32.totalorder %s231, %s232
      %p241 = scmp.eq.s32.totalorder %s32, 0
      %p242 = por %p240, %p241
      %p243 = scmp.ne.s32.totalorder %s231, %s232
      %p244 = scmp.eq.s32.totalorder %s33, 5
      %p245 = por %p243, %p244
      %p247 = scmp.ne.s32.totalorder %s232, %s246
      %p248 = scmp.eq.s32.totalorder %s33, 0
      %p249 = por %p247, %p248
      %s251 = sadd.s32 %s250, 1
      %p254 = scmp.eq.s32.totalorder %s27, 5
      %p255 = scmp.ne.s32.totalorder %s250, %s252
      %p256 = scmp.eq.s32.totalorder %s27, 0
      %p257 = por %p255, %p256
      %p258 = scmp.ne.s32.totalorder %s250, %s252
      %p259 = scmp.eq.s32.totalorder %s32, 5
      %p260 = por %p258, %p259
      %p261 = scmp.ne.s32.totalorder %s252, %s253
      %p262 = scmp.eq.s32.totalorder %s32, 0
      %p263 = por %p261, %p262
      %p264 = scmp.ne.s32.totalorder %s252, %s253
      %p265 = scmp.eq.s32.totalorder %s33, 5
      %p266 = por %p264, %p265
      %p268 = scmp.ne.s32.totalorder %s253, %s267
      %p269 = scmp.eq.s32.totalorder %s33, 0
      %p270 = por %p268, %p269
      %s272 = sadd.s32 %s271, 1
      %p275 = scmp.eq.s32.totalorder %s27, 5
      %p276 = scmp.ne.s32.totalorder %s271, %s273
      %p277 = scmp.eq.s32.totalorder %s27, 0
      %p278 = por %p276, %p277
      %p279 = scmp.ne.s32.totalorder %s271, %s273
      %p280 = scmp.eq.s32.totalorder %s32, 5
      %p281 = por %p279, %p280
      %p282 = scmp.ne.s32.totalorder %s273, %s274
      %p283 = scmp.eq.s32.totalorder %s32, 0
      %p284 = por %p282, %p283
      %p285 = scmp.ne.s32.totalorder %s273, %s274
      %p286 = scmp.eq.s32.totalorder %s33, 5
      %p287 = por %p285, %p286
      %p289 = scmp.ne.s32.totalorder %s274, %s288
      %p290 = scmp.eq.s32.totalorder %s33, 0
      %p291 = por %p289, %p290
      %s293 = sadd.s32 %s292, 1
      %p296 = scmp.eq.s32.totalorder %s27, 5
      %p297 = scmp.ne.s32.totalorder %s292, %s294
      %p298 = scmp.eq.s32.totalorder %s27, 0
      %p299 = por %p297, %p298
      %p300 = scmp.ne.s32.totalorder %s292, %s294
      %p301 = scmp.eq.s32.totalorder %s32, 5
      %p302 = por %p300, %p301
      %p303 = scmp.ne.s32.totalorder %s294, %s295
      %p304 = scmp.eq.s32.totalorder %s32, 0
      %p305 = por %p303, %p304
      %p306 = scmp.ne.s32.totalorder %s294, %s295
      %p307 = scmp.eq.s32.totalorder %s33, 5
      %p308 = por %p306, %p307
      %p310 = scmp.ne.s32.totalorder %s295, %s309
      %p311 = scmp.eq.s32.totalorder %s33, 0
      %p312 = por %p310, %p311
      %s314 = sadd.s32 %s313, 1
      %p317 = scmp.eq.s32.totalorder %s27, 5
      %p318 = scmp.ne.s32.totalorder %s313, %s315
      %p319 = scmp.eq.s32.totalorder %s27, 0
      %p320 = por %p318, %p319
      %p321 = scmp.ne.s32.totalorder %s313, %s315
      %p322 = scmp.eq.s32.totalorder %s32, 5
      %p323 = por %p321, %p322
      %p324 = scmp.ne.s32.totalorder %s315, %s316
      %p325 = scmp.eq.s32.totalorder %s32, 0
      %p326 = por %p324, %p325
      %p327 = scmp.ne.s32.totalorder %s315, %s316
      %p328 = scmp.eq.s32.totalorder %s33, 5
      %p329 = por %p327, %p328
      %p331 = scmp.ne.s32.totalorder %s316, %s330
      %p332 = scmp.eq.s32.totalorder %s33, 0
      %p333 = por %p331, %p332
      %s335 = sadd.s32 %s334, 1
      %p338 = scmp.eq.s32.totalorder %s27, 5
      %p339 = scmp.ne.s32.totalorder %s334, %s336
      %p340 = scmp.eq.s32.totalorder %s27, 0
      %p341 = por %p339, %p340
      %p342 = scmp.ne.s32.totalorder %s334, %s336
      %p343 = scmp.eq.s32.totalorder %s32, 5
      %p344 = por %p342, %p343
      %p345 = scmp.ne.s32.totalorder %s336, %s337
      %p346 = scmp.eq.s32.totalorder %s32, 0
      %p347 = por %p345, %p346
      %p348 = scmp.ne.s32.totalorder %s336, %s337
      %p349 = scmp.eq.s32.totalorder %s33, 5
      %p350 = por %p348, %p349
      %p352 = scmp.ne.s32.totalorder %s337, %s351
      %p353 = scmp.eq.s32.totalorder %s33, 0
      %p354 = por %p352, %p353
      %s356 = sadd.s32 %s355, 1
      %p359 = scmp.eq.s32.totalorder %s27, 5
      %p360 = scmp.ne.s32.totalorder %s355, %s357
      %p361 = scmp.eq.s32.totalorder %s27, 0
      %p362 = por %p360, %p361
      %p363 = scmp.ne.s32.totalorder %s355, %s357
      %p364 = scmp.eq.s32.totalorder %s32, 5
      %p365 = por %p363, %p364
      %p366 = scmp.ne.s32.totalorder %s357, %s358
      %p367 = scmp.eq.s32.totalorder %s32, 0
      %p368 = por %p366, %p367
      %p369 = scmp.ne.s32.totalorder %s357, %s358
      %p370 = scmp.eq.s32.totalorder %s33, 5
      %p371 = por %p369, %p370
      %p373 = scmp.ne.s32.totalorder %s358, %s372
      %p374 = scmp.eq.s32.totalorder %s33, 0
      %p375 = por %p373, %p374
      %s377 = sadd.s32 %s376, 1
      %p380 = scmp.eq.s32.totalorder %s27, 5
      %p381 = scmp.ne.s32.totalorder %s376, %s378
      %p382 = scmp.eq.s32.totalorder %s27, 0
      %p383 = por %p381, %p382
      %p384 = scmp.ne.s32.totalorder %s376, %s378
      %p385 = scmp.eq.s32.totalorder %s32, 5
      %p386 = por %p384, %p385
      %p387 = scmp.ne.s32.totalorder %s378, %s379
      %p388 = scmp.eq.s32.totalorder %s32, 0
      %p389 = por %p387, %p388
      %p390 = scmp.ne.s32.totalorder %s378, %s379
      %p391 = scmp.eq.s32.totalorder %s33, 5
      %p392 = por %p390, %p391
      %p394 = scmp.ne.s32.totalorder %s379, %s393
      %p395 = scmp.eq.s32.totalorder %s33, 0
      %p396 = por %p394, %p395
      %p397 = scmp.le.s32.totalorder 1, %s27
      %p398 = scmp.lt.s32.totalorder %s27, 7
      %p399 = pnand %p397, %p398
      %p400 = pneg %p399
      // Predicated region
      $region9: #{decoder_forward.1} parent=5 // pred_check
        _
      $region10: #{decoder_forward.1} parent=5 // pred_check_branch
        %402 = sbr.rel (%p399) target = $region12
      $region11: #{decoder_forward.1} parent=5 // pred_region
        %s403 = ssub.s32 %s27, 1
        // Predicated region
        $region13: #{decoder_forward.1} parent=11 // pred_check
          %p404 = pneg %p48
        $region14: #{decoder_forward.1} parent=11 // pred_check_branch
          %406 = sbr.rel (%p404) target = $region16
        $region15: #{decoder_forward.1} parent=11 // pred_region
          _
        $region16: #{decoder_forward.1} parent=11 // pred_fallthru
          _
        // Predicated region
        $region17: #{decoder_forward.1} parent=11 // pred_check
          %p407 = pneg %p95
        $region18: #{decoder_forward.1} parent=11 // pred_check_branch
          %409 = sbr.rel (%p407) target = $region20
        $region19: #{decoder_forward.1} parent=11 // pred_region
          _
        $region20: #{decoder_forward.1} parent=11 // pred_fallthru
          _
        // Predicated region
        $region21: #{decoder_forward.1} parent=11 // pred_check
          %p410 = pneg %p116
        $region22: #{decoder_forward.1} parent=11 // pred_check_branch
          %412 = sbr.rel (%p410) target = $region24
        $region23: #{decoder_forward.1} parent=11 // pred_region
          _
        $region24: #{decoder_forward.1} parent=11 // pred_fallthru
          _
        // Predicated region
        $region25: #{decoder_forward.1} parent=11 // pred_check
          %p413 = pneg %p137
        $region26: #{decoder_forward.1} parent=11 // pred_check_branch
          %415 = sbr.rel (%p413) target = $region28
        $region27: #{decoder_forward.1} parent=11 // pred_region
          _
        $region28: #{decoder_forward.1} parent=11 // pred_fallthru
          _
        // Predicated region
        $region29: #{decoder_forward.1} parent=11 // pred_check
          %p416 = pneg %p158
        $region30: #{decoder_forward.1} parent=11 // pred_check_branch
          %418 = sbr.rel (%p416) target = $region32
        $region31: #{decoder_forward.1} parent=11 // pred_region
          _
        $region32: #{decoder_forward.1} parent=11 // pred_fallthru
          _
        // Predicated region
        $region33: #{decoder_forward.1} parent=11 // pred_check
          %p419 = pneg %p179
        $region34: #{decoder_forward.1} parent=11 // pred_check_branch
          %421 = sbr.rel (%p419) target = $region36
        $region35: #{decoder_forward.1} parent=11 // pred_region
          _
        $region36: #{decoder_forward.1} parent=11 // pred_fallthru
          _
        // Predicated region
        $region37: #{decoder_forward.1} parent=11 // pred_check
          %p422 = pneg %p200
        $region38: #{decoder_forward.1} parent=11 // pred_check_branch
          %424 = sbr.rel (%p422) target = $region40
        $region39: #{decoder_forward.1} parent=11 // pred_region
          _
        $region40: #{decoder_forward.1} parent=11 // pred_fallthru
          _
        // Predicated region
        $region41: #{decoder_forward.1} parent=11 // pred_check
          %p425 = pneg %p221
        $region42: #{decoder_forward.1} parent=11 // pred_check_branch
          %427 = sbr.rel (%p425) target = $region44
        $region43: #{decoder_forward.1} parent=11 // pred_region
          _
        $region44: #{decoder_forward.1} parent=11 // pred_fallthru
          _
        // Predicated region
        $region45: #{decoder_forward.1} parent=11 // pred_check
          %p428 = pneg %p242
        $region46: #{decoder_forward.1} parent=11 // pred_check_branch
          %430 = sbr.rel (%p428) target = $region48
        $region47: #{decoder_forward.1} parent=11 // pred_region
          _
        $region48: #{decoder_forward.1} parent=11 // pred_fallthru
          _
        // Predicated region
        $region49: #{decoder_forward.1} parent=11 // pred_check
          %p431 = pneg %p263
        $region50: #{decoder_forward.1} parent=11 // pred_check_branch
          %433 = sbr.rel (%p431) target = $region52
        $region51: #{decoder_forward.1} parent=11 // pred_region
          _
        $region52: #{decoder_forward.1} parent=11 // pred_fallthru
          _
        // Predicated region
        $region53: #{decoder_forward.1} parent=11 // pred_check
          %p434 = pneg %p284
        $region54: #{decoder_forward.1} parent=11 // pred_check_branch
          %436 = sbr.rel (%p434) target = $region56
        $region55: #{decoder_forward.1} parent=11 // pred_region
          _
        $region56: #{decoder_forward.1} parent=11 // pred_fallthru
          _
        // Predicated region
        $region57: #{decoder_forward.1} parent=11 // pred_check
          %p437 = pneg %p305
        $region58: #{decoder_forward.1} parent=11 // pred_check_branch
          %439 = sbr.rel (%p437) target = $region60
        $region59: #{decoder_forward.1} parent=11 // pred_region
          _
        $region60: #{decoder_forward.1} parent=11 // pred_fallthru
          _
        // Predicated region
        $region61: #{decoder_forward.1} parent=11 // pred_check
          %p440 = pneg %p326
        $region62: #{decoder_forward.1} parent=11 // pred_check_branch
          %442 = sbr.rel (%p440) target = $region64
        $region63: #{decoder_forward.1} parent=11 // pred_region
          _
        $region64: #{decoder_forward.1} parent=11 // pred_fallthru
          _
      $region12: #{decoder_forward.1} parent=5 // pred_fallthru
        _
      %p443 = scmp.lt.s32.totalorder %s27, 6
      // Predicated region
      $region65: #{decoder_forward.1} parent=5 // pred_check
        %p444 = pneg %p443
      $region66: #{decoder_forward.1} parent=5 // pred_check_branch
        %446 = sbr.rel (%p444) target = $region68
      $region67: #{decoder_forward.1} parent=5 // pred_region
        // Predicated region
        $region69: #{decoder_forward.1} parent=67 // pred_check
          %p447 = pneg %p68
        $region70: #{decoder_forward.1} parent=67 // pred_check_branch
          %449 = sbr.rel (%p447) target = $region72
        $region71: #{decoder_forward.1} parent=67 // pred_region
          %p450 = scmp.lt.s32.totalorder %s27, 5
          %s451 = scalar_select %p450, %s27, 5
          %s452 = smul.addr %s451, 4
          %s453 = scalar_lea.vmem %s1, %s452
        $region72: #{decoder_forward.1} parent=67 // pred_fallthru
          _
      $region68: #{decoder_forward.1} parent=5 // pred_fallthru
        _
      %p454 = scmp.le.s32.totalorder 1, %s27
      %p455 = scmp.lt.s32.totalorder %s27, 7
      %p456 = pnand %p454, %p455
      %p457 = pneg %p456
      // Predicated region
      $region73: #{decoder_forward.1} parent=5 // pred_check
        _
      $region74: #{decoder_forward.1} parent=5 // pred_check_branch
        %459 = sbr.rel (%p456) target = $region76
      $region75: #{decoder_forward.1} parent=5 // pred_region
        %s460 = ssub.s32 %s27, 1
        %p461 = pneg %p48
        %p462 = pneg %p45
        %p463 = scmp.lt.s32.totalorder %s32, 5
        %s464 = scalar_select %p463, %s32, 5
        %s465 = smul.addr %s464, 4
        %s466 = scalar_lea.vmem %s1, %s465
        %p467 = pneg %p74
        %p468 = pneg %p71
        %p469 = pneg %p95
        %p470 = pneg %p92
        %p471 = pneg %p116
        %p472 = pneg %p113
        %p473 = pneg %p137
        %p474 = pneg %p134
        %p475 = pneg %p158
        %p476 = pneg %p155
        %p477 = pneg %p179
        %p478 = pneg %p176
        %p479 = pneg %p200
        %p480 = pneg %p197
        %p481 = pneg %p221
        %p482 = pneg %p218
        %p483 = pneg %p242
        %p484 = pneg %p239
        %p485 = pneg %p263
        %p486 = pneg %p260
        %p487 = pneg %p284
        %p488 = pneg %p281
        %p489 = pneg %p305
        %p490 = pneg %p302
        %p491 = pneg %p326
        %p492 = pneg %p323
        %p493 = pneg %p347
        %p494 = pneg %p344
        %p495 = pneg %p368
        %p496 = pneg %p365
        %p497 = pneg %p389
        %p498 = pneg %p386
        %p499 = scmp.lt.s32.totalorder %s32, 5
        %s500 = scalar_select %p499, %s32, 5
        %s501 = smul.addr %s500, 4
        %s502 = scalar_lea.vmem %s1, %s501
        %v504 = vld [vmem:[%s0] sm:$0xf]
        %v505 = vld [vmem:[%s0 + $0x4] sm:$0xf]
        %v506 = vld [vmem:[%s0 + $0x8] sm:$0xf]
        %v507 = vld [vmem:[%s0 + $0xc] sm:$0xf]
        %v508 = vld [vmem:[%s0 + $0x10] sm:$0xf]
        %v509 = vld [vmem:[%s0 + $0x14] sm:$0xf]
        %v510 = vld [vmem:[%s0 + $0x18] sm:$0xf]
        %v511 = vld [vmem:[%s0 + $0x1c] sm:$0xf]
        %v512 = vld [vmem:[%s0 + $0x20] sm:$0xf]
        %v513 = vld [vmem:[%s0 + $0x24] sm:$0xf]
        %v514 = vld [vmem:[%s0 + $0x28] sm:$0xf]
        %v515 = vld [vmem:[%s0 + $0x2c] sm:$0xf]
        %v516 = vld [vmem:[%s0 + $0x30] sm:$0xf]
        %v517 = vld [vmem:[%s0 + $0x34] sm:$0xf]
        %v518 = vld [vmem:[%s0 + $0x38] sm:$0xf]
        %v519 = vld [vmem:[%s0 + $0x3c] sm:$0xf]
        %p520 = scmp.eq.s32.totalorder %s32, 0
        // Predicated region
        $region77: #{decoder_forward.1} parent=75 // pred_check
          %p521 = pneg %p520
        $region78: #{decoder_forward.1} parent=75 // pred_check_branch
          %523 = sbr.rel (%p521) target = $region80
        $region79: #{decoder_forward.1} parent=75 // pred_region
          %v524 = vunpack.c.l.bf16 %v504
          %v525 = vunpack.c.l.bf16 %v505
          %v526 = vunpack.c.l.bf16 %v506
          %v527 = vunpack.c.l.bf16 %v507
          %v528 = vunpack.c.l.bf16 %v508
          %v529 = vunpack.c.l.bf16 %v509
          %v530 = vunpack.c.l.bf16 %v510
          %v531 = vunpack.c.l.bf16 %v511
          %v532 = vunpack.c.l.bf16 %v512
          %v533 = vunpack.c.l.bf16 %v513
          %v534 = vunpack.c.l.bf16 %v514
          %v535 = vunpack.c.l.bf16 %v515
          %v536 = vunpack.c.l.bf16 %v516
          %v537 = vunpack.c.l.bf16 %v517
          %v538 = vunpack.c.l.bf16 %v518
          %v539 = vunpack.c.l.bf16 %v519
          %v540 = vadd.f32 %v524, %v525
          %v541 = vrot.slane %v540, 4
          %v542 = vadd.f32 %v540, %v541
          %v543 = vrot.slane %v542, 2
          %v544 = vadd.f32 %v542, %v543
          %v545 = vrot.slane %v544, 1
          %v546 = vadd.f32 %v544, %v545
          %v547 = vadd.f32 %v526, %v527
          %v548 = vrot.slane %v547, 4
          %v549 = vadd.f32 %v547, %v548
          %v550 = vrot.slane %v549, 2
          %v551 = vadd.f32 %v549, %v550
          %v552 = vrot.slane %v551, 1
          %v553 = vadd.f32 %v551, %v552
          %v554 = vadd.f32 %v528, %v529
          %v555 = vrot.slane %v554, 4
          %v556 = vadd.f32 %v554, %v555
          %v557 = vrot.slane %v556, 2
          %v558 = vadd.f32 %v556, %v557
          %v559 = vrot.slane %v558, 1
          %v560 = vadd.f32 %v558, %v559
          %v561 = vadd.f32 %v530, %v531
          %v562 = vrot.slane %v561, 4
          %v563 = vadd.f32 %v561, %v562
          %v564 = vrot.slane %v563, 2
          %v565 = vadd.f32 %v563, %v564
          %v566 = vrot.slane %v565, 1
          %v567 = vadd.f32 %v565, %v566
          %v568 = vadd.f32 %v532, %v533
          %v569 = vrot.slane %v568, 4
          %v570 = vadd.f32 %v568, %v569
          %v571 = vrot.slane %v570, 2
          %v572 = vadd.f32 %v570, %v571
          %v573 = vrot.slane %v572, 1
          %v574 = vadd.f32 %v572, %v573
          %v575 = vadd.f32 %v534, %v535
          %v576 = vrot.slane %v575, 4
          %v577 = vadd.f32 %v575, %v576
          %v578 = vrot.slane %v577, 2
          %v579 = vadd.f32 %v577, %v578
          %v580 = vrot.slane %v579, 1
          %v581 = vadd.f32 %v579, %v580
          %v582 = vadd.f32 %v536, %v537
          %v583 = vrot.slane %v582, 4
          %v584 = vadd.f32 %v582, %v583
          %v585 = vrot.slane %v584, 2
          %v586 = vadd.f32 %v584, %v585
          %v587 = vrot.slane %v586, 1
          %v588 = vadd.f32 %v586, %v587
          %v589 = vadd.f32 %v538, %v539
          %v590 = vrot.slane %v589, 4
          %v591 = vadd.f32 %v589, %v590
          %v592 = vrot.slane %v591, 2
          %v593 = vadd.f32 %v591, %v592
          %v594 = vrot.slane %v593, 1
          %v595 = vadd.f32 %v593, %v594
          %v596 = vrcp.pop 16.0
          %v597 = vmul.f32 %v546, %v596
          %v598 = vmul.f32 %v553, %v596
          %v599 = vmul.f32 %v560, %v596
          %v600 = vmul.f32 %v567, %v596
          %v601 = vmul.f32 %v574, %v596
          %v602 = vmul.f32 %v581, %v596
          %v603 = vmul.f32 %v588, %v596
          %v604 = vmul.f32 %v595, %v596
          %v605 = vpack.c.bf16 %v597, %v597
          %v606 = vpack.c.bf16 %v598, %v598
          %v607 = vpack.c.bf16 %v599, %v599
          %v608 = vpack.c.bf16 %v600, %v600
          %v609 = vpack.c.bf16 %v601, %v601
          %v610 = vpack.c.bf16 %v602, %v602
          %v611 = vpack.c.bf16 %v603, %v603
          %v612 = vpack.c.bf16 %v604, %v604
          %v613 = vld [vmem:[%s8] sm:$0xff]
          %v614 = vld [vmem:[%s8 + $0x8] sm:$0xff]
          %v615 = vld [vmem:[%s8 + $0x10] sm:$0xff]
          %v616 = vld [vmem:[%s8 + $0x18] sm:$0xff]
          %v617 = vld [vmem:[%s8 + $0x20] sm:$0xff]
          %v618 = vld [vmem:[%s8 + $0x28] sm:$0xff]
          %v619 = vld [vmem:[%s8 + $0x30] sm:$0xff]
          %v620 = vld [vmem:[%s8 + $0x38] sm:$0xff]
          %v621 = vld [vmem:[%s8 + $0x40] sm:$0xff]
          %v622 = vld [vmem:[%s8 + $0x48] sm:$0xff]
          %v623 = vld [vmem:[%s8 + $0x50] sm:$0xff]
          %v624 = vld [vmem:[%s8 + $0x58] sm:$0xff]
          %v625 = vld [vmem:[%s8 + $0x60] sm:$0xff]
          %v626 = vld [vmem:[%s8 + $0x68] sm:$0xff]
          %v627 = vld [vmem:[%s8 + $0x70] sm:$0xff]
          %v628 = vld [vmem:[%s8 + $0x78] sm:$0xff]
          %v629 = vld [vmem:[%s9] sm:$0x3]
          %v631 = vlaneseq
          %v632 = vshrl.u32 %v631, 7
          %v633 = vsub.s32 0, %v632
          %v634 = vrot.slane %v629, %v633
          %v635 = vlaneseq
          %v636 = vshrl.u32 %v635, 7
          %v637 = vsub.s32 1, %v636
          %v638 = vrot.slane %v629, %v637
          %v649 = vunpack.c.l.b16 %v605
          %v650 = vunpack.c.l.b16 %v606
          %v651 = vunpack.c.l.b16 %v607
          %v652 = vunpack.c.l.b16 %v608
          %v653 = vunpack.c.l.b16 %v609
          %v654 = vunpack.c.l.b16 %v610
          %v655 = vunpack.c.l.b16 %v611
          %v656 = vunpack.c.l.b16 %v612
          %vm657 = vcmask 1041409
          %v658 = vsel %vm657, %v650, %v649
          %vm659 = vcmask 1042434
          %v660 = vsel %vm659, %v651, %v658
          %vm661 = vcmask 1043459
          %v662 = vsel %vm661, %v652, %v660
          %vm663 = vcmask 1044484
          %v664 = vsel %vm663, %v653, %v662
          %vm665 = vcmask 1045509
          %v666 = vsel %vm665, %v654, %v664
          %vm667 = vcmask 1046534
          %v668 = vsel %vm667, %v655, %v666
          %vm669 = vcmask 1047559
          %v670 = vsel %vm669, %v656, %v668
          %v671 = vpack.c.b16 %v670, %v670
          %v689 = vunpack.c.l.b16 %v613
          %v690 = vunpack.c.h.b16 %v613
          %v691 = vunpack.c.l.b16 %v614
          %v692 = vunpack.c.h.b16 %v614
          %v693 = vunpack.c.l.b16 %v615
          %v694 = vunpack.c.h.b16 %v615
          %v695 = vunpack.c.l.b16 %v616
          %v696 = vunpack.c.h.b16 %v616
          %v697 = vunpack.c.l.b16 %v617
          %v698 = vunpack.c.h.b16 %v617
          %v699 = vunpack.c.l.b16 %v618
          %v700 = vunpack.c.h.b16 %v618
          %v701 = vunpack.c.l.b16 %v619
          %v702 = vunpack.c.h.b16 %v619
          %v703 = vunpack.c.l.b16 %v620
          %v704 = vunpack.c.h.b16 %v620
          %v705 = vunpack.c.l.b16 %v621
          %v706 = vunpack.c.h.b16 %v621
          %v707 = vunpack.c.l.b16 %v622
          %v708 = vunpack.c.h.b16 %v622
          %v709 = vunpack.c.l.b16 %v623
          %v710 = vunpack.c.h.b16 %v623
          %v711 = vunpack.c.l.b16 %v624
          %v712 = vunpack.c.h.b16 %v624
          %v713 = vunpack.c.l.b16 %v625
          %v714 = vunpack.c.h.b16 %v625
          %v715 = vunpack.c.l.b16 %v626
          %v716 = vunpack.c.h.b16 %v626
          %v717 = vunpack.c.l.b16 %v627
          %v718 = vunpack.c.h.b16 %v627
          %v719 = vunpack.c.l.b16 %v628
          %v720 = vunpack.c.h.b16 %v628
          %v721 = vpack.c.b16 %v691, %v689
          %v722 = vpack.c.b16 %v692, %v690
          %v723 = vpack.c.b16 %v695, %v693
          %v724 = vpack.c.b16 %v696, %v694
          %v725 = vpack.c.b16 %v699, %v697
          %v726 = vpack.c.b16 %v700, %v698
          %v727 = vpack.c.b16 %v703, %v701
          %v728 = vpack.c.b16 %v704, %v702
          %v729 = vpack.c.b16 %v707, %v705
          %v730 = vpack.c.b16 %v708, %v706
          %v731 = vpack.c.b16 %v711, %v709
          %v732 = vpack.c.b16 %v712, %v710
          %v733 = vpack.c.b16 %v715, %v713
          %v734 = vpack.c.b16 %v716, %v714
          %v735 = vpack.c.b16 %v719, %v717
          %v736 = vpack.c.b16 %v720, %v718
          %753 = vmatprep.subr.bf16.mxu0 %v736
          %754 = vmatpush1.bf16.msra.mxu0 %v735
          %755 = vmatprep.subr.bf16.mxu0 %v734
          %756 = vmatpush1.bf16.msra.mxu0 %v733
          %757 = vmatprep.subr.bf16.mxu0 %v732
          %758 = vmatpush1.bf16.msra.mxu0 %v731
          %759 = vmatprep.subr.bf16.mxu0 %v730
          %760 = vmatpush1.bf16.msra.mxu0 %v729
          %761 = vmatprep.subr.bf16.mxu0 %v728
          %762 = vmatpush1.bf16.msra.mxu0 %v727
          %763 = vmatprep.subr.bf16.mxu0 %v726
          %764 = vmatpush1.bf16.msra.mxu0 %v725
          %765 = vmatprep.subr.bf16.mxu0 %v724
          %766 = vmatpush1.bf16.msra.mxu0 %v723
          %767 = vmatprep.subr.bf16.mxu0 %v722
          %768 = vmatpush1.bf16.msra.mxu0 %v721
          %769 = vmatprep.subr.bf16.mxu0 0
          %770 = vmatpush2.bf16.msra.mxu0 0
          %771 = vmatprep.subr.bf16.mxu0 0
          %772 = vmatpush2.bf16.msra.mxu0 0
          %773 = vmatprep.subr.bf16.mxu0 0
          %774 = vmatpush2.bf16.msra.mxu0 0
          %775 = vmatprep.subr.bf16.mxu0 0
          %776 = vmatpush2.bf16.msra.mxu0 0
          %777 = vmatprep.subr.bf16.mxu0 0
          %778 = vmatpush2.bf16.msra.mxu0 0
          %779 = vmatprep.subr.bf16.mxu0 0
          %780 = vmatpush2.bf16.msra.mxu0 0
          %781 = vmatprep.subr.bf16.mxu0 0
          %782 = vmatpush2.bf16.msra.mxu0 0
          %783 = vmatprep.subr.bf16.mxu0 0
          %784 = vmatpush2.bf16.msra.mxu0 0
          %785 = vmatprep.mubr.bf16.mxu0 0
          %786 = vmatmul.mubr.bf16.gmra.mxu0 %v671
          %v787 = vpop.f32.mrf.mxu0
          %v788 = vadd.f32 %v634, %v787
          %v789 = vpop.f32.mrf.mxu0
          %v790 = vadd.f32 %v638, %v789
          %v791 = vpop.f32.mrf.mxu0
          %v792 = vpop.f32.mrf.mxu0
          %793 = vdwg.mxu0
          %794 = vst [vmem:[#allocation4] sm:$0xff] %v788
          %795 = vst [vmem:[#allocation6] sm:$0xff] %v790
          %v796 = vld [vmem:[%s2] sm:$0xf]
          %v797 = vld [vmem:[%s2 + $0x4] sm:$0xf]
          %v798 = vld [vmem:[%s2 + $0x8] sm:$0xf]
          %v799 = vld [vmem:[%s2 + $0xc] sm:$0xf]
          %v800 = vld [vmem:[%s2 + $0x10] sm:$0xf]
          %v801 = vld [vmem:[%s2 + $0x14] sm:$0xf]
          %v802 = vld [vmem:[%s2 + $0x18] sm:$0xf]
          %v803 = vld [vmem:[%s2 + $0x1c] sm:$0xf]
          %v804 = vld [vmem:[%s2 + $0x20] sm:$0xf]
          %v805 = vld [vmem:[%s2 + $0x24] sm:$0xf]
          %v806 = vld [vmem:[%s2 + $0x28] sm:$0xf]
          %v807 = vld [vmem:[%s2 + $0x2c] sm:$0xf]
          %v808 = vld [vmem:[%s2 + $0x30] sm:$0xf]
          %v809 = vld [vmem:[%s2 + $0x34] sm:$0xf]
          %v810 = vld [vmem:[%s2 + $0x38] sm:$0xf]
          %v811 = vld [vmem:[%s2 + $0x3c] sm:$0xf]
          %v812 = vld [vmem:[%s3] sm:$0x1]
          %v814 = vlaneseq
          %v815 = vshrl.u32 %v814, 7
          %v816 = vsub.s32 0, %v815
          %v817 = vrot.slane %v812, %v816
          %v835 = vunpack.c.l.b16 %v504
          %v836 = vunpack.c.l.b16 %v505
          %v837 = vunpack.c.l.b16 %v506
          %v838 = vunpack.c.l.b16 %v507
          %v839 = vunpack.c.l.b16 %v508
          %v840 = vunpack.c.l.b16 %v509
          %v841 = vunpack.c.l.b16 %v510
          %v842 = vunpack.c.l.b16 %v511
          %v843 = vunpack.c.l.b16 %v512
          %v844 = vunpack.c.l.b16 %v513
          %v845 = vunpack.c.l.b16 %v514
          %v846 = vunpack.c.l.b16 %v515
          %v847 = vunpack.c.l.b16 %v516
          %v848 = vunpack.c.l.b16 %v517
          %v849 = vunpack.c.l.b16 %v518
          %v850 = vunpack.c.l.b16 %v519
          %v851 = vpack.c.b16 %v836, %v835
          %v852 = vpack.c.b16 %v838, %v837
          %v853 = vpack.c.b16 %v840, %v839
          %v854 = vpack.c.b16 %v842, %v841
          %v855 = vpack.c.b16 %v844, %v843
          %v856 = vpack.c.b16 %v846, %v845
          %v857 = vpack.c.b16 %v848, %v847
          %v858 = vpack.c.b16 %v850, %v849
          %v883 = vunpack.c.l.b16 %v796
          %v884 = vunpack.c.l.b16 %v797
          %v885 = vunpack.c.l.b16 %v798
          %v886 = vunpack.c.l.b16 %v799
          %v887 = vunpack.c.l.b16 %v800
          %v888 = vunpack.c.l.b16 %v801
          %v889 = vunpack.c.l.b16 %v802
          %v890 = vunpack.c.l.b16 %v803
          %v891 = vunpack.c.l.b16 %v804
          %v892 = vunpack.c.l.b16 %v805
          %v893 = vunpack.c.l.b16 %v806
          %v894 = vunpack.c.l.b16 %v807
          %v895 = vunpack.c.l.b16 %v808
          %v896 = vunpack.c.l.b16 %v809
          %v897 = vunpack.c.l.b16 %v810
          %v898 = vunpack.c.l.b16 %v811
          %v899 = vpack.c.b16 %v884, %v883
          %v900 = vpack.c.b16 %v886, %v885
          %v901 = vpack.c.b16 %v888, %v887
          %v902 = vpack.c.b16 %v890, %v889
          %v903 = vpack.c.b16 %v892, %v891
          %v904 = vpack.c.b16 %v894, %v893
          %v905 = vpack.c.b16 %v896, %v895
          %v906 = vpack.c.b16 %v898, %v897
          %915 = vmatprep.subr.bf16.mxu0 0
          %916 = vmatpush1.bf16.msra.mxu0 %v906
          %917 = vmatprep.subr.bf16.mxu0 0
          %918 = vmatpush1.bf16.msra.mxu0 %v905
          %919 = vmatprep.subr.bf16.mxu0 0
          %920 = vmatpush1.bf16.msra.mxu0 %v904
          %921 = vmatprep.subr.bf16.mxu0 0
          %922 = vmatpush1.bf16.msra.mxu0 %v903
          %923 = vmatprep.subr.bf16.mxu0 0
          %924 = vmatpush1.bf16.msra.mxu0 %v902
          %925 = vmatprep.subr.bf16.mxu0 0
          %926 = vmatpush1.bf16.msra.mxu0 %v901
          %927 = vmatprep.subr.bf16.mxu0 0
          %928 = vmatpush1.bf16.msra.mxu0 %v900
          %929 = vmatprep.subr.bf16.mxu0 0
          %930 = vmatpush1.bf16.msra.mxu0 %v899
          %931 = vmatprep.subr.bf16.mxu0 0
          %932 = vmatpush2.bf16.msra.mxu0 0
          %933 = vmatprep.subr.bf16.mxu0 0
          %934 = vmatpush2.bf16.msra.mxu0 0
          %935 = vmatprep.subr.bf16.mxu0 0
          %936 = vmatpush2.bf16.msra.mxu0 0
          %937 = vmatprep.subr.bf16.mxu0 0
          %938 = vmatpush2.bf16.msra.mxu0 0
          %939 = vmatprep.subr.bf16.mxu0 0
          %940 = vmatpush2.bf16.msra.mxu0 0
          %941 = vmatprep.subr.bf16.mxu0 0
          %942 = vmatpush2.bf16.msra.mxu0 0
          %943 = vmatprep.subr.bf16.mxu0 0
          %944 = vmatpush2.bf16.msra.mxu0 0
          %945 = vmatprep.subr.bf16.mxu0 0
          %946 = vmatpush2.bf16.msra.mxu0 0
          %947 = vmatprep.mubr.bf16.mxu0 0
          %948 = vmatmul.mubr.bf16.gmra.mxu0 %v851
          %v949 = vpop.f32.mrf.mxu0
          %v950 = vadd.f32 %v817, %v949
          %v951 = vpop.f32.mrf.mxu0
          %v952 = vpop.f32.mrf.mxu0
          %v953 = vadd.f32 %v817, %v952
          %v954 = vpop.f32.mrf.mxu0
          %955 = vmatprep.mubr.bf16.mxu0 0
          %956 = vmatmul.mubr.bf16.gmra.mxu0 %v852
          %v957 = vpop.f32.mrf.mxu0
          %v958 = vadd.f32 %v817, %v957
          %v959 = vpop.f32.mrf.mxu0
          %v960 = vpop.f32.mrf.mxu0
          %v961 = vadd.f32 %v817, %v960
          %v962 = vpop.f32.mrf.mxu0
          %963 = vmatprep.mubr.bf16.mxu0 0
          %964 = vmatmul.mubr.bf16.gmra.mxu0 %v853
          %v965 = vpop.f32.mrf.mxu0
          %v966 = vadd.f32 %v817, %v965
          %v967 = vpop.f32.mrf.mxu0
          %v968 = vpop.f32.mrf.mxu0
          %v969 = vadd.f32 %v817, %v968
          %v970 = vpop.f32.mrf.mxu0
          %971 = vmatprep.mubr.bf16.mxu0 0
          %972 = vmatmul.mubr.bf16.gmra.mxu0 %v854
          %v973 = vpop.f32.mrf.mxu0
          %v974 = vadd.f32 %v817, %v973
          %v975 = vpop.f32.mrf.mxu0
          %v976 = vpop.f32.mrf.mxu0
          %v977 = vadd.f32 %v817, %v976
          %v978 = vpop.f32.mrf.mxu0
          %979 = vmatprep.mubr.bf16.mxu0 0
          %980 = vmatmul.mubr.bf16.gmra.mxu0 %v855
          %v981 = vpop.f32.mrf.mxu0
          %v982 = vadd.f32 %v817, %v981
          %v983 = vpop.f32.mrf.mxu0
          %v984 = vpop.f32.mrf.mxu0
          %v985 = vadd.f32 %v817, %v984
          %v986 = vpop.f32.mrf.mxu0
          %987 = vmatprep.mubr.bf16.mxu0 0
          %988 = vmatmul.mubr.bf16.gmra.mxu0 %v856
          %v989 = vpop.f32.mrf.mxu0
          %v990 = vadd.f32 %v817, %v989
          %v991 = vpop.f32.mrf.mxu0
          %v992 = vpop.f32.mrf.mxu0
          %v993 = vadd.f32 %v817, %v992
          %v994 = vpop.f32.mrf.mxu0
          %995 = vmatprep.mubr.bf16.mxu0 0
          %996 = vmatmul.mubr.bf16.gmra.mxu0 %v857
          %v997 = vpop.f32.mrf.mxu0
          %v998 = vadd.f32 %v817, %v997
          %v999 = vpop.f32.mrf.mxu0
          %v1000 = vpop.f32.mrf.mxu0
          %v1001 = vadd.f32 %v817, %v1000
          %v1002 = vpop.f32.mrf.mxu0
          %1003 = vmatprep.mubr.bf16.mxu0 0
          %1004 = vmatmul.mubr.bf16.gmra.mxu0 %v858
          %v1005 = vpop.f32.mrf.mxu0
          %v1006 = vadd.f32 %v817, %v1005
          %v1007 = vpop.f32.mrf.mxu0
          %v1008 = vpop.f32.mrf.mxu0
          %v1009 = vadd.f32 %v817, %v1008
          %v1010 = vpop.f32.mrf.mxu0
          %1011 = vdwg.mxu0
          %vm1012 = vcmask 523264
          %1013 = vst.msk [vmem:[#allocation2] sm:$0xff] %vm1012, %v950
          %1014 = vst.msk [vmem:[#allocation2 + $0x8] sm:$0xff] %vm1012, %v953
          %1015 = vst.msk [vmem:[#allocation2 + $0x10] sm:$0xff] %vm1012, %v958
          %1016 = vst.msk [vmem:[#allocation2 + $0x18] sm:$0xff] %vm1012, %v961
          %1017 = vst.msk [vmem:[#allocation2 + $0x20] sm:$0xff] %vm1012, %v966
          %1018 = vst.msk [vmem:[#allocation2 + $0x28] sm:$0xff] %vm1012, %v969
          %1019 = vst.msk [vmem:[#allocation2 + $0x30] sm:$0xff] %vm1012, %v974
          %1020 = vst.msk [vmem:[#allocation2 + $0x38] sm:$0xff] %vm1012, %v977
          %1021 = vst.msk [vmem:[#allocation2 + $0x40] sm:$0xff] %vm1012, %v982
          %1022 = vst.msk [vmem:[#allocation2 + $0x48] sm:$0xff] %vm1012, %v985
          %1023 = vst.msk [vmem:[#allocation2 + $0x50] sm:$0xff] %vm1012, %v990
          %1024 = vst.msk [vmem:[#allocation2 + $0x58] sm:$0xff] %vm1012, %v993
          %1025 = vst.msk [vmem:[#allocation2 + $0x60] sm:$0xff] %vm1012, %v998
          %1026 = vst.msk [vmem:[#allocation2 + $0x68] sm:$0xff] %vm1012, %v1001
          %1027 = vst.msk [vmem:[#allocation2 + $0x70] sm:$0xff] %vm1012, %v1006
          %1028 = vst.msk [vmem:[#allocation2 + $0x78] sm:$0xff] %vm1012, %v1009
        $region80: #{decoder_forward.1} parent=75 // pred_fallthru
          _
        %v1029 = vld [vmem:[#allocation4] sm:$0xff]
        %v1030 = vld [vmem:[#allocation6] sm:$0xff]
        %v1031 = vpack.c.bf16 %v1029, %v1029
        %v1032 = vld [vmem:[%s4] sm:$0xff]
        %v1033 = vld [vmem:[%s4 + $0x8] sm:$0xff]
        %v1034 = vld [vmem:[%s4 + $0x10] sm:$0xff]
        %v1035 = vld [vmem:[%s4 + $0x18] sm:$0xff]
        %v1036 = vld [vmem:[%s4 + $0x20] sm:$0xff]
        %v1037 = vld [vmem:[%s4 + $0x28] sm:$0xff]
        %v1038 = vld [vmem:[%s4 + $0x30] sm:$0xff]
        %v1039 = vld [vmem:[%s4 + $0x38] sm:$0xff]
        %v1040 = vld [vmem:[%s4 + $0x40] sm:$0xff]
        %v1041 = vld [vmem:[%s4 + $0x48] sm:$0xff]
        %v1042 = vld [vmem:[%s4 + $0x50] sm:$0xff]
        %v1043 = vld [vmem:[%s4 + $0x58] sm:$0xff]
        %v1044 = vld [vmem:[%s4 + $0x60] sm:$0xff]
        %v1045 = vld [vmem:[%s4 + $0x68] sm:$0xff]
        %v1046 = vld [vmem:[%s4 + $0x70] sm:$0xff]
        %v1047 = vld [vmem:[%s4 + $0x78] sm:$0xff]
        %v1048 = vld [vmem:[%s5] sm:$0x3]
        %v1050 = vlaneseq
        %v1051 = vshrl.u32 %v1050, 7
        %v1052 = vsub.s32 0, %v1051
        %v1053 = vrot.slane %v1048, %v1052
        %v1054 = vlaneseq
        %v1055 = vshrl.u32 %v1054, 7
        %v1056 = vsub.s32 1, %v1055
        %v1057 = vrot.slane %v1048, %v1056
        %v1076 = vunpack.c.l.b16 %v1032
        %v1077 = vunpack.c.h.b16 %v1032
        %v1078 = vunpack.c.l.b16 %v1033
        %v1079 = vunpack.c.h.b16 %v1033
        %v1080 = vunpack.c.l.b16 %v1034
        %v1081 = vunpack.c.h.b16 %v1034
        %v1082 = vunpack.c.l.b16 %v1035
        %v1083 = vunpack.c.h.b16 %v1035
        %v1084 = vunpack.c.l.b16 %v1036
        %v1085 = vunpack.c.h.b16 %v1036
        %v1086 = vunpack.c.l.b16 %v1037
        %v1087 = vunpack.c.h.b16 %v1037
        %v1088 = vunpack.c.l.b16 %v1038
        %v1089 = vunpack.c.h.b16 %v1038
        %v1090 = vunpack.c.l.b16 %v1039
        %v1091 = vunpack.c.h.b16 %v1039
        %v1092 = vunpack.c.l.b16 %v1040
        %v1093 = vunpack.c.h.b16 %v1040
        %v1094 = vunpack.c.l.b16 %v1041
        %v1095 = vunpack.c.h.b16 %v1041
        %v1096 = vunpack.c.l.b16 %v1042
        %v1097 = vunpack.c.h.b16 %v1042
        %v1098 = vunpack.c.l.b16 %v1043
        %v1099 = vunpack.c.h.b16 %v1043
        %v1100 = vunpack.c.l.b16 %v1044
        %v1101 = vunpack.c.h.b16 %v1044
        %v1102 = vunpack.c.l.b16 %v1045
        %v1103 = vunpack.c.h.b16 %v1045
        %v1104 = vunpack.c.l.b16 %v1046
        %v1105 = vunpack.c.h.b16 %v1046
        %v1106 = vunpack.c.l.b16 %v1047
        %v1107 = vunpack.c.h.b16 %v1047
        %v1108 = vpack.c.b16 %v1078, %v1076
        %v1109 = vpack.c.b16 %v1079, %v1077
        %v1110 = vpack.c.b16 %v1082, %v1080
        %v1111 = vpack.c.b16 %v1083, %v1081
        %v1112 = vpack.c.b16 %v1086, %v1084
        %v1113 = vpack.c.b16 %v1087, %v1085
        %v1114 = vpack.c.b16 %v1090, %v1088
        %v1115 = vpack.c.b16 %v1091, %v1089
        %v1116 = vpack.c.b16 %v1094, %v1092
        %v1117 = vpack.c.b16 %v1095, %v1093
        %v1118 = vpack.c.b16 %v1098, %v1096
        %v1119 = vpack.c.b16 %v1099, %v1097
        %v1120 = vpack.c.b16 %v1102, %v1100
        %v1121 = vpack.c.b16 %v1103, %v1101
        %v1122 = vpack.c.b16 %v1106, %v1104
        %v1123 = vpack.c.b16 %v1107, %v1105
        %1140 = vmatprep.subr.bf16.mxu0 %v1123
        %1141 = vmatpush1.bf16.msra.mxu0 %v1122
        %1142 = vmatprep.subr.bf16.mxu0 %v1121
        %1143 = vmatpush1.bf16.msra.mxu0 %v1120
        %1144 = vmatprep.subr.bf16.mxu0 %v1119
        %1145 = vmatpush1.bf16.msra.mxu0 %v1118
        %1146 = vmatprep.subr.bf16.mxu0 %v1117
        %1147 = vmatpush1.bf16.msra.mxu0 %v1116
        %1148 = vmatprep.subr.bf16.mxu0 %v1115
        %1149 = vmatpush1.bf16.msra.mxu0 %v1114
        %1150 = vmatprep.subr.bf16.mxu0 %v1113
        %1151 = vmatpush1.bf16.msra.mxu0 %v1112
        %1152 = vmatprep.subr.bf16.mxu0 %v1111
        %1153 = vmatpush1.bf16.msra.mxu0 %v1110
        %1154 = vmatprep.subr.bf16.mxu0 %v1109
        %1155 = vmatpush1.bf16.msra.mxu0 %v1108
        %1156 = vmatprep.subr.bf16.mxu0 0
        %1157 = vmatpush2.bf16.msra.mxu0 0
        %1158 = vmatprep.subr.bf16.mxu0 0
        %1159 = vmatpush2.bf16.msra.mxu0 0
        %1160 = vmatprep.subr.bf16.mxu0 0
        %1161 = vmatpush2.bf16.msra.mxu0 0
        %1162 = vmatprep.subr.bf16.mxu0 0
        %1163 = vmatpush2.bf16.msra.mxu0 0
        %1164 = vmatprep.subr.bf16.mxu0 0
        %1165 = vmatpush2.bf16.msra.mxu0 0
        %1166 = vmatprep.subr.bf16.mxu0 0
        %1167 = vmatpush2.bf16.msra.mxu0 0
        %1168 = vmatprep.subr.bf16.mxu0 0
        %1169 = vmatpush2.bf16.msra.mxu0 0
        %1170 = vmatprep.subr.bf16.mxu0 0
        %1171 = vmatpush2.bf16.msra.mxu0 0
        %1172 = vmatprep.mubr.bf16.mxu0 0
        %1173 = vmatmul.mubr.bf16.gmra.mxu0 %v1031
        %v1174 = vpop.f32.mrf.mxu0
        %v1175 = vadd.f32 %v1053, %v1174
        %v1176 = vpop.f32.mrf.mxu0
        %v1177 = vadd.f32 %v1057, %v1176
        %v1178 = vpop.f32.mrf.mxu0
        %v1179 = vpop.f32.mrf.mxu0
        %1180 = vdwg.mxu0
        %v1181 = vxor.u32 %v1175, 2147483648
        %v1182 = vxor.u32 %v1177, 2147483648
        %v1183 = vmul.f32 %v1181, 1.442695
        %v1184 = vpow.pop %v1183
        %v1185 = vmul.f32 %v1182, 1.442695
        %v1186 = vpow.pop %v1185
        %v1187 = vadd.f32 %v1184, 1.0
        %v1188 = vadd.f32 %v1186, 1.0
        %v1189 = vrcp.pop %v1187
        %v1190 = vmul.f32 1.0, %v1189
        %v1191 = vrcp.pop %v1188
        %v1192 = vmul.f32 1.0, %v1191
        %v1193 = vld [vmem:[#allocation2] sm:$0xff]
        %v1194 = vld [vmem:[#allocation2 + $0x8] sm:$0xff]
        %v1195 = vld [vmem:[#allocation2 + $0x10] sm:$0xff]
        %v1196 = vld [vmem:[#allocation2 + $0x18] sm:$0xff]
        %v1197 = vld [vmem:[#allocation2 + $0x20] sm:$0xff]
        %v1198 = vld [vmem:[#allocation2 + $0x28] sm:$0xff]
        %v1199 = vld [vmem:[#allocation2 + $0x30] sm:$0xff]
        %v1200 = vld [vmem:[#allocation2 + $0x38] sm:$0xff]
        %v1201 = vld [vmem:[#allocation2 + $0x40] sm:$0xff]
        %v1202 = vld [vmem:[#allocation2 + $0x48] sm:$0xff]
        %v1203 = vld [vmem:[#allocation2 + $0x50] sm:$0xff]
        %v1204 = vld [vmem:[#allocation2 + $0x58] sm:$0xff]
        %v1205 = vld [vmem:[#allocation2 + $0x60] sm:$0xff]
        %v1206 = vld [vmem:[#allocation2 + $0x68] sm:$0xff]
        %v1207 = vld [vmem:[#allocation2 + $0x70] sm:$0xff]
        %v1208 = vld [vmem:[#allocation2 + $0x78] sm:$0xff]
        %v1210 = vcombine.high %v1175, %v1175
        %v1212 = vunpack.c.l.s4 1966171168
        %v1213 = vunpack.c.0.s8 %v1212
        %v1214 = vlaneseq
        %v1215 = vshrl.u32 %v1214, 7
        %v1216 = vsub.s32 %v1213, %v1215
        %v1217 = vrot.slane %v1175, %v1216
        %v1219 = vunpack.c.l.s4 1966171168
        %v1220 = vunpack.c.0.s8 %v1219
        %v1221 = vlaneseq
        %v1222 = vshrl.u32 %v1221, 7
        %v1223 = vsub.s32 %v1220, %v1222
        %v1224 = vrot.slane %v1210, %v1223
        %v1225 = vcombine.high %v1217, %v1217
        %v1226 = vcombine.high %v1224, %v1224
        %v1228 = vunpack.c.l.s4 1966171168
        %v1229 = vunpack.c.0.s8 %v1228
        %v1230 = vlaneseq
        %v1231 = vshrl.u32 %v1230, 7
        %v1232 = vsub.s32 %v1229, %v1231
        %v1233 = vrot.slane %v1217, %v1232
        %v1235 = vunpack.c.l.s4 1966171168
        %v1236 = vunpack.c.0.s8 %v1235
        %v1237 = vlaneseq
        %v1238 = vshrl.u32 %v1237, 7
        %v1239 = vsub.s32 %v1236, %v1238
        %v1240 = vrot.slane %v1224, %v1239
        %v1242 = vunpack.c.l.s4 1966171168
        %v1243 = vunpack.c.0.s8 %v1242
        %v1244 = vlaneseq
        %v1245 = vshrl.u32 %v1244, 7
        %v1246 = vsub.s32 %v1243, %v1245
        %v1247 = vrot.slane %v1225, %v1246
        %v1249 = vunpack.c.l.s4 1966171168
        %v1250 = vunpack.c.0.s8 %v1249
        %v1251 = vlaneseq
        %v1252 = vshrl.u32 %v1251, 7
        %v1253 = vsub.s32 %v1250, %v1252
        %v1254 = vrot.slane %v1226, %v1253
        %v1255 = vcombine.high %v1233, %v1233
        %v1256 = vcombine.high %v1240, %v1240
        %v1257 = vcombine.high %v1247, %v1247
        %v1258 = vcombine.high %v1254, %v1254
        %v1259 = vlaneseq
        %v1260 = vshrl.u32 %v1259, 7
        %v1261 = vsub.s32 0, %v1260
        %v1262 = vrot.slane %v1233, %v1261
        %v1263 = vlaneseq
        %v1264 = vshrl.u32 %v1263, 7
        %v1265 = vsub.s32 0, %v1264
        %v1266 = vrot.slane %v1247, %v1265
        %v1267 = vlaneseq
        %v1268 = vshrl.u32 %v1267, 7
        %v1269 = vsub.s32 0, %v1268
        %v1270 = vrot.slane %v1255, %v1269
        %v1271 = vlaneseq
        %v1272 = vshrl.u32 %v1271, 7
        %v1273 = vsub.s32 0, %v1272
        %v1274 = vrot.slane %v1257, %v1273
        %v1275 = vlaneseq
        %v1276 = vshrl.u32 %v1275, 7
        %v1277 = vsub.s32 0, %v1276
        %v1278 = vrot.slane %v1240, %v1277
        %v1279 = vlaneseq
        %v1280 = vshrl.u32 %v1279, 7
        %v1281 = vsub.s32 0, %v1280
        %v1282 = vrot.slane %v1254, %v1281
        %v1283 = vlaneseq
        %v1284 = vshrl.u32 %v1283, 7
        %v1285 = vsub.s32 0, %v1284
        %v1286 = vrot.slane %v1256, %v1285
        %v1287 = vlaneseq
        %v1288 = vshrl.u32 %v1287, 7
        %v1289 = vsub.s32 0, %v1288
        %v1290 = vrot.slane %v1258, %v1289
        %v1299 = vadd.f32 %v1193, %v1262
        %v1300 = vadd.f32 %v1194, %v1262
        %v1301 = vadd.f32 %v1195, %v1266
        %v1302 = vadd.f32 %v1196, %v1266
        %v1303 = vadd.f32 %v1197, %v1270
        %v1304 = vadd.f32 %v1198, %v1270
        %v1305 = vadd.f32 %v1199, %v1274
        %v1306 = vadd.f32 %v1200, %v1274
        %v1307 = vadd.f32 %v1201, %v1278
        %v1308 = vadd.f32 %v1202, %v1278
        %v1309 = vadd.f32 %v1203, %v1282
        %v1310 = vadd.f32 %v1204, %v1282
        %v1311 = vadd.f32 %v1205, %v1286
        %v1312 = vadd.f32 %v1206, %v1286
        %v1313 = vadd.f32 %v1207, %v1290
        %v1314 = vadd.f32 %v1208, %v1290
        %v1315 = vmax.f32 %v1299, 0.0
        %v1316 = vmax.f32 %v1300, 0.0
        %v1317 = vmax.f32 %v1301, 0.0
        %v1318 = vmax.f32 %v1302, 0.0
        %v1319 = vmax.f32 %v1303, 0.0
        %v1320 = vmax.f32 %v1304, 0.0
        %v1321 = vmax.f32 %v1305, 0.0
        %v1322 = vmax.f32 %v1306, 0.0
        %v1323 = vmax.f32 %v1307, 0.0
        %v1324 = vmax.f32 %v1308, 0.0
        %v1325 = vmax.f32 %v1309, 0.0
        %v1326 = vmax.f32 %v1310, 0.0
        %v1327 = vmax.f32 %v1311, 0.0
        %v1328 = vmax.f32 %v1312, 0.0
        %v1329 = vmax.f32 %v1313, 0.0
        %v1330 = vmax.f32 %v1314, 0.0
        %v1331 = vld [vmem:[%s6] sm:$0x1]
        %v1333 = vlaneseq
        %v1334 = vshrl.u32 %v1333, 7
        %v1335 = vsub.s32 0, %v1334
        %v1336 = vrot.slane %v1331, %v1335
        %v1338 = vmul.f32 %v1315, %v1336
        %v1339 = vmul.f32 %v1316, %v1336
        %v1340 = vmul.f32 %v1317, %v1336
        %v1341 = vmul.f32 %v1318, %v1336
        %v1342 = vmul.f32 %v1319, %v1336
        %v1343 = vmul.f32 %v1320, %v1336
        %v1344 = vmul.f32 %v1321, %v1336
        %v1345 = vmul.f32 %v1322, %v1336
        %v1346 = vmul.f32 %v1323, %v1336
        %v1347 = vmul.f32 %v1324, %v1336
        %v1348 = vmul.f32 %v1325, %v1336
        %v1349 = vmul.f32 %v1326, %v1336
        %v1350 = vmul.f32 %v1327, %v1336
        %v1351 = vmul.f32 %v1328, %v1336
        %v1352 = vmul.f32 %v1329, %v1336
        %v1353 = vmul.f32 %v1330, %v1336
        %vm1354 = vcmask 523264
        %v1355 = vsel %vm1354, %v1338, 0.0
        %1356 = vadd.xlane.f32.xlu0 %v1355
        %v1357 = vpop.xlane.xlu0 %1356
        %v1358 = vsel %vm1354, %v1339, 0.0
        %1359 = vadd.xlane.f32.xlu0 %v1358
        %v1360 = vpop.xlane.xlu0 %1359
        %v1361 = vsel %vm1354, %v1340, 0.0
        %1362 = vadd.xlane.f32.xlu0 %v1361
        %v1363 = vpop.xlane.xlu0 %1362
        %v1364 = vsel %vm1354, %v1341, 0.0
        %1365 = vadd.xlane.f32.xlu0 %v1364
        %v1366 = vpop.xlane.xlu0 %1365
        %v1367 = vsel %vm1354, %v1342, 0.0
        %1368 = vadd.xlane.f32.xlu0 %v1367
        %v1369 = vpop.xlane.xlu0 %1368
        %v1370 = vsel %vm1354, %v1343, 0.0
        %1371 = vadd.xlane.f32.xlu0 %v1370
        %v1372 = vpop.xlane.xlu0 %1371
        %v1373 = vsel %vm1354, %v1344, 0.0
        %1374 = vadd.xlane.f32.xlu0 %v1373
        %v1375 = vpop.xlane.xlu0 %1374
        %v1376 = vsel %vm1354, %v1345, 0.0
        %1377 = vadd.xlane.f32.xlu0 %v1376
        %v1378 = vpop.xlane.xlu0 %1377
        %v1379 = vsel %vm1354, %v1346, 0.0
        %1380 = vadd.xlane.f32.xlu0 %v1379
        %v1381 = vpop.xlane.xlu0 %1380
        %v1382 = vsel %vm1354, %v1347, 0.0
        %1383 = vadd.xlane.f32.xlu0 %v1382
        %v1384 = vpop.xlane.xlu0 %1383
        %v1385 = vsel %vm1354, %v1348, 0.0
        %1386 = vadd.xlane.f32.xlu0 %v1385
        %v1387 = vpop.xlane.xlu0 %1386
        %v1388 = vsel %vm1354, %v1349, 0.0
        %1389 = vadd.xlane.f32.xlu0 %v1388
        %v1390 = vpop.xlane.xlu0 %1389
        %v1391 = vsel %vm1354, %v1350, 0.0
        %1392 = vadd.xlane.f32.xlu0 %v1391
        %v1393 = vpop.xlane.xlu0 %1392
        %v1394 = vsel %vm1354, %v1351, 0.0
        %1395 = vadd.xlane.f32.xlu0 %v1394
        %v1396 = vpop.xlane.xlu0 %1395
        %v1397 = vsel %vm1354, %v1352, 0.0
        %1398 = vadd.xlane.f32.xlu0 %v1397
        %v1399 = vpop.xlane.xlu0 %1398
        %v1400 = vsel %vm1354, %v1353, 0.0
        %1401 = vadd.xlane.f32.xlu0 %v1400
        %v1402 = vpop.xlane.xlu0 %1401
        %v1403 = vld [vmem:[#allocation3] sm:$0x1]
        %v1405 = vlaneseq
        %v1406 = vshrl.u32 %v1405, 7
        %v1407 = vsub.s32 0, %v1406
        %v1408 = vrot.slane %v1403, %v1407
        %1409 = vset.pattern.permute.xlu0 0
        %1410 = vperm.xlu0 %1409, %v1408
        %v1411 = vpop.permute.xlu0 %1410
        %v1413 = vadd.f32 %v1357, %v1411
        %v1414 = vadd.f32 %v1360, %v1411
        %v1415 = vadd.f32 %v1363, %v1411
        %v1416 = vadd.f32 %v1366, %v1411
        %v1417 = vadd.f32 %v1369, %v1411
        %v1418 = vadd.f32 %v1372, %v1411
        %v1419 = vadd.f32 %v1375, %v1411
        %v1420 = vadd.f32 %v1378, %v1411
        %v1421 = vadd.f32 %v1381, %v1411
        %v1422 = vadd.f32 %v1384, %v1411
        %v1423 = vadd.f32 %v1387, %v1411
        %v1424 = vadd.f32 %v1390, %v1411
        %v1425 = vadd.f32 %v1393, %v1411
        %v1426 = vadd.f32 %v1396, %v1411
        %v1427 = vadd.f32 %v1399, %v1411
        %v1428 = vadd.f32 %v1402, %v1411
        %v1445 = vlaneseq
        %v1446 = vand.u32 %v1445, 127
        %v1447 = vlaneseq
        %v1448 = vshrl.u32 %v1447, 7
        %v1449 = vsub.s32 %v1446, %v1448
        %v1450 = vrot.slane %v1413, %v1449
        %v1451 = vadd.s32 %v1446, 4294967288
        %v1452 = vlaneseq
        %v1453 = vshrl.u32 %v1452, 7
        %v1454 = vsub.s32 %v1451, %v1453
        %v1455 = vrot.slane %v1414, %v1454
        %vm1456 = vcmask 130112
        %v1457 = vsel %vm1456, %v1455, %v1450
        %v1458 = vlaneseq
        %v1459 = vshrl.u32 %v1458, 7
        %v1460 = vsub.s32 %v1446, %v1459
        %v1461 = vrot.slane %v1415, %v1460
        %v1462 = vlaneseq
        %v1463 = vshrl.u32 %v1462, 7
        %v1464 = vsub.s32 %v1451, %v1463
        %v1465 = vrot.slane %v1416, %v1464
        %v1466 = vsel %vm1456, %v1465, %v1461
        %v1467 = vlaneseq
        %v1468 = vshrl.u32 %v1467, 7
        %v1469 = vsub.s32 %v1446, %v1468
        %v1470 = vrot.slane %v1417, %v1469
        %v1471 = vlaneseq
        %v1472 = vshrl.u32 %v1471, 7
        %v1473 = vsub.s32 %v1451, %v1472
        %v1474 = vrot.slane %v1418, %v1473
        %v1475 = vsel %vm1456, %v1474, %v1470
        %v1476 = vlaneseq
        %v1477 = vshrl.u32 %v1476, 7
        %v1478 = vsub.s32 %v1446, %v1477
        %v1479 = vrot.slane %v1419, %v1478
        %v1480 = vlaneseq
        %v1481 = vshrl.u32 %v1480, 7
        %v1482 = vsub.s32 %v1451, %v1481
        %v1483 = vrot.slane %v1420, %v1482
        %v1484 = vsel %vm1456, %v1483, %v1479
        %v1485 = vlaneseq
        %v1486 = vshrl.u32 %v1485, 7
        %v1487 = vsub.s32 %v1446, %v1486
        %v1488 = vrot.slane %v1421, %v1487
        %v1489 = vlaneseq
        %v1490 = vshrl.u32 %v1489, 7
        %v1491 = vsub.s32 %v1451, %v1490
        %v1492 = vrot.slane %v1422, %v1491
        %v1493 = vsel %vm1456, %v1492, %v1488
        %v1494 = vlaneseq
        %v1495 = vshrl.u32 %v1494, 7
        %v1496 = vsub.s32 %v1446, %v1495
        %v1497 = vrot.slane %v1423, %v1496
        %v1498 = vlaneseq
        %v1499 = vshrl.u32 %v1498, 7
        %v1500 = vsub.s32 %v1451, %v1499
        %v1501 = vrot.slane %v1424, %v1500
        %v1502 = vsel %vm1456, %v1501, %v1497
        %v1503 = vlaneseq
        %v1504 = vshrl.u32 %v1503, 7
        %v1505 = vsub.s32 %v1446, %v1504
        %v1506 = vrot.slane %v1425, %v1505
        %v1507 = vlaneseq
        %v1508 = vshrl.u32 %v1507, 7
        %v1509 = vsub.s32 %v1451, %v1508
        %v1510 = vrot.slane %v1426, %v1509
        %v1511 = vsel %vm1456, %v1510, %v1506
        %v1512 = vlaneseq
        %v1513 = vshrl.u32 %v1512, 7
        %v1514 = vsub.s32 %v1446, %v1513
        %v1515 = vrot.slane %v1427, %v1514
        %v1516 = vlaneseq
        %v1517 = vshrl.u32 %v1516, 7
        %v1518 = vsub.s32 %v1451, %v1517
        %v1519 = vrot.slane %v1428, %v1518
        %v1520 = vsel %vm1456, %v1519, %v1515
        %vm1521 = vcmask 1041409
        %v1522 = vsel %vm1521, %v1466, %v1457
        %vm1523 = vcmask 1042434
        %v1524 = vsel %vm1523, %v1475, %v1522
        %vm1525 = vcmask 1043459
        %v1526 = vsel %vm1525, %v1484, %v1524
        %vm1527 = vcmask 1044484
        %v1528 = vsel %vm1527, %v1493, %v1526
        %vm1529 = vcmask 1045509
        %v1530 = vsel %vm1529, %v1502, %v1528
        %vm1531 = vcmask 1046534
        %v1532 = vsel %vm1531, %v1511, %v1530
        %vm1533 = vcmask 1047559
        %v1534 = vsel %vm1533, %v1520, %v1532
        %vm1536 = vcmask 130048
        %v1537 = vsel %vm1536, %v1534, -inf
        %1538 = vmax.xlane.f32.xlu0 %v1537
        %v1539 = vpop.xlane.xlu0 %1538
        %v1541 = vlaneseq
        %v1542 = vshrl.u32 %v1541, 7
        %v1543 = vsub.s32 0, %v1542
        %v1544 = vrot.slane %v1539, %v1543
        %v1545 = vlaneseq
        %v1546 = vshrl.u32 %v1545, 7
        %v1547 = vsub.s32 1, %v1546
        %v1548 = vrot.slane %v1539, %v1547
        %v1549 = vlaneseq
        %v1550 = vshrl.u32 %v1549, 7
        %v1551 = vsub.s32 2, %v1550
        %v1552 = vrot.slane %v1539, %v1551
        %v1553 = vlaneseq
        %v1554 = vshrl.u32 %v1553, 7
        %v1555 = vsub.s32 3, %v1554
        %v1556 = vrot.slane %v1539, %v1555
        %v1557 = vlaneseq
        %v1558 = vshrl.u32 %v1557, 7
        %v1559 = vsub.s32 4, %v1558
        %v1560 = vrot.slane %v1539, %v1559
        %v1561 = vlaneseq
        %v1562 = vshrl.u32 %v1561, 7
        %v1563 = vsub.s32 5, %v1562
        %v1564 = vrot.slane %v1539, %v1563
        %v1565 = vlaneseq
        %v1566 = vshrl.u32 %v1565, 7
        %v1567 = vsub.s32 6, %v1566
        %v1568 = vrot.slane %v1539, %v1567
        %v1569 = vlaneseq
        %v1570 = vshrl.u32 %v1569, 7
        %v1571 = vsub.s32 7, %v1570
        %v1572 = vrot.slane %v1539, %v1571
        %v1581 = vsub.f32 %v1413, %v1544
        %v1582 = vsub.f32 %v1414, %v1544
        %v1583 = vsub.f32 %v1415, %v1548
        %v1584 = vsub.f32 %v1416, %v1548
        %v1585 = vsub.f32 %v1417, %v1552
        %v1586 = vsub.f32 %v1418, %v1552
        %v1587 = vsub.f32 %v1419, %v1556
        %v1588 = vsub.f32 %v1420, %v1556
        %v1589 = vsub.f32 %v1421, %v1560
        %v1590 = vsub.f32 %v1422, %v1560
        %v1591 = vsub.f32 %v1423, %v1564
        %v1592 = vsub.f32 %v1424, %v1564
        %v1593 = vsub.f32 %v1425, %v1568
        %v1594 = vsub.f32 %v1426, %v1568
        %v1595 = vsub.f32 %v1427, %v1572
        %v1596 = vsub.f32 %v1428, %v1572
        %v1597 = vmul.f32 %v1581, 1.442695
        %v1598 = vpow.pop %v1597
        %v1599 = vmul.f32 %v1582, 1.442695
        %v1600 = vpow.pop %v1599
        %v1601 = vmul.f32 %v1583, 1.442695
        %v1602 = vpow.pop %v1601
        %v1603 = vmul.f32 %v1584, 1.442695
        %v1604 = vpow.pop %v1603
        %v1605 = vmul.f32 %v1585, 1.442695
        %v1606 = vpow.pop %v1605
        %v1607 = vmul.f32 %v1586, 1.442695
        %v1608 = vpow.pop %v1607
        %v1609 = vmul.f32 %v1587, 1.442695
        %v1610 = vpow.pop %v1609
        %v1611 = vmul.f32 %v1588, 1.442695
        %v1612 = vpow.pop %v1611
        %v1613 = vmul.f32 %v1589, 1.442695
        %v1614 = vpow.pop %v1613
        %v1615 = vmul.f32 %v1590, 1.442695
        %v1616 = vpow.pop %v1615
        %v1617 = vmul.f32 %v1591, 1.442695
        %v1618 = vpow.pop %v1617
        %v1619 = vmul.f32 %v1592, 1.442695
        %v1620 = vpow.pop %v1619
        %v1621 = vmul.f32 %v1593, 1.442695
        %v1622 = vpow.pop %v1621
        %v1623 = vmul.f32 %v1594, 1.442695
        %v1624 = vpow.pop %v1623
        %v1625 = vmul.f32 %v1595, 1.442695
        %v1626 = vpow.pop %v1625
        %v1627 = vmul.f32 %v1596, 1.442695
        %v1628 = vpow.pop %v1627
        %1645 = vset.pattern.permute.xlu0 0
        %1646 = vperm.xlu0 %1645, %v1598
        %v1647 = vpop.permute.xlu0 %1646
        %1648 = vset.pattern.permute.xlu0 0
        %1649 = vperm.xlu0 %1648, %v1600
        %v1650 = vpop.permute.xlu0 %1649
        %1651 = vset.pattern.permute.xlu0 0
        %1652 = vperm.xlu0 %1651, %v1602
        %v1653 = vpop.permute.xlu0 %1652
        %1654 = vset.pattern.permute.xlu0 0
        %1655 = vperm.xlu0 %1654, %v1604
        %v1656 = vpop.permute.xlu0 %1655
        %1657 = vset.pattern.permute.xlu0 0
        %1658 = vperm.xlu0 %1657, %v1606
        %v1659 = vpop.permute.xlu0 %1658
        %1660 = vset.pattern.permute.xlu0 0
        %1661 = vperm.xlu0 %1660, %v1608
        %v1662 = vpop.permute.xlu0 %1661
        %1663 = vset.pattern.permute.xlu0 0
        %1664 = vperm.xlu0 %1663, %v1610
        %v1665 = vpop.permute.xlu0 %1664
        %1666 = vset.pattern.permute.xlu0 0
        %1667 = vperm.xlu0 %1666, %v1612
        %v1668 = vpop.permute.xlu0 %1667
        %1669 = vset.pattern.permute.xlu0 0
        %1670 = vperm.xlu0 %1669, %v1614
        %v1671 = vpop.permute.xlu0 %1670
        %1672 = vset.pattern.permute.xlu0 0
        %1673 = vperm.xlu0 %1672, %v1616
        %v1674 = vpop.permute.xlu0 %1673
        %1675 = vset.pattern.permute.xlu0 0
        %1676 = vperm.xlu0 %1675, %v1618
        %v1677 = vpop.permute.xlu0 %1676
        %1678 = vset.pattern.permute.xlu0 0
        %1679 = vperm.xlu0 %1678, %v1620
        %v1680 = vpop.permute.xlu0 %1679
        %1681 = vset.pattern.permute.xlu0 0
        %1682 = vperm.xlu0 %1681, %v1622
        %v1683 = vpop.permute.xlu0 %1682
        %1684 = vset.pattern.permute.xlu0 0
        %1685 = vperm.xlu0 %1684, %v1624
        %v1686 = vpop.permute.xlu0 %1685
        %1687 = vset.pattern.permute.xlu0 0
        %1688 = vperm.xlu0 %1687, %v1626
        %v1689 = vpop.permute.xlu0 %1688
        %1690 = vset.pattern.permute.xlu0 0
        %1691 = vperm.xlu0 %1690, %v1628
        %v1692 = vpop.permute.xlu0 %1691
        %v1693 = vlaneseq
        %v1694 = vshrl.u32 %v1693, 7
        %v1695 = vsub.s32 %v1446, %v1694
        %v1696 = vrot.slane %v1647, %v1695
        %v1697 = vlaneseq
        %v1698 = vshrl.u32 %v1697, 7
        %v1699 = vsub.s32 %v1451, %v1698
        %v1700 = vrot.slane %v1650, %v1699
        %v1701 = vsel %vm1456, %v1700, %v1696
        %v1702 = vlaneseq
        %v1703 = vshrl.u32 %v1702, 7
        %v1704 = vsub.s32 %v1446, %v1703
        %v1705 = vrot.slane %v1653, %v1704
        %v1706 = vlaneseq
        %v1707 = vshrl.u32 %v1706, 7
        %v1708 = vsub.s32 %v1451, %v1707
        %v1709 = vrot.slane %v1656, %v1708
        %v1710 = vsel %vm1456, %v1709, %v1705
        %v1711 = vlaneseq
        %v1712 = vshrl.u32 %v1711, 7
        %v1713 = vsub.s32 %v1446, %v1712
        %v1714 = vrot.slane %v1659, %v1713
        %v1715 = vlaneseq
        %v1716 = vshrl.u32 %v1715, 7
        %v1717 = vsub.s32 %v1451, %v1716
        %v1718 = vrot.slane %v1662, %v1717
        %v1719 = vsel %vm1456, %v1718, %v1714
        %v1720 = vlaneseq
        %v1721 = vshrl.u32 %v1720, 7
        %v1722 = vsub.s32 %v1446, %v1721
        %v1723 = vrot.slane %v1665, %v1722
        %v1724 = vlaneseq
        %v1725 = vshrl.u32 %v1724, 7
        %v1726 = vsub.s32 %v1451, %v1725
        %v1727 = vrot.slane %v1668, %v1726
        %v1728 = vsel %vm1456, %v1727, %v1723
        %v1729 = vlaneseq
        %v1730 = vshrl.u32 %v1729, 7
        %v1731 = vsub.s32 %v1446, %v1730
        %v1732 = vrot.slane %v1671, %v1731
        %v1733 = vlaneseq
        %v1734 = vshrl.u32 %v1733, 7
        %v1735 = vsub.s32 %v1451, %v1734
        %v1736 = vrot.slane %v1674, %v1735
        %v1737 = vsel %vm1456, %v1736, %v1732
        %v1738 = vlaneseq
        %v1739 = vshrl.u32 %v1738, 7
        %v1740 = vsub.s32 %v1446, %v1739
        %v1741 = vrot.slane %v1677, %v1740
        %v1742 = vlaneseq
        %v1743 = vshrl.u32 %v1742, 7
        %v1744 = vsub.s32 %v1451, %v1743
        %v1745 = vrot.slane %v1680, %v1744
        %v1746 = vsel %vm1456, %v1745, %v1741
        %v1747 = vlaneseq
        %v1748 = vshrl.u32 %v1747, 7
        %v1749 = vsub.s32 %v1446, %v1748
        %v1750 = vrot.slane %v1683, %v1749
        %v1751 = vlaneseq
        %v1752 = vshrl.u32 %v1751, 7
        %v1753 = vsub.s32 %v1451, %v1752
        %v1754 = vrot.slane %v1686, %v1753
        %v1755 = vsel %vm1456, %v1754, %v1750
        %v1756 = vlaneseq
        %v1757 = vshrl.u32 %v1756, 7
        %v1758 = vsub.s32 %v1446, %v1757
        %v1759 = vrot.slane %v1689, %v1758
        %v1760 = vlaneseq
        %v1761 = vshrl.u32 %v1760, 7
        %v1762 = vsub.s32 %v1451, %v1761
        %v1763 = vrot.slane %v1692, %v1762
        %v1764 = vsel %vm1456, %v1763, %v1759
        %v1765 = vsel %vm1521, %v1710, %v1701
        %v1766 = vsel %vm1523, %v1719, %v1765
        %v1767 = vsel %vm1525, %v1728, %v1766
        %v1768 = vsel %vm1527, %v1737, %v1767
        %v1769 = vsel %vm1529, %v1746, %v1768
        %v1770 = vsel %vm1531, %v1755, %v1769
        %v1771 = vsel %vm1533, %v1764, %v1770
        %v1773 = vsel %vm1536, %v1771, 0.0
        %1774 = vadd.xlane.f32.xlu0 %v1773
        %v1775 = vpop.xlane.xlu0 %1774
        %v1776 = vrcp.pop %v1775
        %v1778 = vlaneseq
        %v1779 = vshrl.u32 %v1778, 7
        %v1780 = vsub.s32 0, %v1779
        %v1781 = vrot.slane %v1776, %v1780
        %v1782 = vlaneseq
        %v1783 = vshrl.u32 %v1782, 7
        %v1784 = vsub.s32 1, %v1783
        %v1785 = vrot.slane %v1776, %v1784
        %v1786 = vlaneseq
        %v1787 = vshrl.u32 %v1786, 7
        %v1788 = vsub.s32 2, %v1787
        %v1789 = vrot.slane %v1776, %v1788
        %v1790 = vlaneseq
        %v1791 = vshrl.u32 %v1790, 7
        %v1792 = vsub.s32 3, %v1791
        %v1793 = vrot.slane %v1776, %v1792
        %v1794 = vlaneseq
        %v1795 = vshrl.u32 %v1794, 7
        %v1796 = vsub.s32 4, %v1795
        %v1797 = vrot.slane %v1776, %v1796
        %v1798 = vlaneseq
        %v1799 = vshrl.u32 %v1798, 7
        %v1800 = vsub.s32 5, %v1799
        %v1801 = vrot.slane %v1776, %v1800
        %v1802 = vlaneseq
        %v1803 = vshrl.u32 %v1802, 7
        %v1804 = vsub.s32 6, %v1803
        %v1805 = vrot.slane %v1776, %v1804
        %v1806 = vlaneseq
        %v1807 = vshrl.u32 %v1806, 7
        %v1808 = vsub.s32 7, %v1807
        %v1809 = vrot.slane %v1776, %v1808
        %v1818 = vmul.f32 %v1598, %v1781
        %v1819 = vmul.f32 %v1600, %v1781
        %v1820 = vmul.f32 %v1602, %v1785
        %v1821 = vmul.f32 %v1604, %v1785
        %v1822 = vmul.f32 %v1606, %v1789
        %v1823 = vmul.f32 %v1608, %v1789
        %v1824 = vmul.f32 %v1610, %v1793
        %v1825 = vmul.f32 %v1612, %v1793
        %v1826 = vmul.f32 %v1614, %v1797
        %v1827 = vmul.f32 %v1616, %v1797
        %v1828 = vmul.f32 %v1618, %v1801
        %v1829 = vmul.f32 %v1620, %v1801
        %v1830 = vmul.f32 %v1622, %v1805
        %v1831 = vmul.f32 %v1624, %v1805
        %v1832 = vmul.f32 %v1626, %v1809
        %v1833 = vmul.f32 %v1628, %v1809
        %v1834 = vpack.c.bf16 %v1819, %v1818
        %v1835 = vpack.c.bf16 %v1821, %v1820
        %v1836 = vpack.c.bf16 %v1823, %v1822
        %v1837 = vpack.c.bf16 %v1825, %v1824
        %v1838 = vpack.c.bf16 %v1827, %v1826
        %v1839 = vpack.c.bf16 %v1829, %v1828
        %v1840 = vpack.c.bf16 %v1831, %v1830
        %v1841 = vpack.c.bf16 %v1833, %v1832
        %v1843 = vunpack.c.l.b16 %v1834
        %v1844 = vunpack.c.h.b16 %v1834
        %1845 = vset.pattern.permute.xlu0 0
        %1846 = vperm.xlu0 %1845, %v1843
        %v1847 = vpop.permute.xlu0 %1846
        %1848 = vset.pattern.permute.xlu0 0
        %1849 = vperm.xlu0 %1848, %v1844
        %v1850 = vpop.permute.xlu0 %1849
        %v1851 = vlaneseq
        %v1852 = vshrl.u32 %v1851, 7
        %v1853 = vsub.s32 %v1446, %v1852
        %v1854 = vrot.slane %v1847, %v1853
        %v1855 = vlaneseq
        %v1856 = vshrl.u32 %v1855, 7
        %v1857 = vsub.s32 %v1451, %v1856
        %v1858 = vrot.slane %v1850, %v1857
        %v1859 = vsel %vm1456, %v1858, %v1854
        %v1860 = vpack.c.b16 %v1859, %v1859
        %v1863 = vunpack.c.l.b16 %v504
        %v1864 = vunpack.c.l.b16 %v505
        %v1865 = vpack.c.b16 %v1864, %v1863
        %v1868 = vsel %vm1536, %v1860, 0
        %1870 = vmatprep.subr.bf16.mxu0 0
        %1871 = vmatpush1.bf16.msra.mxu0 0
        %1872 = vmatprep.subr.bf16.mxu0 0
        %1873 = vmatpush1.bf16.msra.mxu0 0
        %1874 = vmatprep.subr.bf16.mxu0 0
        %1875 = vmatpush1.bf16.msra.mxu0 0
        %1876 = vmatprep.subr.bf16.mxu0 0
        %1877 = vmatpush1.bf16.msra.mxu0 0
        %1878 = vmatprep.subr.bf16.mxu0 0
        %1879 = vmatpush1.bf16.msra.mxu0 0
        %1880 = vmatprep.subr.bf16.mxu0 0
        %1881 = vmatpush1.bf16.msra.mxu0 0
        %1882 = vmatprep.subr.bf16.mxu0 0
        %1883 = vmatpush1.bf16.msra.mxu0 0
        %1884 = vmatprep.subr.bf16.mxu0 0
        %1885 = vmatpush1.bf16.msra.mxu0 %v1865
        %1886 = vmatprep.subr.bf16.mxu0 0
        %1887 = vmatpush2.bf16.msra.mxu0 0
        %1888 = vmatprep.subr.bf16.mxu0 0
        %1889 = vmatpush2.bf16.msra.mxu0 0
        %1890 = vmatprep.subr.bf16.mxu0 0
        %1891 = vmatpush2.bf16.msra.mxu0 0
        %1892 = vmatprep.subr.bf16.mxu0 0
        %1893 = vmatpush2.bf16.msra.mxu0 0
        %1894 = vmatprep.subr.bf16.mxu0 0
        %1895 = vmatpush2.bf16.msra.mxu0 0
        %1896 = vmatprep.subr.bf16.mxu0 0
        %1897 = vmatpush2.bf16.msra.mxu0 0
        %1898 = vmatprep.subr.bf16.mxu0 0
        %1899 = vmatpush2.bf16.msra.mxu0 0
        %1900 = vmatprep.subr.bf16.mxu0 0
        %1901 = vmatpush2.bf16.msra.mxu0 0
        %1902 = vmatprep.mubr.bf16.mxu0 0
        %1903 = vmatmul.mubr.bf16.gmra.mxu0 %v1868
        %v1904 = vpop.f32.mrf.mxu0
        %v1905 = vadd.f32 0.0, %v1904
        %v1906 = vpop.f32.mrf.mxu0
        %v1907 = vpop.f32.mrf.mxu0
        %v1908 = vpop.f32.mrf.mxu0
        %1909 = vdwg.mxu0
        %v1911 = vunpack.c.l.b16 %v1835
        %v1912 = vunpack.c.h.b16 %v1835
        %1913 = vset.pattern.permute.xlu0 0
        %1914 = vperm.xlu0 %1913, %v1911
        %v1915 = vpop.permute.xlu0 %1914
        %1916 = vset.pattern.permute.xlu0 0
        %1917 = vperm.xlu0 %1916, %v1912
        %v1918 = vpop.permute.xlu0 %1917
        %v1919 = vlaneseq
        %v1920 = vshrl.u32 %v1919, 7
        %v1921 = vsub.s32 %v1446, %v1920
        %v1922 = vrot.slane %v1915, %v1921
        %v1923 = vlaneseq
        %v1924 = vshrl.u32 %v1923, 7
        %v1925 = vsub.s32 %v1451, %v1924
        %v1926 = vrot.slane %v1918, %v1925
        %v1927 = vsel %vm1456, %v1926, %v1922
        %v1928 = vpack.c.b16 %v1927, %v1927
        %v1931 = vunpack.c.l.b16 %v506
        %v1932 = vunpack.c.l.b16 %v507
        %v1933 = vpack.c.b16 %v1932, %v1931
        %v1936 = vsel %vm1536, %v1928, 0
        %1938 = vmatprep.subr.bf16.mxu0 0
        %1939 = vmatpush1.bf16.msra.mxu0 0
        %1940 = vmatprep.subr.bf16.mxu0 0
        %1941 = vmatpush1.bf16.msra.mxu0 0
        %1942 = vmatprep.subr.bf16.mxu0 0
        %1943 = vmatpush1.bf16.msra.mxu0 0
        %1944 = vmatprep.subr.bf16.mxu0 0
        %1945 = vmatpush1.bf16.msra.mxu0 0
        %1946 = vmatprep.subr.bf16.mxu0 0
        %1947 = vmatpush1.bf16.msra.mxu0 0
        %1948 = vmatprep.subr.bf16.mxu0 0
        %1949 = vmatpush1.bf16.msra.mxu0 0
        %1950 = vmatprep.subr.bf16.mxu0 0
        %1951 = vmatpush1.bf16.msra.mxu0 0
        %1952 = vmatprep.subr.bf16.mxu0 0
        %1953 = vmatpush1.bf16.msra.mxu0 %v1933
        %1954 = vmatprep.subr.bf16.mxu0 0
        %1955 = vmatpush2.bf16.msra.mxu0 0
        %1956 = vmatprep.subr.bf16.mxu0 0
        %1957 = vmatpush2.bf16.msra.mxu0 0
        %1958 = vmatprep.subr.bf16.mxu0 0
        %1959 = vmatpush2.bf16.msra.mxu0 0
        %1960 = vmatprep.subr.bf16.mxu0 0
        %1961 = vmatpush2.bf16.msra.mxu0 0
        %1962 = vmatprep.subr.bf16.mxu0 0
        %1963 = vmatpush2.bf16.msra.mxu0 0
        %1964 = vmatprep.subr.bf16.mxu0 0
        %1965 = vmatpush2.bf16.msra.mxu0 0
        %1966 = vmatprep.subr.bf16.mxu0 0
        %1967 = vmatpush2.bf16.msra.mxu0 0
        %1968 = vmatprep.subr.bf16.mxu0 0
        %1969 = vmatpush2.bf16.msra.mxu0 0
        %1970 = vmatprep.mubr.bf16.mxu0 0
        %1971 = vmatmul.mubr.bf16.gmra.mxu0 %v1936
        %v1972 = vpop.f32.mrf.mxu0
        %v1973 = vadd.f32 0.0, %v1972
        %v1974 = vpop.f32.mrf.mxu0
        %v1975 = vpop.f32.mrf.mxu0
        %v1976 = vpop.f32.mrf.mxu0
        %1977 = vdwg.mxu0
        %v1979 = vunpack.c.l.b16 %v1836
        %v1980 = vunpack.c.h.b16 %v1836
        %1981 = vset.pattern.permute.xlu0 0
        %1982 = vperm.xlu0 %1981, %v1979
        %v1983 = vpop.permute.xlu0 %1982
        %1984 = vset.pattern.permute.xlu0 0
        %1985 = vperm.xlu0 %1984, %v1980
        %v1986 = vpop.permute.xlu0 %1985
        %v1987 = vlaneseq
        %v1988 = vshrl.u32 %v1987, 7
        %v1989 = vsub.s32 %v1446, %v1988
        %v1990 = vrot.slane %v1983, %v1989
        %v1991 = vlaneseq
        %v1992 = vshrl.u32 %v1991, 7
        %v1993 = vsub.s32 %v1451, %v1992
        %v1994 = vrot.slane %v1986, %v1993
        %v1995 = vsel %vm1456, %v1994, %v1990
        %v1996 = vpack.c.b16 %v1995, %v1995
        %v1999 = vunpack.c.l.b16 %v508
        %v2000 = vunpack.c.l.b16 %v509
        %v2001 = vpack.c.b16 %v2000, %v1999
        %v2004 = vsel %vm1536, %v1996, 0
        %2006 = vmatprep.subr.bf16.mxu0 0
        %2007 = vmatpush1.bf16.msra.mxu0 0
        %2008 = vmatprep.subr.bf16.mxu0 0
        %2009 = vmatpush1.bf16.msra.mxu0 0
        %2010 = vmatprep.subr.bf16.mxu0 0
        %2011 = vmatpush1.bf16.msra.mxu0 0
        %2012 = vmatprep.subr.bf16.mxu0 0
        %2013 = vmatpush1.bf16.msra.mxu0 0
        %2014 = vmatprep.subr.bf16.mxu0 0
        %2015 = vmatpush1.bf16.msra.mxu0 0
        %2016 = vmatprep.subr.bf16.mxu0 0
        %2017 = vmatpush1.bf16.msra.mxu0 0
        %2018 = vmatprep.subr.bf16.mxu0 0
        %2019 = vmatpush1.bf16.msra.mxu0 0
        %2020 = vmatprep.subr.bf16.mxu0 0
        %2021 = vmatpush1.bf16.msra.mxu0 %v2001
        %2022 = vmatprep.subr.bf16.mxu0 0
        %2023 = vmatpush2.bf16.msra.mxu0 0
        %2024 = vmatprep.subr.bf16.mxu0 0
        %2025 = vmatpush2.bf16.msra.mxu0 0
        %2026 = vmatprep.subr.bf16.mxu0 0
        %2027 = vmatpush2.bf16.msra.mxu0 0
        %2028 = vmatprep.subr.bf16.mxu0 0
        %2029 = vmatpush2.bf16.msra.mxu0 0
        %2030 = vmatprep.subr.bf16.mxu0 0
        %2031 = vmatpush2.bf16.msra.mxu0 0
        %2032 = vmatprep.subr.bf16.mxu0 0
        %2033 = vmatpush2.bf16.msra.mxu0 0
        %2034 = vmatprep.subr.bf16.mxu0 0
        %2035 = vmatpush2.bf16.msra.mxu0 0
        %2036 = vmatprep.subr.bf16.mxu0 0
        %2037 = vmatpush2.bf16.msra.mxu0 0
        %2038 = vmatprep.mubr.bf16.mxu0 0
        %2039 = vmatmul.mubr.bf16.gmra.mxu0 %v2004
        %v2040 = vpop.f32.mrf.mxu0
        %v2041 = vadd.f32 0.0, %v2040
        %v2042 = vpop.f32.mrf.mxu0
        %v2043 = vpop.f32.mrf.mxu0
        %v2044 = vpop.f32.mrf.mxu0
        %2045 = vdwg.mxu0
        %v2047 = vunpack.c.l.b16 %v1837
        %v2048 = vunpack.c.h.b16 %v1837
        %2049 = vset.pattern.permute.xlu0 0
        %2050 = vperm.xlu0 %2049, %v2047
        %v2051 = vpop.permute.xlu0 %2050
        %2052 = vset.pattern.permute.xlu0 0
        %2053 = vperm.xlu0 %2052, %v2048
        %v2054 = vpop.permute.xlu0 %2053
        %v2055 = vlaneseq
        %v2056 = vshrl.u32 %v2055, 7
        %v2057 = vsub.s32 %v1446, %v2056
        %v2058 = vrot.slane %v2051, %v2057
        %v2059 = vlaneseq
        %v2060 = vshrl.u32 %v2059, 7
        %v2061 = vsub.s32 %v1451, %v2060
        %v2062 = vrot.slane %v2054, %v2061
        %v2063 = vsel %vm1456, %v2062, %v2058
        %v2064 = vpack.c.b16 %v2063, %v2063
        %v2067 = vunpack.c.l.b16 %v510
        %v2068 = vunpack.c.l.b16 %v511
        %v2069 = vpack.c.b16 %v2068, %v2067
        %v2072 = vsel %vm1536, %v2064, 0
        %2074 = vmatprep.subr.bf16.mxu0 0
        %2075 = vmatpush1.bf16.msra.mxu0 0
        %2076 = vmatprep.subr.bf16.mxu0 0
        %2077 = vmatpush1.bf16.msra.mxu0 0
        %2078 = vmatprep.subr.bf16.mxu0 0
        %2079 = vmatpush1.bf16.msra.mxu0 0
        %2080 = vmatprep.subr.bf16.mxu0 0
        %2081 = vmatpush1.bf16.msra.mxu0 0
        %2082 = vmatprep.subr.bf16.mxu0 0
        %2083 = vmatpush1.bf16.msra.mxu0 0
        %2084 = vmatprep.subr.bf16.mxu0 0
        %2085 = vmatpush1.bf16.msra.mxu0 0
        %2086 = vmatprep.subr.bf16.mxu0 0
        %2087 = vmatpush1.bf16.msra.mxu0 0
        %2088 = vmatprep.subr.bf16.mxu0 0
        %2089 = vmatpush1.bf16.msra.mxu0 %v2069
        %2090 = vmatprep.subr.bf16.mxu0 0
        %2091 = vmatpush2.bf16.msra.mxu0 0
        %2092 = vmatprep.subr.bf16.mxu0 0
        %2093 = vmatpush2.bf16.msra.mxu0 0
        %2094 = vmatprep.subr.bf16.mxu0 0
        %2095 = vmatpush2.bf16.msra.mxu0 0
        %2096 = vmatprep.subr.bf16.mxu0 0
        %2097 = vmatpush2.bf16.msra.mxu0 0
        %2098 = vmatprep.subr.bf16.mxu0 0
        %2099 = vmatpush2.bf16.msra.mxu0 0
        %2100 = vmatprep.subr.bf16.mxu0 0
        %2101 = vmatpush2.bf16.msra.mxu0 0
        %2102 = vmatprep.subr.bf16.mxu0 0
        %2103 = vmatpush2.bf16.msra.mxu0 0
        %2104 = vmatprep.subr.bf16.mxu0 0
        %2105 = vmatpush2.bf16.msra.mxu0 0
        %2106 = vmatprep.mubr.bf16.mxu0 0
        %2107 = vmatmul.mubr.bf16.gmra.mxu0 %v2072
        %v2108 = vpop.f32.mrf.mxu0
        %v2109 = vadd.f32 0.0, %v2108
        %v2110 = vpop.f32.mrf.mxu0
        %v2111 = vpop.f32.mrf.mxu0
        %v2112 = vpop.f32.mrf.mxu0
        %2113 = vdwg.mxu0
        %v2115 = vunpack.c.l.b16 %v1838
        %v2116 = vunpack.c.h.b16 %v1838
        %2117 = vset.pattern.permute.xlu0 0
        %2118 = vperm.xlu0 %2117, %v2115
        %v2119 = vpop.permute.xlu0 %2118
        %2120 = vset.pattern.permute.xlu0 0
        %2121 = vperm.xlu0 %2120, %v2116
        %v2122 = vpop.permute.xlu0 %2121
        %v2123 = vlaneseq
        %v2124 = vshrl.u32 %v2123, 7
        %v2125 = vsub.s32 %v1446, %v2124
        %v2126 = vrot.slane %v2119, %v2125
        %v2127 = vlaneseq
        %v2128 = vshrl.u32 %v2127, 7
        %v2129 = vsub.s32 %v1451, %v2128
        %v2130 = vrot.slane %v2122, %v2129
        %v2131 = vsel %vm1456, %v2130, %v2126
        %v2132 = vpack.c.b16 %v2131, %v2131
        %v2135 = vunpack.c.l.b16 %v512
        %v2136 = vunpack.c.l.b16 %v513
        %v2137 = vpack.c.b16 %v2136, %v2135
        %v2140 = vsel %vm1536, %v2132, 0
        %2142 = vmatprep.subr.bf16.mxu0 0
        %2143 = vmatpush1.bf16.msra.mxu0 0
        %2144 = vmatprep.subr.bf16.mxu0 0
        %2145 = vmatpush1.bf16.msra.mxu0 0
        %2146 = vmatprep.subr.bf16.mxu0 0
        %2147 = vmatpush1.bf16.msra.mxu0 0
        %2148 = vmatprep.subr.bf16.mxu0 0
        %2149 = vmatpush1.bf16.msra.mxu0 0
        %2150 = vmatprep.subr.bf16.mxu0 0
        %2151 = vmatpush1.bf16.msra.mxu0 0
        %2152 = vmatprep.subr.bf16.mxu0 0
        %2153 = vmatpush1.bf16.msra.mxu0 0
        %2154 = vmatprep.subr.bf16.mxu0 0
        %2155 = vmatpush1.bf16.msra.mxu0 0
        %2156 = vmatprep.subr.bf16.mxu0 0
        %2157 = vmatpush1.bf16.msra.mxu0 %v2137
        %2158 = vmatprep.subr.bf16.mxu0 0
        %2159 = vmatpush2.bf16.msra.mxu0 0
        %2160 = vmatprep.subr.bf16.mxu0 0
        %2161 = vmatpush2.bf16.msra.mxu0 0
        %2162 = vmatprep.subr.bf16.mxu0 0
        %2163 = vmatpush2.bf16.msra.mxu0 0
        %2164 = vmatprep.subr.bf16.mxu0 0
        %2165 = vmatpush2.bf16.msra.mxu0 0
        %2166 = vmatprep.subr.bf16.mxu0 0
        %2167 = vmatpush2.bf16.msra.mxu0 0
        %2168 = vmatprep.subr.bf16.mxu0 0
        %2169 = vmatpush2.bf16.msra.mxu0 0
        %2170 = vmatprep.subr.bf16.mxu0 0
        %2171 = vmatpush2.bf16.msra.mxu0 0
        %2172 = vmatprep.subr.bf16.mxu0 0
        %2173 = vmatpush2.bf16.msra.mxu0 0
        %2174 = vmatprep.mubr.bf16.mxu0 0
        %2175 = vmatmul.mubr.bf16.gmra.mxu0 %v2140
        %v2176 = vpop.f32.mrf.mxu0
        %v2177 = vadd.f32 0.0, %v2176
        %v2178 = vpop.f32.mrf.mxu0
        %v2179 = vpop.f32.mrf.mxu0
        %v2180 = vpop.f32.mrf.mxu0
        %2181 = vdwg.mxu0
        %v2183 = vunpack.c.l.b16 %v1839
        %v2184 = vunpack.c.h.b16 %v1839
        %2185 = vset.pattern.permute.xlu0 0
        %2186 = vperm.xlu0 %2185, %v2183
        %v2187 = vpop.permute.xlu0 %2186
        %2188 = vset.pattern.permute.xlu0 0
        %2189 = vperm.xlu0 %2188, %v2184
        %v2190 = vpop.permute.xlu0 %2189
        %v2191 = vlaneseq
        %v2192 = vshrl.u32 %v2191, 7
        %v2193 = vsub.s32 %v1446, %v2192
        %v2194 = vrot.slane %v2187, %v2193
        %v2195 = vlaneseq
        %v2196 = vshrl.u32 %v2195, 7
        %v2197 = vsub.s32 %v1451, %v2196
        %v2198 = vrot.slane %v2190, %v2197
        %v2199 = vsel %vm1456, %v2198, %v2194
        %v2200 = vpack.c.b16 %v2199, %v2199
        %v2203 = vunpack.c.l.b16 %v514
        %v2204 = vunpack.c.l.b16 %v515
        %v2205 = vpack.c.b16 %v2204, %v2203
        %v2208 = vsel %vm1536, %v2200, 0
        %2210 = vmatprep.subr.bf16.mxu0 0
        %2211 = vmatpush1.bf16.msra.mxu0 0
        %2212 = vmatprep.subr.bf16.mxu0 0
        %2213 = vmatpush1.bf16.msra.mxu0 0
        %2214 = vmatprep.subr.bf16.mxu0 0
        %2215 = vmatpush1.bf16.msra.mxu0 0
        %2216 = vmatprep.subr.bf16.mxu0 0
        %2217 = vmatpush1.bf16.msra.mxu0 0
        %2218 = vmatprep.subr.bf16.mxu0 0
        %2219 = vmatpush1.bf16.msra.mxu0 0
        %2220 = vmatprep.subr.bf16.mxu0 0
        %2221 = vmatpush1.bf16.msra.mxu0 0
        %2222 = vmatprep.subr.bf16.mxu0 0
        %2223 = vmatpush1.bf16.msra.mxu0 0
        %2224 = vmatprep.subr.bf16.mxu0 0
        %2225 = vmatpush1.bf16.msra.mxu0 %v2205
        %2226 = vmatprep.subr.bf16.mxu0 0
        %2227 = vmatpush2.bf16.msra.mxu0 0
        %2228 = vmatprep.subr.bf16.mxu0 0
        %2229 = vmatpush2.bf16.msra.mxu0 0
        %2230 = vmatprep.subr.bf16.mxu0 0
        %2231 = vmatpush2.bf16.msra.mxu0 0
        %2232 = vmatprep.subr.bf16.mxu0 0
        %2233 = vmatpush2.bf16.msra.mxu0 0
        %2234 = vmatprep.subr.bf16.mxu0 0
        %2235 = vmatpush2.bf16.msra.mxu0 0
        %2236 = vmatprep.subr.bf16.mxu0 0
        %2237 = vmatpush2.bf16.msra.mxu0 0
        %2238 = vmatprep.subr.bf16.mxu0 0
        %2239 = vmatpush2.bf16.msra.mxu0 0
        %2240 = vmatprep.subr.bf16.mxu0 0
        %2241 = vmatpush2.bf16.msra.mxu0 0
        %2242 = vmatprep.mubr.bf16.mxu0 0
        %2243 = vmatmul.mubr.bf16.gmra.mxu0 %v2208
        %v2244 = vpop.f32.mrf.mxu0
        %v2245 = vadd.f32 0.0, %v2244
        %v2246 = vpop.f32.mrf.mxu0
        %v2247 = vpop.f32.mrf.mxu0
        %v2248 = vpop.f32.mrf.mxu0
        %2249 = vdwg.mxu0
        %v2251 = vunpack.c.l.b16 %v1840
        %v2252 = vunpack.c.h.b16 %v1840
        %2253 = vset.pattern.permute.xlu0 0
        %2254 = vperm.xlu0 %2253, %v2251
        %v2255 = vpop.permute.xlu0 %2254
        %2256 = vset.pattern.permute.xlu0 0
        %2257 = vperm.xlu0 %2256, %v2252
        %v2258 = vpop.permute.xlu0 %2257
        %v2259 = vlaneseq
        %v2260 = vshrl.u32 %v2259, 7
        %v2261 = vsub.s32 %v1446, %v2260
        %v2262 = vrot.slane %v2255, %v2261
        %v2263 = vlaneseq
        %v2264 = vshrl.u32 %v2263, 7
        %v2265 = vsub.s32 %v1451, %v2264
        %v2266 = vrot.slane %v2258, %v2265
        %v2267 = vsel %vm1456, %v2266, %v2262
        %v2268 = vpack.c.b16 %v2267, %v2267
        %v2271 = vunpack.c.l.b16 %v516
        %v2272 = vunpack.c.l.b16 %v517
        %v2273 = vpack.c.b16 %v2272, %v2271
        %v2276 = vsel %vm1536, %v2268, 0
        %2278 = vmatprep.subr.bf16.mxu0 0
        %2279 = vmatpush1.bf16.msra.mxu0 0
        %2280 = vmatprep.subr.bf16.mxu0 0
        %2281 = vmatpush1.bf16.msra.mxu0 0
        %2282 = vmatprep.subr.bf16.mxu0 0
        %2283 = vmatpush1.bf16.msra.mxu0 0
        %2284 = vmatprep.subr.bf16.mxu0 0
        %2285 = vmatpush1.bf16.msra.mxu0 0
        %2286 = vmatprep.subr.bf16.mxu0 0
        %2287 = vmatpush1.bf16.msra.mxu0 0
        %2288 = vmatprep.subr.bf16.mxu0 0
        %2289 = vmatpush1.bf16.msra.mxu0 0
        %2290 = vmatprep.subr.bf16.mxu0 0
        %2291 = vmatpush1.bf16.msra.mxu0 0
        %2292 = vmatprep.subr.bf16.mxu0 0
        %2293 = vmatpush1.bf16.msra.mxu0 %v2273
        %2294 = vmatprep.subr.bf16.mxu0 0
        %2295 = vmatpush2.bf16.msra.mxu0 0
        %2296 = vmatprep.subr.bf16.mxu0 0
        %2297 = vmatpush2.bf16.msra.mxu0 0
        %2298 = vmatprep.subr.bf16.mxu0 0
        %2299 = vmatpush2.bf16.msra.mxu0 0
        %2300 = vmatprep.subr.bf16.mxu0 0
        %2301 = vmatpush2.bf16.msra.mxu0 0
        %2302 = vmatprep.subr.bf16.mxu0 0
        %2303 = vmatpush2.bf16.msra.mxu0 0
        %2304 = vmatprep.subr.bf16.mxu0 0
        %2305 = vmatpush2.bf16.msra.mxu0 0
        %2306 = vmatprep.subr.bf16.mxu0 0
        %2307 = vmatpush2.bf16.msra.mxu0 0
        %2308 = vmatprep.subr.bf16.mxu0 0
        %2309 = vmatpush2.bf16.msra.mxu0 0
        %2310 = vmatprep.mubr.bf16.mxu0 0
        %2311 = vmatmul.mubr.bf16.gmra.mxu0 %v2276
        %v2312 = vpop.f32.mrf.mxu0
        %v2313 = vadd.f32 0.0, %v2312
        %v2314 = vpop.f32.mrf.mxu0
        %v2315 = vpop.f32.mrf.mxu0
        %v2316 = vpop.f32.mrf.mxu0
        %2317 = vdwg.mxu0
        %v2319 = vunpack.c.l.b16 %v1841
        %v2320 = vunpack.c.h.b16 %v1841
        %2321 = vset.pattern.permute.xlu0 0
        %2322 = vperm.xlu0 %2321, %v2319
        %v2323 = vpop.permute.xlu0 %2322
        %2324 = vset.pattern.permute.xlu0 0
        %2325 = vperm.xlu0 %2324, %v2320
        %v2326 = vpop.permute.xlu0 %2325
        %v2327 = vlaneseq
        %v2328 = vshrl.u32 %v2327, 7
        %v2329 = vsub.s32 %v1446, %v2328
        %v2330 = vrot.slane %v2323, %v2329
        %v2331 = vlaneseq
        %v2332 = vshrl.u32 %v2331, 7
        %v2333 = vsub.s32 %v1451, %v2332
        %v2334 = vrot.slane %v2326, %v2333
        %v2335 = vsel %vm1456, %v2334, %v2330
        %v2336 = vpack.c.b16 %v2335, %v2335
        %v2339 = vunpack.c.l.b16 %v518
        %v2340 = vunpack.c.l.b16 %v519
        %v2341 = vpack.c.b16 %v2340, %v2339
        %v2344 = vsel %vm1536, %v2336, 0
        %2346 = vmatprep.subr.bf16.mxu0 0
        %2347 = vmatpush1.bf16.msra.mxu0 0
        %2348 = vmatprep.subr.bf16.mxu0 0
        %2349 = vmatpush1.bf16.msra.mxu0 0
        %2350 = vmatprep.subr.bf16.mxu0 0
        %2351 = vmatpush1.bf16.msra.mxu0 0
        %2352 = vmatprep.subr.bf16.mxu0 0
        %2353 = vmatpush1.bf16.msra.mxu0 0
        %2354 = vmatprep.subr.bf16.mxu0 0
        %2355 = vmatpush1.bf16.msra.mxu0 0
        %2356 = vmatprep.subr.bf16.mxu0 0
        %2357 = vmatpush1.bf16.msra.mxu0 0
        %2358 = vmatprep.subr.bf16.mxu0 0
        %2359 = vmatpush1.bf16.msra.mxu0 0
        %2360 = vmatprep.subr.bf16.mxu0 0
        %2361 = vmatpush1.bf16.msra.mxu0 %v2341
        %2362 = vmatprep.subr.bf16.mxu0 0
        %2363 = vmatpush2.bf16.msra.mxu0 0
        %2364 = vmatprep.subr.bf16.mxu0 0
        %2365 = vmatpush2.bf16.msra.mxu0 0
        %2366 = vmatprep.subr.bf16.mxu0 0
        %2367 = vmatpush2.bf16.msra.mxu0 0
        %2368 = vmatprep.subr.bf16.mxu0 0
        %2369 = vmatpush2.bf16.msra.mxu0 0
        %2370 = vmatprep.subr.bf16.mxu0 0
        %2371 = vmatpush2.bf16.msra.mxu0 0
        %2372 = vmatprep.subr.bf16.mxu0 0
        %2373 = vmatpush2.bf16.msra.mxu0 0
        %2374 = vmatprep.subr.bf16.mxu0 0
        %2375 = vmatpush2.bf16.msra.mxu0 0
        %2376 = vmatprep.subr.bf16.mxu0 0
        %2377 = vmatpush2.bf16.msra.mxu0 0
        %2378 = vmatprep.mubr.bf16.mxu0 0
        %2379 = vmatmul.mubr.bf16.gmra.mxu0 %v2344
        %v2380 = vpop.f32.mrf.mxu0
        %v2381 = vadd.f32 0.0, %v2380
        %v2382 = vpop.f32.mrf.mxu0
        %v2383 = vpop.f32.mrf.mxu0
        %v2384 = vpop.f32.mrf.mxu0
        %2385 = vdwg.mxu0
        %v2388 = vrot.slane %v1190, 1
        %v2389 = vrot.slane %v1192, 1
        %v2390 = vrot.slane %v1190, 2
        %v2391 = vrot.slane %v1192, 2
        %v2392 = vrot.slane %v1190, 3
        %v2393 = vrot.slane %v1192, 3
        %v2394 = vrot.slane %v1190, 4
        %v2395 = vrot.slane %v1192, 4
        %v2396 = vrot.slane %v1190, 5
        %v2397 = vrot.slane %v1192, 5
        %v2398 = vrot.slane %v1190, 6
        %v2399 = vrot.slane %v1192, 6
        %v2400 = vrot.slane %v1190, 7
        %v2401 = vrot.slane %v1192, 7
        %2402 = vrot.lane.b32.xlu0 %v1190, 64
        %v2403 = vpop.permute.xlu0 %2402
        %2404 = vrot.lane.b32.xlu0 %v1192, 64
        %v2405 = vpop.permute.xlu0 %2404
        %2406 = vrot.lane.b32.xlu0 %v2388, 64
        %v2407 = vpop.permute.xlu0 %2406
        %2408 = vrot.lane.b32.xlu0 %v2389, 64
        %v2409 = vpop.permute.xlu0 %2408
        %2410 = vrot.lane.b32.xlu0 %v2390, 64
        %v2411 = vpop.permute.xlu0 %2410
        %2412 = vrot.lane.b32.xlu0 %v2391, 64
        %v2413 = vpop.permute.xlu0 %2412
        %2414 = vrot.lane.b32.xlu0 %v2392, 64
        %v2415 = vpop.permute.xlu0 %2414
        %2416 = vrot.lane.b32.xlu0 %v2393, 64
        %v2417 = vpop.permute.xlu0 %2416
        %2418 = vrot.lane.b32.xlu0 %v2394, 64
        %v2419 = vpop.permute.xlu0 %2418
        %2420 = vrot.lane.b32.xlu0 %v2395, 64
        %v2421 = vpop.permute.xlu0 %2420
        %2422 = vrot.lane.b32.xlu0 %v2396, 64
        %v2423 = vpop.permute.xlu0 %2422
        %2424 = vrot.lane.b32.xlu0 %v2397, 64
        %v2425 = vpop.permute.xlu0 %2424
        %2426 = vrot.lane.b32.xlu0 %v2398, 64
        %v2427 = vpop.permute.xlu0 %2426
        %2428 = vrot.lane.b32.xlu0 %v2399, 64
        %v2429 = vpop.permute.xlu0 %2428
        %2430 = vrot.lane.b32.xlu0 %v2400, 64
        %v2431 = vpop.permute.xlu0 %2430
        %2432 = vrot.lane.b32.xlu0 %v2401, 64
        %v2433 = vpop.permute.xlu0 %2432
        %v2434 = vsel %vm1354, %v2403, %v2405
        %v2435 = vsel %vm1354, %v2407, %v2409
        %v2436 = vsel %vm1354, %v2411, %v2413
        %v2437 = vsel %vm1354, %v2415, %v2417
        %v2438 = vsel %vm1354, %v2419, %v2421
        %v2439 = vsel %vm1354, %v2423, %v2425
        %v2440 = vsel %vm1354, %v2427, %v2429
        %v2441 = vsel %vm1354, %v2431, %v2433
        %v2450 = vmul.f32 %v1905, %v2434
        %v2451 = vmul.f32 %v1973, %v2435
        %v2452 = vmul.f32 %v2041, %v2436
        %v2453 = vmul.f32 %v2109, %v2437
        %v2454 = vmul.f32 %v2177, %v2438
        %v2455 = vmul.f32 %v2245, %v2439
        %v2456 = vmul.f32 %v2313, %v2440
        %v2457 = vmul.f32 %v2381, %v2441
        %v2458 = vld [vmem:[%s502] sm:$0xf]
        %v2459 = vpack.c.bf16 %v2450, %v2450
        %v2460 = vpack.c.bf16 %v2451, %v2451
        %v2461 = vpack.c.bf16 %v2452, %v2452
        %v2462 = vpack.c.bf16 %v2453, %v2453
        %v2463 = vpack.c.bf16 %v2454, %v2454
        %v2464 = vpack.c.bf16 %v2455, %v2455
        %v2465 = vpack.c.bf16 %v2456, %v2456
        %v2466 = vpack.c.bf16 %v2457, %v2457
        %v2475 = vunpack.c.l.b16 %v2459
        %v2476 = vunpack.c.l.b16 %v2460
        %v2477 = vunpack.c.l.b16 %v2461
        %v2478 = vunpack.c.l.b16 %v2462
        %v2479 = vunpack.c.l.b16 %v2463
        %v2480 = vunpack.c.l.b16 %v2464
        %v2481 = vunpack.c.l.b16 %v2465
        %v2482 = vunpack.c.l.b16 %v2466
        %v2483 = vrot.slane %v2476, 7
        %v2484 = vsel %vm1521, %v2483, %v2475
        %v2485 = vrot.slane %v2477, 6
        %v2486 = vsel %vm1523, %v2485, %v2484
        %v2487 = vrot.slane %v2478, 5
        %v2488 = vsel %vm1525, %v2487, %v2486
        %v2489 = vrot.slane %v2479, 4
        %v2490 = vsel %vm1527, %v2489, %v2488
        %v2491 = vrot.slane %v2480, 3
        %v2492 = vsel %vm1529, %v2491, %v2490
        %v2493 = vrot.slane %v2481, 2
        %v2494 = vsel %vm1531, %v2493, %v2492
        %v2495 = vrot.slane %v2482, 1
        %v2496 = vsel %vm1533, %v2495, %v2494
        %v2497 = vpack.c.b16 %v2496, %v2496
        %2498 = vrot.lane.b32.xlu0 %v2497, 64
        %v2499 = vpop.permute.xlu0 %2498
        %2501 = vrot.lane.b32.xlu0 %v1031, 64
        %v2502 = vpop.permute.xlu0 %2501
        %v2505 = vsel %vm1354, %v2458, %v2499
        %v2508 = vsel %vm1354, %v2499, %v2502
        %v2510 = vld [vmem:[%s10] sm:$0xff]
        %v2511 = vld [vmem:[%s10 + $0x8] sm:$0xff]
        %v2512 = vld [vmem:[%s10 + $0x10] sm:$0xff]
        %v2513 = vld [vmem:[%s10 + $0x18] sm:$0xff]
        %v2514 = vld [vmem:[%s10 + $0x20] sm:$0xff]
        %v2515 = vld [vmem:[%s10 + $0x28] sm:$0xff]
        %v2516 = vld [vmem:[%s10 + $0x30] sm:$0xff]
        %v2517 = vld [vmem:[%s10 + $0x38] sm:$0xff]
        %v2518 = vld [vmem:[%s10 + $0x40] sm:$0xff]
        %v2519 = vld [vmem:[%s10 + $0x48] sm:$0xff]
        %v2520 = vld [vmem:[%s10 + $0x50] sm:$0xff]
        %v2521 = vld [vmem:[%s10 + $0x58] sm:$0xff]
        %v2522 = vld [vmem:[%s10 + $0x60] sm:$0xff]
        %v2523 = vld [vmem:[%s10 + $0x68] sm:$0xff]
        %v2524 = vld [vmem:[%s10 + $0x70] sm:$0xff]
        %v2525 = vld [vmem:[%s10 + $0x78] sm:$0xff]
        %v2526 = vld [vmem:[%s10 + $0x80] sm:$0xff]
        %v2527 = vld [vmem:[%s10 + $0x88] sm:$0xff]
        %v2528 = vld [vmem:[%s10 + $0x90] sm:$0xff]
        %v2529 = vld [vmem:[%s10 + $0x98] sm:$0xff]
        %v2530 = vld [vmem:[%s10 + $0xa0] sm:$0xff]
        %v2531 = vld [vmem:[%s10 + $0xa8] sm:$0xff]
        %v2532 = vld [vmem:[%s10 + $0xb0] sm:$0xff]
        %v2533 = vld [vmem:[%s10 + $0xb8] sm:$0xff]
        %v2534 = vld [vmem:[%s10 + $0xc0] sm:$0xff]
        %v2535 = vld [vmem:[%s10 + $0xc8] sm:$0xff]
        %v2536 = vld [vmem:[%s10 + $0xd0] sm:$0xff]
        %v2537 = vld [vmem:[%s10 + $0xd8] sm:$0xff]
        %v2538 = vld [vmem:[%s10 + $0xe0] sm:$0xff]
        %v2539 = vld [vmem:[%s10 + $0xe8] sm:$0xff]
        %v2540 = vld [vmem:[%s10 + $0xf0] sm:$0xff]
        %v2541 = vld [vmem:[%s10 + $0xf8] sm:$0xff]
        %v2542 = vld [vmem:[%s10 + $0x100] sm:$0xff]
        %v2543 = vld [vmem:[%s10 + $0x108] sm:$0xff]
        %v2544 = vld [vmem:[%s10 + $0x110] sm:$0xff]
        %v2545 = vld [vmem:[%s10 + $0x118] sm:$0xff]
        %v2546 = vld [vmem:[%s10 + $0x120] sm:$0xff]
        %v2547 = vld [vmem:[%s10 + $0x128] sm:$0xff]
        %v2548 = vld [vmem:[%s10 + $0x130] sm:$0xff]
        %v2549 = vld [vmem:[%s10 + $0x138] sm:$0xff]
        %v2550 = vld [vmem:[%s10 + $0x140] sm:$0xff]
        %v2551 = vld [vmem:[%s10 + $0x148] sm:$0xff]
        %v2552 = vld [vmem:[%s10 + $0x150] sm:$0xff]
        %v2553 = vld [vmem:[%s10 + $0x158] sm:$0xff]
        %v2554 = vld [vmem:[%s10 + $0x160] sm:$0xff]
        %v2555 = vld [vmem:[%s10 + $0x168] sm:$0xff]
        %v2556 = vld [vmem:[%s10 + $0x170] sm:$0xff]
        %v2557 = vld [vmem:[%s10 + $0x178] sm:$0xff]
        %v2558 = vld [vmem:[%s10 + $0x180] sm:$0xff]
        %v2559 = vld [vmem:[%s10 + $0x188] sm:$0xff]
        %v2560 = vld [vmem:[%s10 + $0x190] sm:$0xff]
        %v2561 = vld [vmem:[%s10 + $0x198] sm:$0xff]
        %v2562 = vld [vmem:[%s10 + $0x1a0] sm:$0xff]
        %v2563 = vld [vmem:[%s10 + $0x1a8] sm:$0xff]
        %v2564 = vld [vmem:[%s10 + $0x1b0] sm:$0xff]
        %v2565 = vld [vmem:[%s10 + $0x1b8] sm:$0xff]
        %v2566 = vld [vmem:[%s10 + $0x1c0] sm:$0xff]
        %v2567 = vld [vmem:[%s10 + $0x1c8] sm:$0xff]
        %v2568 = vld [vmem:[%s10 + $0x1d0] sm:$0xff]
        %v2569 = vld [vmem:[%s10 + $0x1d8] sm:$0xff]
        %v2570 = vld [vmem:[%s10 + $0x1e0] sm:$0xff]
        %v2571 = vld [vmem:[%s10 + $0x1e8] sm:$0xff]
        %v2572 = vld [vmem:[%s10 + $0x1f0] sm:$0xff]
        %v2573 = vld [vmem:[%s10 + $0x1f8] sm:$0xff]
        %v2574 = vld [vmem:[%s10 + $0x200] sm:$0xff]
        %v2575 = vld [vmem:[%s10 + $0x208] sm:$0xff]
        %v2576 = vld [vmem:[%s10 + $0x210] sm:$0xff]
        %v2577 = vld [vmem:[%s10 + $0x218] sm:$0xff]
        %v2578 = vld [vmem:[%s10 + $0x220] sm:$0xff]
        %v2579 = vld [vmem:[%s10 + $0x228] sm:$0xff]
        %v2580 = vld [vmem:[%s10 + $0x230] sm:$0xff]
        %v2581 = vld [vmem:[%s10 + $0x238] sm:$0xff]
        %v2582 = vld [vmem:[%s10 + $0x240] sm:$0xff]
        %v2583 = vld [vmem:[%s10 + $0x248] sm:$0xff]
        %v2584 = vld [vmem:[%s10 + $0x250] sm:$0xff]
        %v2585 = vld [vmem:[%s10 + $0x258] sm:$0xff]
        %v2586 = vld [vmem:[%s10 + $0x260] sm:$0xff]
        %v2587 = vld [vmem:[%s10 + $0x268] sm:$0xff]
        %v2588 = vld [vmem:[%s10 + $0x270] sm:$0xff]
        %v2589 = vld [vmem:[%s10 + $0x278] sm:$0xff]
        %v2590 = vld [vmem:[%s11] sm:$0xf]
        %v2592 = vlaneseq
        %v2593 = vshrl.u32 %v2592, 7
        %v2594 = vsub.s32 0, %v2593
        %v2595 = vrot.slane %v2590, %v2594
        %v2596 = vlaneseq
        %v2597 = vshrl.u32 %v2596, 7
        %v2598 = vsub.s32 1, %v2597
        %v2599 = vrot.slane %v2590, %v2598
        %v2600 = vlaneseq
        %v2601 = vshrl.u32 %v2600, 7
        %v2602 = vsub.s32 2, %v2601
        %v2603 = vrot.slane %v2590, %v2602
        %v2604 = vlaneseq
        %v2605 = vshrl.u32 %v2604, 7
        %v2606 = vsub.s32 3, %v2605
        %v2607 = vrot.slane %v2590, %v2606
        %v2692 = vunpack.c.l.b16 %v2510
        %v2693 = vunpack.c.h.b16 %v2510
        %v2694 = vunpack.c.l.b16 %v2511
        %v2695 = vunpack.c.h.b16 %v2511
        %v2696 = vunpack.c.l.b16 %v2512
        %v2697 = vunpack.c.h.b16 %v2512
        %v2698 = vunpack.c.l.b16 %v2513
        %v2699 = vunpack.c.h.b16 %v2513
        %v2700 = vunpack.c.l.b16 %v2514
        %v2701 = vunpack.c.h.b16 %v2514
        %v2702 = vunpack.c.l.b16 %v2515
        %v2703 = vunpack.c.h.b16 %v2515
        %v2704 = vunpack.c.l.b16 %v2516
        %v2705 = vunpack.c.h.b16 %v2516
        %v2706 = vunpack.c.l.b16 %v2517
        %v2707 = vunpack.c.h.b16 %v2517
        %v2708 = vunpack.c.l.b16 %v2518
        %v2709 = vunpack.c.h.b16 %v2518
        %v2710 = vunpack.c.l.b16 %v2519
        %v2711 = vunpack.c.h.b16 %v2519
        %v2712 = vunpack.c.l.b16 %v2520
        %v2713 = vunpack.c.h.b16 %v2520
        %v2714 = vunpack.c.l.b16 %v2521
        %v2715 = vunpack.c.h.b16 %v2521
        %v2716 = vunpack.c.l.b16 %v2522
        %v2717 = vunpack.c.h.b16 %v2522
        %v2718 = vunpack.c.l.b16 %v2523
        %v2719 = vunpack.c.h.b16 %v2523
        %v2720 = vunpack.c.l.b16 %v2524
        %v2721 = vunpack.c.h.b16 %v2524
        %v2722 = vunpack.c.l.b16 %v2525
        %v2723 = vunpack.c.h.b16 %v2525
        %v2724 = vunpack.c.l.b16 %v2526
        %v2725 = vunpack.c.h.b16 %v2526
        %v2726 = vunpack.c.l.b16 %v2527
        %v2727 = vunpack.c.h.b16 %v2527
        %v2728 = vunpack.c.l.b16 %v2528
        %v2729 = vunpack.c.h.b16 %v2528
        %v2730 = vunpack.c.l.b16 %v2529
        %v2731 = vunpack.c.h.b16 %v2529
        %v2732 = vunpack.c.l.b16 %v2530
        %v2733 = vunpack.c.h.b16 %v2530
        %v2734 = vunpack.c.l.b16 %v2531
        %v2735 = vunpack.c.h.b16 %v2531
        %v2736 = vunpack.c.l.b16 %v2532
        %v2737 = vunpack.c.h.b16 %v2532
        %v2738 = vunpack.c.l.b16 %v2533
        %v2739 = vunpack.c.h.b16 %v2533
        %v2740 = vunpack.c.l.b16 %v2534
        %v2741 = vunpack.c.h.b16 %v2534
        %v2742 = vunpack.c.l.b16 %v2535
        %v2743 = vunpack.c.h.b16 %v2535
        %v2744 = vunpack.c.l.b16 %v2536
        %v2745 = vunpack.c.h.b16 %v2536
        %v2746 = vunpack.c.l.b16 %v2537
        %v2747 = vunpack.c.h.b16 %v2537
        %v2748 = vunpack.c.l.b16 %v2538
        %v2749 = vunpack.c.h.b16 %v2538
        %v2750 = vunpack.c.l.b16 %v2539
        %v2751 = vunpack.c.h.b16 %v2539
        %v2752 = vunpack.c.l.b16 %v2540
        %v2753 = vunpack.c.h.b16 %v2540
        %v2754 = vunpack.c.l.b16 %v2541
        %v2755 = vunpack.c.h.b16 %v2541
        %v2756 = vunpack.c.l.b16 %v2542
        %v2757 = vunpack.c.h.b16 %v2542
        %v2758 = vunpack.c.l.b16 %v2543
        %v2759 = vunpack.c.h.b16 %v2543
        %v2760 = vunpack.c.l.b16 %v2544
        %v2761 = vunpack.c.h.b16 %v2544
        %v2762 = vunpack.c.l.b16 %v2545
        %v2763 = vunpack.c.h.b16 %v2545
        %v2764 = vunpack.c.l.b16 %v2546
        %v2765 = vunpack.c.h.b16 %v2546
        %v2766 = vunpack.c.l.b16 %v2547
        %v2767 = vunpack.c.h.b16 %v2547
        %v2768 = vunpack.c.l.b16 %v2548
        %v2769 = vunpack.c.h.b16 %v2548
        %v2770 = vunpack.c.l.b16 %v2549
        %v2771 = vunpack.c.h.b16 %v2549
        %v2772 = vunpack.c.l.b16 %v2550
        %v2773 = vunpack.c.h.b16 %v2550
        %v2774 = vunpack.c.l.b16 %v2551
        %v2775 = vunpack.c.h.b16 %v2551
        %v2776 = vunpack.c.l.b16 %v2552
        %v2777 = vunpack.c.h.b16 %v2552
        %v2778 = vunpack.c.l.b16 %v2553
        %v2779 = vunpack.c.h.b16 %v2553
        %v2780 = vunpack.c.l.b16 %v2554
        %v2781 = vunpack.c.h.b16 %v2554
        %v2782 = vunpack.c.l.b16 %v2555
        %v2783 = vunpack.c.h.b16 %v2555
        %v2784 = vunpack.c.l.b16 %v2556
        %v2785 = vunpack.c.h.b16 %v2556
        %v2786 = vunpack.c.l.b16 %v2557
        %v2787 = vunpack.c.h.b16 %v2557
        %v2788 = vunpack.c.l.b16 %v2558
        %v2789 = vunpack.c.h.b16 %v2558
        %v2790 = vunpack.c.l.b16 %v2559
        %v2791 = vunpack.c.h.b16 %v2559
        %v2792 = vunpack.c.l.b16 %v2560
        %v2793 = vunpack.c.h.b16 %v2560
        %v2794 = vunpack.c.l.b16 %v2561
        %v2795 = vunpack.c.h.b16 %v2561
        %v2796 = vunpack.c.l.b16 %v2562
        %v2797 = vunpack.c.h.b16 %v2562
        %v2798 = vunpack.c.l.b16 %v2563
        %v2799 = vunpack.c.h.b16 %v2563
        %v2800 = vunpack.c.l.b16 %v2564
        %v2801 = vunpack.c.h.b16 %v2564
        %v2802 = vunpack.c.l.b16 %v2565
        %v2803 = vunpack.c.h.b16 %v2565
        %v2804 = vunpack.c.l.b16 %v2566
        %v2805 = vunpack.c.h.b16 %v2566
        %v2806 = vunpack.c.l.b16 %v2567
        %v2807 = vunpack.c.h.b16 %v2567
        %v2808 = vunpack.c.l.b16 %v2568
        %v2809 = vunpack.c.h.b16 %v2568
        %v2810 = vunpack.c.l.b16 %v2569
        %v2811 = vunpack.c.h.b16 %v2569
        %v2812 = vunpack.c.l.b16 %v2570
        %v2813 = vunpack.c.h.b16 %v2570
        %v2814 = vunpack.c.l.b16 %v2571
        %v2815 = vunpack.c.h.b16 %v2571
        %v2816 = vunpack.c.l.b16 %v2572
        %v2817 = vunpack.c.h.b16 %v2572
        %v2818 = vunpack.c.l.b16 %v2573
        %v2819 = vunpack.c.h.b16 %v2573
        %v2820 = vunpack.c.l.b16 %v2574
        %v2821 = vunpack.c.h.b16 %v2574
        %v2822 = vunpack.c.l.b16 %v2575
        %v2823 = vunpack.c.h.b16 %v2575
        %v2824 = vunpack.c.l.b16 %v2576
        %v2825 = vunpack.c.h.b16 %v2576
        %v2826 = vunpack.c.l.b16 %v2577
        %v2827 = vunpack.c.h.b16 %v2577
        %v2828 = vunpack.c.l.b16 %v2578
        %v2829 = vunpack.c.h.b16 %v2578
        %v2830 = vunpack.c.l.b16 %v2579
        %v2831 = vunpack.c.h.b16 %v2579
        %v2832 = vunpack.c.l.b16 %v2580
        %v2833 = vunpack.c.h.b16 %v2580
        %v2834 = vunpack.c.l.b16 %v2581
        %v2835 = vunpack.c.h.b16 %v2581
        %v2836 = vunpack.c.l.b16 %v2582
        %v2837 = vunpack.c.h.b16 %v2582
        %v2838 = vunpack.c.l.b16 %v2583
        %v2839 = vunpack.c.h.b16 %v2583
        %v2840 = vunpack.c.l.b16 %v2584
        %v2841 = vunpack.c.h.b16 %v2584
        %v2842 = vunpack.c.l.b16 %v2585
        %v2843 = vunpack.c.h.b16 %v2585
        %v2844 = vunpack.c.l.b16 %v2586
        %v2845 = vunpack.c.h.b16 %v2586
        %v2846 = vunpack.c.l.b16 %v2587
        %v2847 = vunpack.c.h.b16 %v2587
        %v2848 = vunpack.c.l.b16 %v2588
        %v2849 = vunpack.c.h.b16 %v2588
        %v2850 = vunpack.c.l.b16 %v2589
        %v2851 = vunpack.c.h.b16 %v2589
        %v2852 = vpack.c.b16 %v2696, %v2692
        %v2853 = vpack.c.b16 %v2697, %v2693
        %v2854 = vpack.c.b16 %v2698, %v2694
        %v2855 = vpack.c.b16 %v2699, %v2695
        %v2856 = vpack.c.b16 %v2704, %v2700
        %v2857 = vpack.c.b16 %v2705, %v2701
        %v2858 = vpack.c.b16 %v2706, %v2702
        %v2859 = vpack.c.b16 %v2707, %v2703
        %v2860 = vpack.c.b16 %v2712, %v2708
        %v2861 = vpack.c.b16 %v2713, %v2709
        %v2862 = vpack.c.b16 %v2714, %v2710
        %v2863 = vpack.c.b16 %v2715, %v2711
        %v2864 = vpack.c.b16 %v2720, %v2716
        %v2865 = vpack.c.b16 %v2721, %v2717
        %v2866 = vpack.c.b16 %v2722, %v2718
        %v2867 = vpack.c.b16 %v2723, %v2719
        %v2868 = vpack.c.b16 %v2728, %v2724
        %v2869 = vpack.c.b16 %v2729, %v2725
        %v2870 = vpack.c.b16 %v2730, %v2726
        %v2871 = vpack.c.b16 %v2731, %v2727
        %v2872 = vpack.c.b16 %v2736, %v2732
        %v2873 = vpack.c.b16 %v2737, %v2733
        %v2874 = vpack.c.b16 %v2738, %v2734
        %v2875 = vpack.c.b16 %v2739, %v2735
        %v2876 = vpack.c.b16 %v2744, %v2740
        %v2877 = vpack.c.b16 %v2745, %v2741
        %v2878 = vpack.c.b16 %v2746, %v2742
        %v2879 = vpack.c.b16 %v2747, %v2743
        %v2880 = vpack.c.b16 %v2752, %v2748
        %v2881 = vpack.c.b16 %v2753, %v2749
        %v2882 = vpack.c.b16 %v2754, %v2750
        %v2883 = vpack.c.b16 %v2755, %v2751
        %v2884 = vpack.c.b16 %v2760, %v2756
        %v2885 = vpack.c.b16 %v2761, %v2757
        %v2886 = vpack.c.b16 %v2762, %v2758
        %v2887 = vpack.c.b16 %v2763, %v2759
        %v2888 = vpack.c.b16 %v2768, %v2764
        %v2889 = vpack.c.b16 %v2769, %v2765
        %v2890 = vpack.c.b16 %v2770, %v2766
        %v2891 = vpack.c.b16 %v2771, %v2767
        %v2892 = vpack.c.b16 %v2776, %v2772
        %v2893 = vpack.c.b16 %v2777, %v2773
        %v2894 = vpack.c.b16 %v2778, %v2774
        %v2895 = vpack.c.b16 %v2779, %v2775
        %v2896 = vpack.c.b16 %v2784, %v2780
        %v2897 = vpack.c.b16 %v2785, %v2781
        %v2898 = vpack.c.b16 %v2786, %v2782
        %v2899 = vpack.c.b16 %v2787, %v2783
        %v2900 = vpack.c.b16 %v2792, %v2788
        %v2901 = vpack.c.b16 %v2793, %v2789
        %v2902 = vpack.c.b16 %v2794, %v2790
        %v2903 = vpack.c.b16 %v2795, %v2791
        %v2904 = vpack.c.b16 %v2800, %v2796
        %v2905 = vpack.c.b16 %v2801, %v2797
        %v2906 = vpack.c.b16 %v2802, %v2798
        %v2907 = vpack.c.b16 %v2803, %v2799
        %v2908 = vpack.c.b16 %v2808, %v2804
        %v2909 = vpack.c.b16 %v2809, %v2805
        %v2910 = vpack.c.b16 %v2810, %v2806
        %v2911 = vpack.c.b16 %v2811, %v2807
        %v2912 = vpack.c.b16 %v2816, %v2812
        %v2913 = vpack.c.b16 %v2817, %v2813
        %v2914 = vpack.c.b16 %v2818, %v2814
        %v2915 = vpack.c.b16 %v2819, %v2815
        %v2916 = vpack.c.b16 %v2824, %v2820
        %v2917 = vpack.c.b16 %v2825, %v2821
        %v2918 = vpack.c.b16 %v2826, %v2822
        %v2919 = vpack.c.b16 %v2827, %v2823
        %v2920 = vpack.c.b16 %v2832, %v2828
        %v2921 = vpack.c.b16 %v2833, %v2829
        %v2922 = vpack.c.b16 %v2834, %v2830
        %v2923 = vpack.c.b16 %v2835, %v2831
        %v2924 = vpack.c.b16 %v2840, %v2836
        %v2925 = vpack.c.b16 %v2841, %v2837
        %v2926 = vpack.c.b16 %v2842, %v2838
        %v2927 = vpack.c.b16 %v2843, %v2839
        %v2928 = vpack.c.b16 %v2848, %v2844
        %v2929 = vpack.c.b16 %v2849, %v2845
        %v2930 = vpack.c.b16 %v2850, %v2846
        %v2931 = vpack.c.b16 %v2851, %v2847
        %v3012 = vsel %vm1354, %v2502, 0
        %3014 = vmatprep.subr.bf16.mxu0 %v2881
        %3015 = vmatpush1.bf16.msra.mxu0 %v2880
        %3016 = vmatprep.subr.bf16.mxu0 %v2877
        %3017 = vmatpush1.bf16.msra.mxu0 %v2876
        %3018 = vmatprep.subr.bf16.mxu0 %v2873
        %3019 = vmatpush1.bf16.msra.mxu0 %v2872
        %3020 = vmatprep.subr.bf16.mxu0 %v2869
        %3021 = vmatpush1.bf16.msra.mxu0 %v2868
        %3022 = vmatprep.subr.bf16.mxu0 %v2865
        %3023 = vmatpush1.bf16.msra.mxu0 %v2864
        %3024 = vmatprep.subr.bf16.mxu0 %v2861
        %3025 = vmatpush1.bf16.msra.mxu0 %v2860
        %3026 = vmatprep.subr.bf16.mxu0 %v2857
        %3027 = vmatpush1.bf16.msra.mxu0 %v2856
        %3028 = vmatprep.subr.bf16.mxu0 %v2853
        %3029 = vmatpush1.bf16.msra.mxu0 %v2852
        %3030 = vmatprep.subr.bf16.mxu0 %v2913
        %3031 = vmatpush2.bf16.msra.mxu0 %v2912
        %3032 = vmatprep.subr.bf16.mxu0 %v2909
        %3033 = vmatpush2.bf16.msra.mxu0 %v2908
        %3034 = vmatprep.subr.bf16.mxu0 %v2905
        %3035 = vmatpush2.bf16.msra.mxu0 %v2904
        %3036 = vmatprep.subr.bf16.mxu0 %v2901
        %3037 = vmatpush2.bf16.msra.mxu0 %v2900
        %3038 = vmatprep.subr.bf16.mxu0 %v2897
        %3039 = vmatpush2.bf16.msra.mxu0 %v2896
        %3040 = vmatprep.subr.bf16.mxu0 %v2893
        %3041 = vmatpush2.bf16.msra.mxu0 %v2892
        %3042 = vmatprep.subr.bf16.mxu0 %v2889
        %3043 = vmatpush2.bf16.msra.mxu0 %v2888
        %3044 = vmatprep.subr.bf16.mxu0 %v2885
        %3045 = vmatpush2.bf16.msra.mxu0 %v2884
        %3046 = vmatprep.mubr.bf16.mxu0 %v2508
        %3047 = vmatmul.mubr.bf16.gmra.mxu0 %v2505
        %v3048 = vpop.f32.mrf.mxu0
        %v3049 = vadd.f32 %v2595, %v3048
        %v3050 = vpop.f32.mrf.mxu0
        %v3051 = vadd.f32 %v2599, %v3050
        %v3052 = vpop.f32.mrf.mxu0
        %v3053 = vpop.f32.mrf.mxu0
        %3054 = vdwg.mxu0
        %3055 = vmatprep.subr.bf16.mxu0 0
        %3056 = vmatpush1.bf16.msra.mxu0 0
        %3057 = vmatprep.subr.bf16.mxu0 0
        %3058 = vmatpush1.bf16.msra.mxu0 0
        %3059 = vmatprep.subr.bf16.mxu0 0
        %3060 = vmatpush1.bf16.msra.mxu0 0
        %3061 = vmatprep.subr.bf16.mxu0 0
        %3062 = vmatpush1.bf16.msra.mxu0 0
        %3063 = vmatprep.subr.bf16.mxu0 %v2929
        %3064 = vmatpush1.bf16.msra.mxu0 %v2928
        %3065 = vmatprep.subr.bf16.mxu0 %v2925
        %3066 = vmatpush1.bf16.msra.mxu0 %v2924
        %3067 = vmatprep.subr.bf16.mxu0 %v2921
        %3068 = vmatpush1.bf16.msra.mxu0 %v2920
        %3069 = vmatprep.subr.bf16.mxu0 %v2917
        %3070 = vmatpush1.bf16.msra.mxu0 %v2916
        %3071 = vmatprep.subr.bf16.mxu0 0
        %3072 = vmatpush2.bf16.msra.mxu0 0
        %3073 = vmatprep.subr.bf16.mxu0 0
        %3074 = vmatpush2.bf16.msra.mxu0 0
        %3075 = vmatprep.subr.bf16.mxu0 0
        %3076 = vmatpush2.bf16.msra.mxu0 0
        %3077 = vmatprep.subr.bf16.mxu0 0
        %3078 = vmatpush2.bf16.msra.mxu0 0
        %3079 = vmatprep.subr.bf16.mxu0 0
        %3080 = vmatpush2.bf16.msra.mxu0 0
        %3081 = vmatprep.subr.bf16.mxu0 0
        %3082 = vmatpush2.bf16.msra.mxu0 0
        %3083 = vmatprep.subr.bf16.mxu0 0
        %3084 = vmatpush2.bf16.msra.mxu0 0
        %3085 = vmatprep.subr.bf16.mxu0 0
        %3086 = vmatpush2.bf16.msra.mxu0 0
        %3087 = vmatprep.mubr.bf16.mxu0 0
        %3088 = vmatmul.mubr.bf16.gmra.mxu0 %v3012
        %v3089 = vpop.f32.mrf.mxu0
        %v3090 = vadd.f32 %v3049, %v3089
        %v3091 = vpop.f32.mrf.mxu0
        %v3092 = vadd.f32 %v3051, %v3091
        %v3093 = vpop.f32.mrf.mxu0
        %v3094 = vpop.f32.mrf.mxu0
        %3095 = vdwg.mxu0
        %3096 = vmatprep.subr.bf16.mxu0 %v2883
        %3097 = vmatpush1.bf16.msra.mxu0 %v2882
        %3098 = vmatprep.subr.bf16.mxu0 %v2879
        %3099 = vmatpush1.bf16.msra.mxu0 %v2878
        %3100 = vmatprep.subr.bf16.mxu0 %v2875
        %3101 = vmatpush1.bf16.msra.mxu0 %v2874
        %3102 = vmatprep.subr.bf16.mxu0 %v2871
        %3103 = vmatpush1.bf16.msra.mxu0 %v2870
        %3104 = vmatprep.subr.bf16.mxu0 %v2867
        %3105 = vmatpush1.bf16.msra.mxu0 %v2866
        %3106 = vmatprep.subr.bf16.mxu0 %v2863
        %3107 = vmatpush1.bf16.msra.mxu0 %v2862
        %3108 = vmatprep.subr.bf16.mxu0 %v2859
        %3109 = vmatpush1.bf16.msra.mxu0 %v2858
        %3110 = vmatprep.subr.bf16.mxu0 %v2855
        %3111 = vmatpush1.bf16.msra.mxu0 %v2854
        %3112 = vmatprep.subr.bf16.mxu0 %v2915
        %3113 = vmatpush2.bf16.msra.mxu0 %v2914
        %3114 = vmatprep.subr.bf16.mxu0 %v2911
        %3115 = vmatpush2.bf16.msra.mxu0 %v2910
        %3116 = vmatprep.subr.bf16.mxu0 %v2907
        %3117 = vmatpush2.bf16.msra.mxu0 %v2906
        %3118 = vmatprep.subr.bf16.mxu0 %v2903
        %3119 = vmatpush2.bf16.msra.mxu0 %v2902
        %3120 = vmatprep.subr.bf16.mxu0 %v2899
        %3121 = vmatpush2.bf16.msra.mxu0 %v2898
        %3122 = vmatprep.subr.bf16.mxu0 %v2895
        %3123 = vmatpush2.bf16.msra.mxu0 %v2894
        %3124 = vmatprep.subr.bf16.mxu0 %v2891
        %3125 = vmatpush2.bf16.msra.mxu0 %v2890
        %3126 = vmatprep.subr.bf16.mxu0 %v2887
        %3127 = vmatpush2.bf16.msra.mxu0 %v2886
        %3128 = vmatprep.mubr.bf16.mxu0 %v2508
        %3129 = vmatmul.mubr.bf16.gmra.mxu0 %v2505
        %v3130 = vpop.f32.mrf.mxu0
        %v3131 = vadd.f32 %v2603, %v3130
        %v3132 = vpop.f32.mrf.mxu0
        %v3133 = vadd.f32 %v2607, %v3132
        %v3134 = vpop.f32.mrf.mxu0
        %v3135 = vpop.f32.mrf.mxu0
        %3136 = vdwg.mxu0
        %3137 = vmatprep.subr.bf16.mxu0 0
        %3138 = vmatpush1.bf16.msra.mxu0 0
        %3139 = vmatprep.subr.bf16.mxu0 0
        %3140 = vmatpush1.bf16.msra.mxu0 0
        %3141 = vmatprep.subr.bf16.mxu0 0
        %3142 = vmatpush1.bf16.msra.mxu0 0
        %3143 = vmatprep.subr.bf16.mxu0 0
        %3144 = vmatpush1.bf16.msra.mxu0 0
        %3145 = vmatprep.subr.bf16.mxu0 %v2931
        %3146 = vmatpush1.bf16.msra.mxu0 %v2930
        %3147 = vmatprep.subr.bf16.mxu0 %v2927
        %3148 = vmatpush1.bf16.msra.mxu0 %v2926
        %3149 = vmatprep.subr.bf16.mxu0 %v2923
        %3150 = vmatpush1.bf16.msra.mxu0 %v2922
        %3151 = vmatprep.subr.bf16.mxu0 %v2919
        %3152 = vmatpush1.bf16.msra.mxu0 %v2918
        %3153 = vmatprep.subr.bf16.mxu0 0
        %3154 = vmatpush2.bf16.msra.mxu0 0
        %3155 = vmatprep.subr.bf16.mxu0 0
        %3156 = vmatpush2.bf16.msra.mxu0 0
        %3157 = vmatprep.subr.bf16.mxu0 0
        %3158 = vmatpush2.bf16.msra.mxu0 0
        %3159 = vmatprep.subr.bf16.mxu0 0
        %3160 = vmatpush2.bf16.msra.mxu0 0
        %3161 = vmatprep.subr.bf16.mxu0 0
        %3162 = vmatpush2.bf16.msra.mxu0 0
        %3163 = vmatprep.subr.bf16.mxu0 0
        %3164 = vmatpush2.bf16.msra.mxu0 0
        %3165 = vmatprep.subr.bf16.mxu0 0
        %3166 = vmatpush2.bf16.msra.mxu0 0
        %3167 = vmatprep.subr.bf16.mxu0 0
        %3168 = vmatpush2.bf16.msra.mxu0 0
        %3169 = vmatprep.mubr.bf16.mxu0 0
        %3170 = vmatmul.mubr.bf16.gmra.mxu0 %v3012
        %v3171 = vpop.f32.mrf.mxu0
        %v3172 = vadd.f32 %v3131, %v3171
        %v3173 = vpop.f32.mrf.mxu0
        %v3174 = vadd.f32 %v3133, %v3173
        %v3175 = vpop.f32.mrf.mxu0
        %v3176 = vpop.f32.mrf.mxu0
        %3177 = vdwg.mxu0
        %v3178 = vxor.u32 %v3090, 2147483648
        %v3179 = vmul.f32 %v3178, 1.442695
        %v3180 = vpow.pop %v3179
        %v3181 = vadd.f32 %v3180, 1.0
        %v3182 = vrcp.pop %v3181
        %v3183 = vmul.f32 1.0, %v3182
        %v3184 = vxor.u32 %v3092, 2147483648
        %v3185 = vmul.f32 %v3184, 1.442695
        %v3186 = vpow.pop %v3185
        %v3187 = vadd.f32 %v3186, 1.0
        %v3188 = vrcp.pop %v3187
        %v3189 = vmul.f32 1.0, %v3188
        %v3190 = vtanh.pop %v3172
        %v3191 = vxor.u32 %v3174, 2147483648
        %v3192 = vmul.f32 %v3191, 1.442695
        %v3193 = vpow.pop %v3192
        %v3194 = vadd.f32 %v3193, 1.0
        %v3195 = vrcp.pop %v3194
        %v3196 = vmul.f32 1.0, %v3195
        %v3197 = vmul.f32 %v3189, %v1030
        %v3198 = vmul.f32 %v3183, %v3190
        %v3199 = vadd.f32 %v3197, %v3198
        %v3200 = vtanh.pop %v3199
        %v3201 = vmul.f32 %v3196, %v3200
        %3202 = vst [vmem:[#allocation4] sm:$0xff] %v3201
        %3203 = vst [vmem:[#allocation6] sm:$0xff] %v3199
        %v3204 = vpack.c.bf16 %v3201, %v3201
        %v3205 = vld [vmem:[%s12] sm:$0xff]
        %v3206 = vld [vmem:[%s12 + $0x8] sm:$0xff]
        %v3207 = vld [vmem:[%s12 + $0x10] sm:$0xff]
        %v3208 = vld [vmem:[%s12 + $0x18] sm:$0xff]
        %v3209 = vld [vmem:[%s12 + $0x20] sm:$0xff]
        %v3210 = vld [vmem:[%s12 + $0x28] sm:$0xff]
        %v3211 = vld [vmem:[%s12 + $0x30] sm:$0xff]
        %v3212 = vld [vmem:[%s12 + $0x38] sm:$0xff]
        %v3213 = vld [vmem:[%s12 + $0x40] sm:$0xff]
        %v3214 = vld [vmem:[%s12 + $0x48] sm:$0xff]
        %v3215 = vld [vmem:[%s12 + $0x50] sm:$0xff]
        %v3216 = vld [vmem:[%s12 + $0x58] sm:$0xff]
        %v3217 = vld [vmem:[%s12 + $0x60] sm:$0xff]
        %v3218 = vld [vmem:[%s12 + $0x68] sm:$0xff]
        %v3219 = vld [vmem:[%s12 + $0x70] sm:$0xff]
        %v3220 = vld [vmem:[%s12 + $0x78] sm:$0xff]
        %v3221 = vld [vmem:[%s13] sm:$0x3]
        %v3223 = vlaneseq
        %v3224 = vshrl.u32 %v3223, 7
        %v3225 = vsub.s32 0, %v3224
        %v3226 = vrot.slane %v3221, %v3225
        %v3227 = vlaneseq
        %v3228 = vshrl.u32 %v3227, 7
        %v3229 = vsub.s32 1, %v3228
        %v3230 = vrot.slane %v3221, %v3229
        %v3249 = vunpack.c.l.b16 %v3205
        %v3250 = vunpack.c.h.b16 %v3205
        %v3251 = vunpack.c.l.b16 %v3206
        %v3252 = vunpack.c.h.b16 %v3206
        %v3253 = vunpack.c.l.b16 %v3207
        %v3254 = vunpack.c.h.b16 %v3207
        %v3255 = vunpack.c.l.b16 %v3208
        %v3256 = vunpack.c.h.b16 %v3208
        %v3257 = vunpack.c.l.b16 %v3209
        %v3258 = vunpack.c.h.b16 %v3209
        %v3259 = vunpack.c.l.b16 %v3210
        %v3260 = vunpack.c.h.b16 %v3210
        %v3261 = vunpack.c.l.b16 %v3211
        %v3262 = vunpack.c.h.b16 %v3211
        %v3263 = vunpack.c.l.b16 %v3212
        %v3264 = vunpack.c.h.b16 %v3212
        %v3265 = vunpack.c.l.b16 %v3213
        %v3266 = vunpack.c.h.b16 %v3213
        %v3267 = vunpack.c.l.b16 %v3214
        %v3268 = vunpack.c.h.b16 %v3214
        %v3269 = vunpack.c.l.b16 %v3215
        %v3270 = vunpack.c.h.b16 %v3215
        %v3271 = vunpack.c.l.b16 %v3216
        %v3272 = vunpack.c.h.b16 %v3216
        %v3273 = vunpack.c.l.b16 %v3217
        %v3274 = vunpack.c.h.b16 %v3217
        %v3275 = vunpack.c.l.b16 %v3218
        %v3276 = vunpack.c.h.b16 %v3218
        %v3277 = vunpack.c.l.b16 %v3219
        %v3278 = vunpack.c.h.b16 %v3219
        %v3279 = vunpack.c.l.b16 %v3220
        %v3280 = vunpack.c.h.b16 %v3220
        %v3281 = vpack.c.b16 %v3251, %v3249
        %v3282 = vpack.c.b16 %v3252, %v3250
        %v3283 = vpack.c.b16 %v3255, %v3253
        %v3284 = vpack.c.b16 %v3256, %v3254
        %v3285 = vpack.c.b16 %v3259, %v3257
        %v3286 = vpack.c.b16 %v3260, %v3258
        %v3287 = vpack.c.b16 %v3263, %v3261
        %v3288 = vpack.c.b16 %v3264, %v3262
        %v3289 = vpack.c.b16 %v3267, %v3265
        %v3290 = vpack.c.b16 %v3268, %v3266
        %v3291 = vpack.c.b16 %v3271, %v3269
        %v3292 = vpack.c.b16 %v3272, %v3270
        %v3293 = vpack.c.b16 %v3275, %v3273
        %v3294 = vpack.c.b16 %v3276, %v3274
        %v3295 = vpack.c.b16 %v3279, %v3277
        %v3296 = vpack.c.b16 %v3280, %v3278
        %3313 = vmatprep.subr.bf16.mxu0 %v3296
        %3314 = vmatpush1.bf16.msra.mxu0 %v3295
        %3315 = vmatprep.subr.bf16.mxu0 %v3294
        %3316 = vmatpush1.bf16.msra.mxu0 %v3293
        %3317 = vmatprep.subr.bf16.mxu0 %v3292
        %3318 = vmatpush1.bf16.msra.mxu0 %v3291
        %3319 = vmatprep.subr.bf16.mxu0 %v3290
        %3320 = vmatpush1.bf16.msra.mxu0 %v3289
        %3321 = vmatprep.subr.bf16.mxu0 %v3288
        %3322 = vmatpush1.bf16.msra.mxu0 %v3287
        %3323 = vmatprep.subr.bf16.mxu0 %v3286
        %3324 = vmatpush1.bf16.msra.mxu0 %v3285
        %3325 = vmatprep.subr.bf16.mxu0 %v3284
        %3326 = vmatpush1.bf16.msra.mxu0 %v3283
        %3327 = vmatprep.subr.bf16.mxu0 %v3282
        %3328 = vmatpush1.bf16.msra.mxu0 %v3281
        %3329 = vmatprep.subr.bf16.mxu0 0
        %3330 = vmatpush2.bf16.msra.mxu0 0
        %3331 = vmatprep.subr.bf16.mxu0 0
        %3332 = vmatpush2.bf16.msra.mxu0 0
        %3333 = vmatprep.subr.bf16.mxu0 0
        %3334 = vmatpush2.bf16.msra.mxu0 0
        %3335 = vmatprep.subr.bf16.mxu0 0
        %3336 = vmatpush2.bf16.msra.mxu0 0
        %3337 = vmatprep.subr.bf16.mxu0 0
        %3338 = vmatpush2.bf16.msra.mxu0 0
        %3339 = vmatprep.subr.bf16.mxu0 0
        %3340 = vmatpush2.bf16.msra.mxu0 0
        %3341 = vmatprep.subr.bf16.mxu0 0
        %3342 = vmatpush2.bf16.msra.mxu0 0
        %3343 = vmatprep.subr.bf16.mxu0 0
        %3344 = vmatpush2.bf16.msra.mxu0 0
        %3345 = vmatprep.mubr.bf16.mxu0 0
        %3346 = vmatmul.mubr.bf16.gmra.mxu0 %v3204
        %v3347 = vpop.f32.mrf.mxu0
        %v3348 = vadd.f32 %v3226, %v3347
        %v3349 = vpop.f32.mrf.mxu0
        %v3350 = vadd.f32 %v3230, %v3349
        %v3351 = vpop.f32.mrf.mxu0
        %v3352 = vpop.f32.mrf.mxu0
        %3353 = vdwg.mxu0
        %v3356 = vcombine.low %v3348, %v3350
        %v3357 = vcombine.high %v3348, %v3350
        %v3359 = vunpack.c.l.s4 1966171168
        %v3360 = vunpack.c.0.s8 %v3359
        %v3361 = vlaneseq
        %v3362 = vshrl.u32 %v3361, 7
        %v3363 = vsub.s32 %v3360, %v3362
        %v3364 = vrot.slane %v3356, %v3363
        %v3366 = vunpack.c.l.s4 1966171168
        %v3367 = vunpack.c.0.s8 %v3366
        %v3368 = vlaneseq
        %v3369 = vshrl.u32 %v3368, 7
        %v3370 = vsub.s32 %v3367, %v3369
        %v3371 = vrot.slane %v3357, %v3370
        %v3372 = vcombine.high %v3364, %v3364
        %v3373 = vcombine.high %v3371, %v3371
        %v3375 = vunpack.c.l.s4 1966171168
        %v3376 = vunpack.c.0.s8 %v3375
        %v3377 = vlaneseq
        %v3378 = vshrl.u32 %v3377, 7
        %v3379 = vsub.s32 %v3376, %v3378
        %v3380 = vrot.slane %v3364, %v3379
        %v3382 = vunpack.c.l.s4 1966171168
        %v3383 = vunpack.c.0.s8 %v3382
        %v3384 = vlaneseq
        %v3385 = vshrl.u32 %v3384, 7
        %v3386 = vsub.s32 %v3383, %v3385
        %v3387 = vrot.slane %v3371, %v3386
        %v3389 = vunpack.c.l.s4 1966171168
        %v3390 = vunpack.c.0.s8 %v3389
        %v3391 = vlaneseq
        %v3392 = vshrl.u32 %v3391, 7
        %v3393 = vsub.s32 %v3390, %v3392
        %v3394 = vrot.slane %v3372, %v3393
        %v3396 = vunpack.c.l.s4 1966171168
        %v3397 = vunpack.c.0.s8 %v3396
        %v3398 = vlaneseq
        %v3399 = vshrl.u32 %v3398, 7
        %v3400 = vsub.s32 %v3397, %v3399
        %v3401 = vrot.slane %v3373, %v3400
        %v3402 = vcombine.high %v3380, %v3380
        %v3403 = vcombine.high %v3387, %v3387
        %v3404 = vcombine.high %v3394, %v3394
        %v3405 = vcombine.high %v3401, %v3401
        %v3414 = vlaneseq
        %vm3415 = vcmp.ge.s32.totalorder %v3414, 0
        %vm3416 = vcmp.lt.s32.totalorder %v3414, 256
        %vm3417 = vmand %vm3415, %vm3416
        %s3418 = sshra.s32 %s32, 3
        %s3419 = sand.u32 %s32, 7
        %s3420 = sshra.s32 %s32, 3
        %s3421 = sand.u32 %s32, 7
        %s3422 = smul.u32 %s3418, 2
        %s3423 = smul.u32 %s3422, 8
        %s3424 = sadd.s32 %s3423, %s3421
        %s3425 = scalar_lea.vmem %s14, %s3424
        %3426 = vst.msk [vmem:[%s3425] ss:$8 sm:$0x3] %vm3417, %v3380
        %3427 = vst.msk [vmem:[%s3425] ss:$8 sm:$0x0] %vm3417, %v3380
        %s3428 = sadd.s32 16, %s3424
        %s3429 = scalar_lea.vmem %s14, %s3428
        %3430 = vst.msk [vmem:[%s3429] ss:$8 sm:$0x3] %vm3417, %v3394
        %3431 = vst.msk [vmem:[%s3429] ss:$8 sm:$0x0] %vm3417, %v3394
        %s3432 = sadd.s32 32, %s3424
        %s3433 = scalar_lea.vmem %s14, %s3432
        %3434 = vst.msk [vmem:[%s3433] ss:$8 sm:$0x3] %vm3417, %v3402
        %3435 = vst.msk [vmem:[%s3433] ss:$8 sm:$0x0] %vm3417, %v3402
        %s3436 = sadd.s32 48, %s3424
        %s3437 = scalar_lea.vmem %s14, %s3436
        %3438 = vst.msk [vmem:[%s3437] ss:$8 sm:$0x3] %vm3417, %v3404
        %3439 = vst.msk [vmem:[%s3437] ss:$8 sm:$0x0] %vm3417, %v3404
        %s3440 = sadd.s32 64, %s3424
        %s3441 = scalar_lea.vmem %s14, %s3440
        %3442 = vst.msk [vmem:[%s3441] ss:$8 sm:$0x3] %vm3417, %v3387
        %3443 = vst.msk [vmem:[%s3441] ss:$8 sm:$0x0] %vm3417, %v3387
        %s3444 = sadd.s32 80, %s3424
        %s3445 = scalar_lea.vmem %s14, %s3444
        %3446 = vst.msk [vmem:[%s3445] ss:$8 sm:$0x3] %vm3417, %v3401
        %3447 = vst.msk [vmem:[%s3445] ss:$8 sm:$0x0] %vm3417, %v3401
        %s3448 = sadd.s32 96, %s3424
        %s3449 = scalar_lea.vmem %s14, %s3448
        %3450 = vst.msk [vmem:[%s3449] ss:$8 sm:$0x3] %vm3417, %v3403
        %3451 = vst.msk [vmem:[%s3449] ss:$8 sm:$0x0] %vm3417, %v3403
        %s3452 = sadd.s32 112, %s3424
        %s3453 = scalar_lea.vmem %s14, %s3452
        %3454 = vst.msk [vmem:[%s3453] ss:$8 sm:$0x3] %vm3417, %v3405
        %3455 = vst.msk [vmem:[%s3453] ss:$8 sm:$0x0] %vm3417, %v3405
        // Predicated region
        $region81: #{decoder_forward.1} parent=75 // pred_check
          %p3456 = pneg %p344
        $region82: #{decoder_forward.1} parent=75 // pred_check_branch
          %3458 = sbr.rel (%p3456) target = $region84
        $region83: #{decoder_forward.1} parent=75 // pred_region
          _
        $region84: #{decoder_forward.1} parent=75 // pred_fallthru
          _
        // Predicated region
        $region85: #{decoder_forward.1} parent=75 // pred_check
          %p3459 = pneg %p365
        $region86: #{decoder_forward.1} parent=75 // pred_check_branch
          %3461 = sbr.rel (%p3459) target = $region88
        $region87: #{decoder_forward.1} parent=75 // pred_region
          %s3463 = ssub.s32 128, 128
          %3464 = vsyncadd [#allocation5], %s3463
          %s3466 = sshll.u32 [#allocation4], 4
          %s3467 = int_to_ptr.vmem [resolvable:$true] %s3466
          %3469 = dma.vmem_to_hbm [thread:$0]  %s3467, 128, %s15, [#allocation5]
        $region88: #{decoder_forward.1} parent=75 // pred_fallthru
          _
        // Predicated region
        $region89: #{decoder_forward.1} parent=75 // pred_check
          %p3470 = pneg %p386
        $region90: #{decoder_forward.1} parent=75 // pred_check_branch
          %3472 = sbr.rel (%p3470) target = $region92
        $region91: #{decoder_forward.1} parent=75 // pred_region
          %s3474 = ssub.s32 128, 128
          %3475 = vsyncadd [#allocation7], %s3474
          %s3477 = sshll.u32 [#allocation6], 4
          %s3478 = int_to_ptr.vmem [resolvable:$true] %s3477
          %3480 = dma.vmem_to_hbm [thread:$0]  %s3478, 128, %s16, [#allocation7]
        $region92: #{decoder_forward.1} parent=75 // pred_fallthru
          _
        // Predicated region
        $region93: #{decoder_forward.1} parent=75 // pred_check
          %p3481 = pneg %p344
        $region94: #{decoder_forward.1} parent=75 // pred_check_branch
          %3483 = sbr.rel (%p3481) target = $region96
        $region95: #{decoder_forward.1} parent=75 // pred_region
          _
        $region96: #{decoder_forward.1} parent=75 // pred_fallthru
          _
        // Predicated region
        $region97: #{decoder_forward.1} parent=75 // pred_check
          %p3484 = pneg %p365
        $region98: #{decoder_forward.1} parent=75 // pred_check_branch
          %3486 = sbr.rel (%p3484) target = $region100
        $region99: #{decoder_forward.1} parent=75 // pred_region
          %3487 = dma.done [#allocation5], 128
        $region100: #{decoder_forward.1} parent=75 // pred_fallthru
          _
        // Predicated region
        $region101: #{decoder_forward.1} parent=75 // pred_check
          %p3488 = pneg %p386
        $region102: #{decoder_forward.1} parent=75 // pred_check_branch
          %3490 = sbr.rel (%p3488) target = $region104
        $region103: #{decoder_forward.1} parent=75 // pred_region
          %3491 = dma.done [#allocation7], 128
        $region104: #{decoder_forward.1} parent=75 // pred_fallthru
          _
      $region76: #{decoder_forward.1} parent=5 // pred_fallthru
        _
      %p3492 = scmp.le.s32.totalorder 2, %s27
      // Predicated region
      $region105: #{decoder_forward.1} parent=5 // pred_check
        %p3493 = pneg %p3492
      $region106: #{decoder_forward.1} parent=5 // pred_check_branch
        %3495 = sbr.rel (%p3493) target = $region108
      $region107: #{decoder_forward.1} parent=5 // pred_region
        %s3496 = ssub.s32 %s27, 2
      $region108: #{decoder_forward.1} parent=5 // pred_fallthru
        _
    $region6: #{decoder_forward.1} parent=1 // loop_footer
      %s31 = sadd.s32 1, %s27
    $region7: #{decoder_forward.1} parent=1 // loop_footer_branch
      %26 = sbr.rel target = $region3
    $region8: #{decoder_forward.1} parent=1 // loop_exit
      _
    %3497 = vsyncpa [#allocation5], 1
    %s3498 = scalar_lea.sflag [#allocation5], 1
    %3499 = vsyncpa %s3498, 1
    %3500 = vsyncpa [#allocation7], 1

</llo_original>
